<compile_context>
chip_gen: v7x
topology: tpu7x:2x2x1
jax: 0.10.0
libtpu: 0.0.40
codegen_flags: <defaults>
</compile_context>

<pallas_src>
import functools
import math

import jax
import jax.numpy as jnp
from jax import lax
from jax.experimental import pallas as pl
from jax.experimental.pallas import tpu as pltpu

# ----- config (small synthetic DETR standing in for the HF backbone/encoder/decoder) -----
IMG = 32
PATCH = 8
IN_CH = 3
D_MODEL = 32
N_HEADS = 4
HEAD_DIM = D_MODEL // N_HEADS
FFN_DIM = 64
NUM_QUERIES = 8
NUM_CLASSES = 4            # foreground classes; +1 "no-object"
NUM_LABELS = NUM_CLASSES + 1
SEQ = (IMG // PATCH) ** 2  # 16 tokens
THRESHOLD = 0.9
LN_EPS = 1e-5

# packed (lane-dense) output column layout: one [B, Q, 128] f32 slab
_PK_LOGITS = 0
_PK_PBOX = NUM_LABELS               # raw pred_boxes (cxcywh, normalized)
_PK_BOX = NUM_LABELS + 4            # post-processed boxes (pixel xywh)
_PK_SCORE = NUM_LABELS + 8
_PK_LABEL = _PK_SCORE + 1
_PK_KEEP = _PK_SCORE + 2
_PK_USED = _PK_KEEP + 1
OUT_LANES = 128

_SLAB_WIDTH = 128  # one lane tile; every param stored starting at column 0


# ---------------- single weight-slab packing (one DMA for all parameters) ----------------

class _SlabPacker:
    """Packs every (folded / fused) parameter into one [R, 128] f32 slab.
    Each parameter starts at a sublane-aligned (multiple-of-8) row and at column 0,
    so in-kernel reads are cheap static slices."""

    def __init__(self):
        self._chunks = []
        self.index = {}          # name -> (row_offset, rows, cols)  (static Python ints)
        self._rows = 0

    def add(self, name, arr):
        arr = jnp.asarray(arr, jnp.float32)
        if arr.ndim == 1:
            arr = arr.reshape(1, -1)
        r, c = arr.shape
        r_pad = -(-r // 8) * 8
        chunk = jnp.zeros((r_pad, _SLAB_WIDTH), jnp.float32).at[:r, :c].set(arr)
        self.index[name] = (self._rows, r, c)
        self._chunks.append(chunk)
        self._rows += r_pad

    def finalize(self):
        return jnp.concatenate(self._chunks, axis=0), self.index


def _pack_params(params):
    """Fold the 1/sqrt(Dh) attention scale into Wq, fold positional / query-positional
    projections into precomputed additive bias slabs, fuse q/k/v into one [D,3D] weight,
    fuse the class head with box-MLP layer 1, and pack everything into one slab."""
    scale = 1.0 / math.sqrt(HEAD_DIM)
    pos = params["pos_embed"]        # [SEQ, D]
    qpos = params["query_pos"]       # [Q, D]
    pk = _SlabPacker()

    pk.add("patch_w", params["patch_w"])
    pk.add("patch_b", params["patch_b"])

    def add_self_attn(prefix, mp, p_embed, slen):
        wq = mp["wq"] * scale
        bq = mp["bq"] * scale
        w_qkv = jnp.concatenate([wq, mp["wk"], mp["wv"]], axis=1)            # [D, 3D]
        pbias = jnp.concatenate(
            [p_embed @ wq + bq[None, :],
             p_embed @ mp["wk"] + mp["bk"][None, :],
             jnp.broadcast_to(mp["bv"][None, :], (slen, D_MODEL))], axis=1)  # [slen, 3D]
        pk.add(prefix + "_wqkv", w_qkv)
        pk.add(prefix + "_pbias", pbias)
        pk.add(prefix + "_wo", mp["wo"])
        pk.add(prefix + "_bo", mp["bo"])

    for li, lp in enumerate(params["encoder"]):
        add_self_attn(f"enc{li}", lp["attn"], pos, SEQ)
        pk.add(f"enc{li}_n1g", lp["n1_g"]); pk.add(f"enc{li}_n1b", lp["n1_b"])
        pk.add(f"enc{li}_fw1", lp["ffn_w1"]); pk.add(f"enc{li}_fb1", lp["ffn_b1"])
        pk.add(f"enc{li}_fw2", lp["ffn_w2"]); pk.add(f"enc{li}_fb2", lp["ffn_b2"])
        pk.add(f"enc{li}_n2g", lp["n2_g"]); pk.add(f"enc{li}_n2b", lp["n2_b"])

    for li, lp in enumerate(params["decoder"]):
        add_self_attn(f"dec{li}_sa", lp["sa"], qpos, NUM_QUERIES)
        pk.add(f"dec{li}_n1g", lp["n1_g"]); pk.add(f"dec{li}_n1b", lp["n1_b"])
        ca = lp["ca"]
        wq = ca["wq"] * scale
        bq = ca["bq"] * scale
        pk.add(f"dec{li}_ca_wq", wq)
        pk.add(f"dec{li}_ca_qb", qpos @ wq + bq[None, :])                    # [Q, D]
        pk.add(f"dec{li}_ca_wkv", jnp.concatenate([ca["wk"], ca["wv"]], axis=1))
        pk.add(f"dec{li}_ca_kvb", jnp.concatenate(
            [pos @ ca["wk"] + ca["bk"][None, :],
             jnp.broadcast_to(ca["bv"][None, :], (SEQ, D_MODEL))], axis=1))  # [SEQ, 2D]
        pk.add(f"dec{li}_ca_wo", ca["wo"])
        pk.add(f"dec{li}_ca_bo", ca["bo"])
        pk.add(f"dec{li}_n2g", lp["n2_g"]); pk.add(f"dec{li}_n2b", lp["n2_b"])
        pk.add(f"dec{li}_fw1", lp["ffn_w1"]); pk.add(f"dec{li}_fb1", lp["ffn_b1"])
        pk.add(f"dec{li}_fw2", lp["ffn_w2"]); pk.add(f"dec{li}_fb2", lp["ffn_b2"])
        pk.add(f"dec{li}_n3g", lp["n3_g"]); pk.add(f"dec{li}_n3b", lp["n3_b"])

    # heads: box-MLP layer-1 weights first (lane-0-aligned slice), class head after.
    pk.add("head_w", jnp.concatenate([params["box_w1"], params["cls_w"]], axis=1))
    pk.add("head_b", jnp.concatenate([params["box_b1"], params["cls_b"]], axis=0))
    pk.add("box_w2", params["box_w2"]); pk.add("box_b2", params["box_b2"])
    pk.add("box_w3", params["box_w3"]); pk.add("box_b3", params["box_b3"])
    return pk.finalize()


# ---------------- in-kernel building blocks ----------------

def _layernorm(x, g, b):
    mean = jnp.mean(x, axis=-1, keepdims=True)
    var = jnp.mean((x - mean) ** 2, axis=-1, keepdims=True)
    return (x - mean) * lax.rsqrt(var + LN_EPS) * g + b


def _softmax(s):
    m = jnp.max(s, axis=-1, keepdims=True)
    p = jnp.exp(s - m)
    return p * pl.reciprocal(jnp.sum(p, axis=-1, keepdims=True), approx=True)  # EUP slot


def _mm3(x3, w):
    """[b, s, d] @ [d, n] -> [b, s, n]; leading-dim merge/split reshapes are layout-free."""
    b, s, d = x3.shape
    y = jnp.dot(x3.reshape(b * s, d), w, preferred_element_type=jnp.float32)
    return y.reshape(b, s, w.shape[-1])


def _attn_core(q3, k3, v3, wo, bo):
    """Batched multi-head attention; the head 'concat' is folded into the output
    projection by accumulating per-head contributions through row-slices of Wo."""
    out = None
    for h in range(N_HEADS):
        sl = slice(h * HEAD_DIM, (h + 1) * HEAD_DIM)
        s = jnp.einsum("bqd,bkd->bqk", q3[..., sl], k3[..., sl],
                       preferred_element_type=jnp.float32)
        ctx = jnp.einsum("bqk,bkd->bqd", _softmax(s), v3[..., sl],
                         preferred_element_type=jnp.float32)
        contrib = _mm3(ctx, wo[sl, :])
        out = contrib if out is None else out + contrib
    return out + bo


def _encoder_layer(get, pfx, src):
    qkv = _mm3(src, get(pfx + "_wqkv")) + get(pfx + "_pbias")[None]
    attn = _attn_core(qkv[..., :D_MODEL], qkv[..., D_MODEL:2 * D_MODEL],
                      qkv[..., 2 * D_MODEL:], get(pfx + "_wo"), get(pfx + "_bo"))
    src = _layernorm(src + attn, get(pfx + "_n1g"), get(pfx + "_n1b"))
    h = jnp.maximum(_mm3(src, get(pfx + "_fw1")) + get(pfx + "_fb1"), 0.0)
    ffn = _mm3(h, get(pfx + "_fw2")) + get(pfx + "_fb2")
    return _layernorm(src + ffn, get(pfx + "_n2g"), get(pfx + "_n2b"))


def _decoder_layer(get, pfx, tgt, memory):
    qkv = _mm3(tgt, get(pfx + "_sa_wqkv")) + get(pfx + "_sa_pbias")[None]
    sa = _attn_core(qkv[..., :D_MODEL], qkv[..., D_MODEL:2 * D_MODEL],
                    qkv[..., 2 * D_MODEL:], get(pfx + "_sa_wo"), get(pfx + "_sa_bo"))
    tgt = _layernorm(tgt + sa, get(pfx + "_n1g"), get(pfx + "_n1b"))

    q = _mm3(tgt, get(pfx + "_ca_wq")) + get(pfx + "_ca_qb")[None]
    kv = _mm3(memory, get(pfx + "_ca_wkv")) + get(pfx + "_ca_kvb")[None]
    ca = _attn_core(q, kv[..., :D_MODEL], kv[..., D_MODEL:],
                    get(pfx + "_ca_wo"), get(pfx + "_ca_bo"))
    tgt = _layernorm(tgt + ca, get(pfx + "_n2g"), get(pfx + "_n2b"))

    h = jnp.maximum(_mm3(tgt, get(pfx + "_fw1")) + get(pfx + "_fb1"), 0.0)
    ffn = _mm3(h, get(pfx + "_fw2")) + get(pfx + "_fb2")
    return _layernorm(tgt + ffn, get(pfx + "_n3g"), get(pfx + "_n3b"))


# ---------------- the fused Pallas kernel (one grid step = one image) ----------------

def _fused_detr_kernel(patches_ref, slab_ref, out_ref, *,
                       index, num_enc, num_dec, threshold, scale_wh):
    def get(name):
        off, r, c = index[name]
        return slab_ref[off:off + r, :c]

    bsz = patches_ref.shape[0]   # 1 per grid step (batch is the grid axis)

    # "backbone" + input projection: stride-PATCH conv as one matmul (K = C*P*P = 192)
    x = jnp.dot(patches_ref[...].reshape(bsz * SEQ, -1), get("patch_w"),
                preferred_element_type=jnp.float32) + get("patch_b")
    src = x.reshape(bsz, SEQ, D_MODEL)

    # TODO(synk): switch to lax.fori_loop over stacked per-layer slabs if num_enc/num_dec
    # grows beyond ~2 (vreg live-range pressure); Python unroll is fine at 1 layer each.
    for li in range(num_enc):
        src = _encoder_layer(get, f"enc{li}", src)
    memory = src

    tgt = jnp.zeros((bsz, NUM_QUERIES, D_MODEL), jnp.float32)   # zero decoder input
    for li in range(num_dec):
        tgt = _decoder_layer(get, f"dec{li}", tgt, memory)

    # heads: class head fused with box-MLP layer 1 (one N = D + NUM_LABELS matmul)
    head = _mm3(tgt, get("head_w")) + get("head_b")
    hb = jnp.maximum(head[..., :D_MODEL], 0.0)
    logits = head[..., D_MODEL:]                                 # [b, Q, NUM_LABELS]
    hb = jnp.maximum(_mm3(hb, get("box_w2")) + get("box_b2"), 0.0)
    pred_boxes = jax.nn.sigmoid(_mm3(hb, get("box_w3")) + get("box_b3"))   # cxcywh

    # post_process_object_detection: softmax, drop no-object, max score/label,
    # cxcywh -> xyxy -> pixel scale; then convert_detr_predictions: xyxy -> xywh.
    m = jnp.max(logits, axis=-1, keepdims=True)
    e = jnp.exp(logits - m)
    prob = e / jnp.sum(e, axis=-1, keepdims=True)                # exact (threshold-relevant)
    cls_prob = prob[..., :NUM_CLASSES]
    scores = jnp.max(cls_prob, axis=-1, keepdims=True)
    ids = lax.broadcasted_iota(jnp.int32, cls_prob.shape, 2)
    labels = jnp.min(jnp.where(cls_prob == scores, ids, NUM_CLASSES),
                     axis=-1, keepdims=True)
    keep = (scores > threshold).astype(jnp.float32)

    w_img, h_img = scale_wh                                      # static Python floats
    cx, cy = pred_boxes[..., 0:1], pred_boxes[..., 1:2]
    bw, bh = pred_boxes[..., 2:3], pred_boxes[..., 3:4]
    x0 = (cx - 0.5 * bw) * w_img
    y0 = (cy - 0.5 * bh) * h_img
    x1 = (cx + 0.5 * bw) * w_img
    y1 = (cy + 0.5 * bh) * h_img
    # xyxy -> xywh (center form, ultralytics xyxy2xywh convention)
    # TODO(synk): if convert_detr_predictions' xyxy2xywh means COCO top-left xywh, the
    # first two output columns should be x0, y0 instead of the box center.

    # direct lane-offset sub-stores into the 128-lane output slab (no lane concats)
    out_ref[:, :, _PK_LOGITS:_PK_LOGITS + NUM_LABELS] = logits
    out_ref[:, :, _PK_PBOX:_PK_PBOX + 4] = pred_boxes
    out_ref[:, :, _PK_BOX + 0:_PK_BOX + 1] = (x0 + x1) * 0.5
    out_ref[:, :, _PK_BOX + 1:_PK_BOX + 2] = (y0 + y1) * 0.5
    out_ref[:, :, _PK_BOX + 2:_PK_BOX + 3] = x1 - x0
    out_ref[:, :, _PK_BOX + 3:_PK_BOX + 4] = y1 - y0
    out_ref[:, :, _PK_SCORE:_PK_SCORE + 1] = scores
    out_ref[:, :, _PK_LABEL:_PK_LABEL + 1] = labels.astype(jnp.float32)
    out_ref[:, :, _PK_KEEP:_PK_KEEP + 1] = keep
    out_ref[:, :, _PK_USED:] = jnp.zeros(
        (bsz, NUM_QUERIES, OUT_LANES - _PK_USED), jnp.float32)


# ---------------- host-side wrapper ----------------

def base_detr_forward(params, pixel_values, labels=None, threshold=None, training=False):
    """Mirrors BaseDetr.forward (eval path): model -> post_process_object_detection ->
    convert_detr_predictions, all inside one fused Pallas kernel gridded over batch."""
    B, C, H, W = pixel_values.shape
    gh, gw = H // PATCH, W // PATCH
    thr = float(THRESHOLD if threshold is None else threshold)

    # patch extraction is pure layout; the projection matmul runs inside the fused kernel
    patches = pixel_values.reshape(B, C, gh, PATCH, gw, PATCH)
    patches = patches.transpose(0, 2, 4, 1, 3, 5).reshape(B, gh * gw, C * PATCH * PATCH)

    slab, index = _pack_params(params)
    num_enc = len(params["encoder"])
    num_dec = len(params["decoder"])

    kernel = functools.partial(
        _fused_detr_kernel, index=index, num_enc=num_enc, num_dec=num_dec,
        threshold=thr, scale_wh=(float(W), float(H)))   # target_sizes=(H,W) per image

    out = pl.pallas_call(
        kernel,
        grid=(B,),
        in_specs=[
            pl.BlockSpec((1, SEQ, C * PATCH * PATCH), lambda b: (b, 0, 0)),
            pl.BlockSpec(slab.shape, lambda b: (0, 0)),      # weight slab: resident, 1 DMA
        ],
        out_specs=pl.BlockSpec((1, NUM_QUERIES, OUT_LANES), lambda b: (b, 0, 0)),
        out_shape=jax.ShapeDtypeStruct((B, NUM_QUERIES, OUT_LANES), jnp.float32),
        compiler_params=pltpu.CompilerParams(dimension_semantics=("parallel",)),
    )(patches, slab)

    logits = out[:, :, _PK_LOGITS:_PK_LOGITS + NUM_LABELS]
    pred_boxes = out[:, :, _PK_PBOX:_PK_PBOX + 4]

    outputs = {"logits": logits, "pred_boxes": pred_boxes}
    # TODO(synk): Hungarian-matching DETR loss (the `labels is not None` path) has no clean
    # Pallas equivalent; loss/LossOutput is omitted (labels=None here, matching eval usage).
    if not training:
        # TODO(synk): per-image ragged filtering (scores > threshold) is returned as dense
        # arrays plus a boolean `keep` mask instead of variable-length Python lists.
        outputs["predictions"] = {
            "scores": out[:, :, _PK_SCORE],
            "labels": out[:, :, _PK_LABEL].astype(jnp.int32),
            "boxes": out[:, :, _PK_BOX:_PK_BOX + 4],
            "keep": out[:, :, _PK_KEEP] > 0.5,
        }
    return outputs


# ---------------- deterministic parameter init (PyTorch-style, unpacked) ----------------

def init_params(key, num_enc=1, num_dec=1):
    def nxt():
        nonlocal key
        key, sub = jax.random.split(key)
        return sub

    def lin_init(k_in, k_out, scale=0.05):
        return (jax.random.normal(nxt(), (k_in, k_out), jnp.float32) * scale,
                jnp.zeros((k_out,), jnp.float32))

    def mha_init():
        wq, bq = lin_init(D_MODEL, D_MODEL)
        wk, bk = lin_init(D_MODEL, D_MODEL)
        wv, bv = lin_init(D_MODEL, D_MODEL)
        wo, bo = lin_init(D_MODEL, D_MODEL)
        return dict(wq=wq, bq=bq, wk=wk, bk=bk, wv=wv, bv=bv, wo=wo, bo=bo)

    def ln_init():
        return jnp.ones((D_MODEL,), jnp.float32), jnp.zeros((D_MODEL,), jnp.float32)

    params = {}
    params["patch_w"], params["patch_b"] = lin_init(IN_CH * PATCH * PATCH, D_MODEL)
    params["pos_embed"] = jax.random.normal(nxt(), (SEQ, D_MODEL), jnp.float32) * 0.05
    params["query_pos"] = jax.random.normal(nxt(), (NUM_QUERIES, D_MODEL), jnp.float32) * 0.05

    enc = []
    for _ in range(num_enc):
        lp = {"attn": mha_init()}
        lp["n1_g"], lp["n1_b"] = ln_init()
        lp["ffn_w1"], lp["ffn_b1"] = lin_init(D_MODEL, FFN_DIM)
        lp["ffn_w2"], lp["ffn_b2"] = lin_init(FFN_DIM, D_MODEL)
        lp["n2_g"], lp["n2_b"] = ln_init()
        enc.append(lp)
    params["encoder"] = enc

    dec = []
    for _ in range(num_dec):
        lp = {"sa": mha_init()}
        lp["n1_g"], lp["n1_b"] = ln_init()
        lp["ca"] = mha_init()
        lp["n2_g"], lp["n2_b"] = ln_init()
        lp["ffn_w1"], lp["ffn_b1"] = lin_init(D_MODEL, FFN_DIM)
        lp["ffn_w2"], lp["ffn_b2"] = lin_init(FFN_DIM, D_MODEL)
        lp["n3_g"], lp["n3_b"] = ln_init()
        dec.append(lp)
    params["decoder"] = dec

    params["cls_w"], params["cls_b"] = lin_init(D_MODEL, NUM_LABELS)
    params["box_w1"], params["box_b1"] = lin_init(D_MODEL, D_MODEL)
    params["box_w2"], params["box_b2"] = lin_init(D_MODEL, D_MODEL)
    params["box_w3"], params["box_b3"] = lin_init(D_MODEL, 4)
    return params


if __name__ == "__main__":
    key = jax.random.PRNGKey(0)
    pkey, xkey = jax.random.split(key)
    params = init_params(pkey)
    pixel_values = jax.random.normal(xkey, (2, IN_CH, IMG, IMG), jnp.float32)

    forward = jax.jit(functools.partial(base_detr_forward, training=False))
    outputs = forward(params, pixel_values)
    jax.block_until_ready(outputs)

    assert outputs["logits"].shape == (2, NUM_QUERIES, NUM_LABELS)
    assert outputs["pred_boxes"].shape == (2, NUM_QUERIES, 4)
    preds = outputs["predictions"]
    assert preds["boxes"].shape == (2, NUM_QUERIES, 4)
    assert preds["scores"].shape == (2, NUM_QUERIES)
    assert preds["labels"].shape == (2, NUM_QUERIES)
    assert preds["keep"].shape == (2, NUM_QUERIES)
    assert bool(jnp.all(jnp.isfinite(outputs["logits"])))
    assert bool(jnp.all((preds["scores"] >= 0.0) & (preds["scores"] <= 1.0)))
    print("KERNEL_OK")
</pallas_src>

<mosaic_0001>
module attributes {stable_mosaic.version = 11 : i64} {
  func.func @_fused_detr_kernel(%arg0: i32, %arg1: memref<1x16x192xf32, #tpu.memory_space<vmem>>, %arg2: memref<920x128xf32, #tpu.memory_space<vmem>>, %arg3: memref<1x8x128xf32, #tpu.memory_space<vmem>>) attributes {dimension_semantics = [#tpu.dimension_semantics<parallel>], iteration_bounds = array<i64: 2>, scalar_prefetch = 0 : i64, scratch_operands = 0 : i64, tpu.core_type = #tpu.core_type<tc>, window_params = [{transform_indices = @transform_0, window_bounds = array<i64: 1, 16, 192>}, {pipeline_mode = #tpu.pipeline_mode<synchronous>, transform_indices = @transform_1, window_bounds = array<i64: 920, 128>}, {transform_indices = @transform_2, window_bounds = array<i64: 1, 8, 128>}]} {
    %c0 = arith.constant 0 : index
    %c0_0 = arith.constant 0 : index
    %c0_1 = arith.constant 0 : index
    %0 = vector.load %arg1[%c0, %c0_0, %c0_1] : memref<1x16x192xf32, #tpu.memory_space<vmem>>, vector<1x16x192xf32>
    %1 = vector.shape_cast %0 : vector<1x16x192xf32> to vector<16x192xf32>
    %c0_2 = arith.constant 0 : index
    %c0_3 = arith.constant 0 : index
    %2 = vector.load %arg2[%c0_2, %c0_3] : memref<920x128xf32, #tpu.memory_space<vmem>>, vector<192x32xf32>
    %cst = arith.constant dense<0.000000e+00> : vector<16x32xf32>
    %3 = tpu.matmul %1, %2, %cst {dimension_numbers = #tpu.dot_dimension_numbers<[1], [0], [0], [1], [0, 0, 1, 1], [], []>} : vector<16x192xf32>, vector<192x32xf32>, vector<16x32xf32> -> vector<16x32xf32>
    %c192 = arith.constant 192 : index
    %c0_4 = arith.constant 0 : index
    %4 = vector.load %arg2[%c192, %c0_4] : memref<920x128xf32, #tpu.memory_space<vmem>>, vector<1x32xf32>
    %5 = vector.broadcast %4 : vector<1x32xf32> to vector<16x32xf32>
    %6 = arith.addf %3, %5 : vector<16x32xf32>
    %7 = vector.shape_cast %6 : vector<16x32xf32> to vector<1x16x32xf32>
    %c200 = arith.constant 200 : index
    %c0_5 = arith.constant 0 : index
    %8 = vector.load %arg2[%c200, %c0_5] : memref<920x128xf32, #tpu.memory_space<vmem>>, vector<32x96xf32>
    %9 = vector.shape_cast %7 : vector<1x16x32xf32> to vector<16x32xf32>
    %cst_6 = arith.constant dense<0.000000e+00> : vector<16x96xf32>
    %10 = tpu.matmul %9, %8, %cst_6 {dimension_numbers = #tpu.dot_dimension_numbers<[1], [0], [0], [1], [0, 0, 1, 1], [], []>} : vector<16x32xf32>, vector<32x96xf32>, vector<16x96xf32> -> vector<16x96xf32>
    %11 = vector.shape_cast %10 : vector<16x96xf32> to vector<1x16x96xf32>
    %c232 = arith.constant 232 : index
    %c0_7 = arith.constant 0 : index
    %12 = vector.load %arg2[%c232, %c0_7] : memref<920x128xf32, #tpu.memory_space<vmem>>, vector<16x96xf32>
    %13 = vector.shape_cast %12 : vector<16x96xf32> to vector<1x16x96xf32>
    %14 = arith.addf %11, %13 : vector<1x16x96xf32>
    %15 = vector.extract_strided_slice %14 {offsets = [0, 0, 0], sizes = [1, 16, 32], strides = [1, 1, 1]} : vector<1x16x96xf32> to vector<1x16x32xf32>
    %16 = vector.extract_strided_slice %14 {offsets = [0, 0, 32], sizes = [1, 16, 32], strides = [1, 1, 1]} : vector<1x16x96xf32> to vector<1x16x32xf32>
    %17 = vector.extract_strided_slice %14 {offsets = [0, 0, 64], sizes = [1, 16, 32], strides = [1, 1, 1]} : vector<1x16x96xf32> to vector<1x16x32xf32>
    %c248 = arith.constant 248 : index
    %c0_8 = arith.constant 0 : index
    %18 = vector.load %arg2[%c248, %c0_8] : memref<920x128xf32, #tpu.memory_space<vmem>>, vector<32x32xf32>
    %c280 = arith.constant 280 : index
    %c0_9 = arith.constant 0 : index
    %19 = vector.load %arg2[%c280, %c0_9] : memref<920x128xf32, #tpu.memory_space<vmem>>, vector<1x32xf32>
    %20 = vector.extract_strided_slice %15 {offsets = [0, 0, 0], sizes = [1, 16, 8], strides = [1, 1, 1]} : vector<1x16x32xf32> to vector<1x16x8xf32>
    %21 = vector.extract_strided_slice %16 {offsets = [0, 0, 0], sizes = [1, 16, 8], strides = [1, 1, 1]} : vector<1x16x32xf32> to vector<1x16x8xf32>
    "tpu.trace_start"() <{level = 10 : i32, message = "bqd,bkd->bqk"}> : () -> ()
    %cst_10 = arith.constant dense<0.000000e+00> : vector<1x16x16xf32>
    %22 = tpu.matmul %20, %21, %cst_10 {dimension_numbers = #tpu.dot_dimension_numbers<[2], [2], [1], [1], [0, 0, 0, 1, 1, 1], [0], [0]>} : vector<1x16x8xf32>, vector<1x16x8xf32>, vector<1x16x16xf32> -> vector<1x16x16xf32>
    "tpu.trace_stop"() : () -> ()
    %cst_11 = arith.constant dense<0xFF800000> : vector<1x16xf32>
    %23 = vector.multi_reduction <maximumf>, %22, %cst_11 [2] : vector<1x16x16xf32> to vector<1x16xf32>
    %24 = vector.shape_cast %23 : vector<1x16xf32> to vector<1x16x1xf32>
    %25 = vector.broadcast %24 : vector<1x16x1xf32> to vector<1x16x16xf32>
    %26 = arith.subf %22, %25 : vector<1x16x16xf32>
    %27 = math.exp %26 : vector<1x16x16xf32>
    %cst_12 = arith.constant dense<0.000000e+00> : vector<1x16xf32>
    %28 = vector.multi_reduction <add>, %27, %cst_12 [2] : vector<1x16x16xf32> to vector<1x16xf32>
    %29 = vector.shape_cast %28 : vector<1x16xf32> to vector<1x16x1xf32>
    %30 = tpu.reciprocal %29 {approx = true} : vector<1x16x1xf32> -> vector<1x16x1xf32>
    %31 = vector.broadcast %30 : vector<1x16x1xf32> to vector<1x16x16xf32>
    %32 = arith.mulf %27, %31 : vector<1x16x16xf32>
    %33 = vector.extract_strided_slice %17 {offsets = [0, 0, 0], sizes = [1, 16, 8], strides = [1, 1, 1]} : vector<1x16x32xf32> to vector<1x16x8xf32>
    "tpu.trace_start"() <{level = 10 : i32, message = "bqk,bkd->bqd"}> : () -> ()
    %cst_13 = arith.constant dense<0.000000e+00> : vector<1x16x8xf32>
    %34 = tpu.matmul %32, %33, %cst_13 {dimension_numbers = #tpu.dot_dimension_numbers<[2], [1], [1], [2], [0, 0, 0, 1, 1, 2], [0], [0]>} : vector<1x16x16xf32>, vector<1x16x8xf32>, vector<1x16x8xf32> -> vector<1x16x8xf32>
    "tpu.trace_stop"() : () -> ()
    %35 = vector.extract_strided_slice %18 {offsets = [0, 0], sizes = [8, 32], strides = [1, 1]} : vector<32x32xf32> to vector<8x32xf32>
    %36 = vector.shape_cast %34 : vector<1x16x8xf32> to vector<16x8xf32>
    %cst_14 = arith.constant dense<0.000000e+00> : vector<16x32xf32>
    %37 = tpu.matmul %36, %35, %cst_14 {dimension_numbers = #tpu.dot_dimension_numbers<[1], [0], [0], [1], [0, 0, 1, 1], [], []>} : vector<16x8xf32>, vector<8x32xf32>, vector<16x32xf32> -> vector<16x32xf32>
    %38 = vector.shape_cast %37 : vector<16x32xf32> to vector<1x16x32xf32>
    %39 = vector.extract_strided_slice %15 {offsets = [0, 0, 8], sizes = [1, 16, 8], strides = [1, 1, 1]} : vector<1x16x32xf32> to vector<1x16x8xf32>
    %40 = vector.extract_strided_slice %16 {offsets = [0, 0, 8], sizes = [1, 16, 8], strides = [1, 1, 1]} : vector<1x16x32xf32> to vector<1x16x8xf32>
    "tpu.trace_start"() <{level = 10 : i32, message = "bqd,bkd->bqk"}> : () -> ()
    %cst_15 = arith.constant dense<0.000000e+00> : vector<1x16x16xf32>
    %41 = tpu.matmul %39, %40, %cst_15 {dimension_numbers = #tpu.dot_dimension_numbers<[2], [2], [1], [1], [0, 0, 0, 1, 1, 1], [0], [0]>} : vector<1x16x8xf32>, vector<1x16x8xf32>, vector<1x16x16xf32> -> vector<1x16x16xf32>
    "tpu.trace_stop"() : () -> ()
    %cst_16 = arith.constant dense<0xFF800000> : vector<1x16xf32>
    %42 = vector.multi_reduction <maximumf>, %41, %cst_16 [2] : vector<1x16x16xf32> to vector<1x16xf32>
    %43 = vector.shape_cast %42 : vector<1x16xf32> to vector<1x16x1xf32>
    %44 = vector.broadcast %43 : vector<1x16x1xf32> to vector<1x16x16xf32>
    %45 = arith.subf %41, %44 : vector<1x16x16xf32>
    %46 = math.exp %45 : vector<1x16x16xf32>
    %cst_17 = arith.constant dense<0.000000e+00> : vector<1x16xf32>
    %47 = vector.multi_reduction <add>, %46, %cst_17 [2] : vector<1x16x16xf32> to vector<1x16xf32>
    %48 = vector.shape_cast %47 : vector<1x16xf32> to vector<1x16x1xf32>
    %49 = tpu.reciprocal %48 {approx = true} : vector<1x16x1xf32> -> vector<1x16x1xf32>
    %50 = vector.broadcast %49 : vector<1x16x1xf32> to vector<1x16x16xf32>
    %51 = arith.mulf %46, %50 : vector<1x16x16xf32>
    %52 = vector.extract_strided_slice %17 {offsets = [0, 0, 8], sizes = [1, 16, 8], strides = [1, 1, 1]} : vector<1x16x32xf32> to vector<1x16x8xf32>
    "tpu.trace_start"() <{level = 10 : i32, message = "bqk,bkd->bqd"}> : () -> ()
    %cst_18 = arith.constant dense<0.000000e+00> : vector<1x16x8xf32>
    %53 = tpu.matmul %51, %52, %cst_18 {dimension_numbers = #tpu.dot_dimension_numbers<[2], [1], [1], [2], [0, 0, 0, 1, 1, 2], [0], [0]>} : vector<1x16x16xf32>, vector<1x16x8xf32>, vector<1x16x8xf32> -> vector<1x16x8xf32>
    "tpu.trace_stop"() : () -> ()
    %54 = vector.extract_strided_slice %18 {offsets = [8, 0], sizes = [8, 32], strides = [1, 1]} : vector<32x32xf32> to vector<8x32xf32>
    %55 = vector.shape_cast %53 : vector<1x16x8xf32> to vector<16x8xf32>
    %cst_19 = arith.constant dense<0.000000e+00> : vector<16x32xf32>
    %56 = tpu.matmul %55, %54, %cst_19 {dimension_numbers = #tpu.dot_dimension_numbers<[1], [0], [0], [1], [0, 0, 1, 1], [], []>} : vector<16x8xf32>, vector<8x32xf32>, vector<16x32xf32> -> vector<16x32xf32>
    %57 = vector.shape_cast %56 : vector<16x32xf32> to vector<1x16x32xf32>
    %58 = arith.addf %38, %57 : vector<1x16x32xf32>
    %59 = vector.extract_strided_slice %15 {offsets = [0, 0, 16], sizes = [1, 16, 8], strides = [1, 1, 1]} : vector<1x16x32xf32> to vector<1x16x8xf32>
    %60 = vector.extract_strided_slice %16 {offsets = [0, 0, 16], sizes = [1, 16, 8], strides = [1, 1, 1]} : vector<1x16x32xf32> to vector<1x16x8xf32>
    "tpu.trace_start"() <{level = 10 : i32, message = "bqd,bkd->bqk"}> : () -> ()
    %cst_20 = arith.constant dense<0.000000e+00> : vector<1x16x16xf32>
    %61 = tpu.matmul %59, %60, %cst_20 {dimension_numbers = #tpu.dot_dimension_numbers<[2], [2], [1], [1], [0, 0, 0, 1, 1, 1], [0], [0]>} : vector<1x16x8xf32>, vector<1x16x8xf32>, vector<1x16x16xf32> -> vector<1x16x16xf32>
    "tpu.trace_stop"() : () -> ()
    %cst_21 = arith.constant dense<0xFF800000> : vector<1x16xf32>
    %62 = vector.multi_reduction <maximumf>, %61, %cst_21 [2] : vector<1x16x16xf32> to vector<1x16xf32>
    %63 = vector.shape_cast %62 : vector<1x16xf32> to vector<1x16x1xf32>
    %64 = vector.broadcast %63 : vector<1x16x1xf32> to vector<1x16x16xf32>
    %65 = arith.subf %61, %64 : vector<1x16x16xf32>
    %66 = math.exp %65 : vector<1x16x16xf32>
    %cst_22 = arith.constant dense<0.000000e+00> : vector<1x16xf32>
    %67 = vector.multi_reduction <add>, %66, %cst_22 [2] : vector<1x16x16xf32> to vector<1x16xf32>
    %68 = vector.shape_cast %67 : vector<1x16xf32> to vector<1x16x1xf32>
    %69 = tpu.reciprocal %68 {approx = true} : vector<1x16x1xf32> -> vector<1x16x1xf32>
    %70 = vector.broadcast %69 : vector<1x16x1xf32> to vector<1x16x16xf32>
    %71 = arith.mulf %66, %70 : vector<1x16x16xf32>
    %72 = vector.extract_strided_slice %17 {offsets = [0, 0, 16], sizes = [1, 16, 8], strides = [1, 1, 1]} : vector<1x16x32xf32> to vector<1x16x8xf32>
    "tpu.trace_start"() <{level = 10 : i32, message = "bqk,bkd->bqd"}> : () -> ()
    %cst_23 = arith.constant dense<0.000000e+00> : vector<1x16x8xf32>
    %73 = tpu.matmul %71, %72, %cst_23 {dimension_numbers = #tpu.dot_dimension_numbers<[2], [1], [1], [2], [0, 0, 0, 1, 1, 2], [0], [0]>} : vector<1x16x16xf32>, vector<1x16x8xf32>, vector<1x16x8xf32> -> vector<1x16x8xf32>
    "tpu.trace_stop"() : () -> ()
    %74 = vector.extract_strided_slice %18 {offsets = [16, 0], sizes = [8, 32], strides = [1, 1]} : vector<32x32xf32> to vector<8x32xf32>
    %75 = vector.shape_cast %73 : vector<1x16x8xf32> to vector<16x8xf32>
    %cst_24 = arith.constant dense<0.000000e+00> : vector<16x32xf32>
    %76 = tpu.matmul %75, %74, %cst_24 {dimension_numbers = #tpu.dot_dimension_numbers<[1], [0], [0], [1], [0, 0, 1, 1], [], []>} : vector<16x8xf32>, vector<8x32xf32>, vector<16x32xf32> -> vector<16x32xf32>
    %77 = vector.shape_cast %76 : vector<16x32xf32> to vector<1x16x32xf32>
    %78 = arith.addf %58, %77 : vector<1x16x32xf32>
    %79 = vector.extract_strided_slice %15 {offsets = [0, 0, 24], sizes = [1, 16, 8], strides = [1, 1, 1]} : vector<1x16x32xf32> to vector<1x16x8xf32>
    %80 = vector.extract_strided_slice %16 {offsets = [0, 0, 24], sizes = [1, 16, 8], strides = [1, 1, 1]} : vector<1x16x32xf32> to vector<1x16x8xf32>
    "tpu.trace_start"() <{level = 10 : i32, message = "bqd,bkd->bqk"}> : () -> ()
    %cst_25 = arith.constant dense<0.000000e+00> : vector<1x16x16xf32>
    %81 = tpu.matmul %79, %80, %cst_25 {dimension_numbers = #tpu.dot_dimension_numbers<[2], [2], [1], [1], [0, 0, 0, 1, 1, 1], [0], [0]>} : vector<1x16x8xf32>, vector<1x16x8xf32>, vector<1x16x16xf32> -> vector<1x16x16xf32>
    "tpu.trace_stop"() : () -> ()
    %cst_26 = arith.constant dense<0xFF800000> : vector<1x16xf32>
    %82 = vector.multi_reduction <maximumf>, %81, %cst_26 [2] : vector<1x16x16xf32> to vector<1x16xf32>
    %83 = vector.shape_cast %82 : vector<1x16xf32> to vector<1x16x1xf32>
    %84 = vector.broadcast %83 : vector<1x16x1xf32> to vector<1x16x16xf32>
    %85 = arith.subf %81, %84 : vector<1x16x16xf32>
    %86 = math.exp %85 : vector<1x16x16xf32>
    %cst_27 = arith.constant dense<0.000000e+00> : vector<1x16xf32>
    %87 = vector.multi_reduction <add>, %86, %cst_27 [2] : vector<1x16x16xf32> to vector<1x16xf32>
    %88 = vector.shape_cast %87 : vector<1x16xf32> to vector<1x16x1xf32>
    %89 = tpu.reciprocal %88 {approx = true} : vector<1x16x1xf32> -> vector<1x16x1xf32>
    %90 = vector.broadcast %89 : vector<1x16x1xf32> to vector<1x16x16xf32>
    %91 = arith.mulf %86, %90 : vector<1x16x16xf32>
    %92 = vector.extract_strided_slice %17 {offsets = [0, 0, 24], sizes = [1, 16, 8], strides = [1, 1, 1]} : vector<1x16x32xf32> to vector<1x16x8xf32>
    "tpu.trace_start"() <{level = 10 : i32, message = "bqk,bkd->bqd"}> : () -> ()
    %cst_28 = arith.constant dense<0.000000e+00> : vector<1x16x8xf32>
    %93 = tpu.matmul %91, %92, %cst_28 {dimension_numbers = #tpu.dot_dimension_numbers<[2], [1], [1], [2], [0, 0, 0, 1, 1, 2], [0], [0]>} : vector<1x16x16xf32>, vector<1x16x8xf32>, vector<1x16x8xf32> -> vector<1x16x8xf32>
    "tpu.trace_stop"() : () -> ()
    %94 = vector.extract_strided_slice %18 {offsets = [24, 0], sizes = [8, 32], strides = [1, 1]} : vector<32x32xf32> to vector<8x32xf32>
    %95 = vector.shape_cast %93 : vector<1x16x8xf32> to vector<16x8xf32>
    %cst_29 = arith.constant dense<0.000000e+00> : vector<16x32xf32>
    %96 = tpu.matmul %95, %94, %cst_29 {dimension_numbers = #tpu.dot_dimension_numbers<[1], [0], [0], [1], [0, 0, 1, 1], [], []>} : vector<16x8xf32>, vector<8x32xf32>, vector<16x32xf32> -> vector<16x32xf32>
    %97 = vector.shape_cast %96 : vector<16x32xf32> to vector<1x16x32xf32>
    %98 = arith.addf %78, %97 : vector<1x16x32xf32>
    %99 = vector.shape_cast %19 : vector<1x32xf32> to vector<1x1x32xf32>
    %100 = vector.broadcast %99 : vector<1x1x32xf32> to vector<1x16x32xf32>
    %101 = arith.addf %98, %100 : vector<1x16x32xf32>
    %102 = arith.addf %7, %101 : vector<1x16x32xf32>
    %c288 = arith.constant 288 : index
    %c0_30 = arith.constant 0 : index
    %103 = vector.load %arg2[%c288, %c0_30] : memref<920x128xf32, #tpu.memory_space<vmem>>, vector<1x32xf32>
    %c296 = arith.constant 296 : index
    %c0_31 = arith.constant 0 : index
    %104 = vector.load %arg2[%c296, %c0_31] : memref<920x128xf32, #tpu.memory_space<vmem>>, vector<1x32xf32>
    %cst_32 = arith.constant dense<0.000000e+00> : vector<1x16xf32>
    %105 = vector.multi_reduction <add>, %102, %cst_32 [2] : vector<1x16x32xf32> to vector<1x16xf32>
    %106 = vector.shape_cast %105 : vector<1x16xf32> to vector<1x16x1xf32>
    %cst_33 = arith.constant 3.200000e+01 : f32
    %107 = vector.broadcast %cst_33 : f32 to vector<1x16x1xf32>
    %108 = arith.divf %106, %107 : vector<1x16x1xf32>
    %109 = vector.broadcast %108 : vector<1x16x1xf32> to vector<1x16x32xf32>
    %110 = arith.subf %102, %109 : vector<1x16x32xf32>
    %111 = arith.mulf %110, %110 : vector<1x16x32xf32>
    %cst_34 = arith.constant dense<0.000000e+00> : vector<1x16xf32>
    %112 = vector.multi_reduction <add>, %111, %cst_34 [2] : vector<1x16x32xf32> to vector<1x16xf32>
    %113 = vector.shape_cast %112 : vector<1x16xf32> to vector<1x16x1xf32>
    %cst_35 = arith.constant 3.200000e+01 : f32
    %114 = vector.broadcast %cst_35 : f32 to vector<1x16x1xf32>
    %115 = arith.divf %113, %114 : vector<1x16x1xf32>
    %116 = vector.broadcast %108 : vector<1x16x1xf32> to vector<1x16x32xf32>
    %117 = arith.subf %102, %116 : vector<1x16x32xf32>
    %cst_36 = arith.constant 9.99999974E-6 : f32
    %118 = vector.broadcast %cst_36 : f32 to vector<1x16x1xf32>
    %119 = arith.addf %115, %118 : vector<1x16x1xf32>
    %120 = math.rsqrt %119 : vector<1x16x1xf32>
    %121 = vector.broadcast %120 : vector<1x16x1xf32> to vector<1x16x32xf32>
    %122 = arith.mulf %117, %121 : vector<1x16x32xf32>
    %123 = vector.shape_cast %103 : vector<1x32xf32> to vector<1x1x32xf32>
    %124 = vector.broadcast %123 : vector<1x1x32xf32> to vector<1x16x32xf32>
    %125 = arith.mulf %122, %124 : vector<1x16x32xf32>
    %126 = vector.shape_cast %104 : vector<1x32xf32> to vector<1x1x32xf32>
    %127 = vector.broadcast %126 : vector<1x1x32xf32> to vector<1x16x32xf32>
    %128 = arith.addf %125, %127 : vector<1x16x32xf32>
    %c304 = arith.constant 304 : index
    %c0_37 = arith.constant 0 : index
    %129 = vector.load %arg2[%c304, %c0_37] : memref<920x128xf32, #tpu.memory_space<vmem>>, vector<32x64xf32>
    %130 = vector.shape_cast %128 : vector<1x16x32xf32> to vector<16x32xf32>
    %cst_38 = arith.constant dense<0.000000e+00> : vector<16x64xf32>
    %131 = tpu.matmul %130, %129, %cst_38 {dimension_numbers = #tpu.dot_dimension_numbers<[1], [0], [0], [1], [0, 0, 1, 1], [], []>} : vector<16x32xf32>, vector<32x64xf32>, vector<16x64xf32> -> vector<16x64xf32>
    %132 = vector.shape_cast %131 : vector<16x64xf32> to vector<1x16x64xf32>
    %c336 = arith.constant 336 : index
    %c0_39 = arith.constant 0 : index
    %133 = vector.load %arg2[%c336, %c0_39] : memref<920x128xf32, #tpu.memory_space<vmem>>, vector<1x64xf32>
    %134 = vector.shape_cast %133 : vector<1x64xf32> to vector<1x1x64xf32>
    %135 = vector.broadcast %134 : vector<1x1x64xf32> to vector<1x16x64xf32>
    %136 = arith.addf %132, %135 : vector<1x16x64xf32>
    %cst_40 = arith.constant 0.000000e+00 : f32
    %137 = vector.broadcast %cst_40 : f32 to vector<1x16x64xf32>
    %138 = arith.maximumf %136, %137 : vector<1x16x64xf32>
    %c344 = arith.constant 344 : index
    %c0_41 = arith.constant 0 : index
    %139 = vector.load %arg2[%c344, %c0_41] : memref<920x128xf32, #tpu.memory_space<vmem>>, vector<64x32xf32>
    %140 = vector.shape_cast %138 : vector<1x16x64xf32> to vector<16x64xf32>
    %cst_42 = arith.constant dense<0.000000e+00> : vector<16x32xf32>
    %141 = tpu.matmul %140, %139, %cst_42 {dimension_numbers = #tpu.dot_dimension_numbers<[1], [0], [0], [1], [0, 0, 1, 1], [], []>} : vector<16x64xf32>, vector<64x32xf32>, vector<16x32xf32> -> vector<16x32xf32>
    %142 = vector.shape_cast %141 : vector<16x32xf32> to vector<1x16x32xf32>
    %c408 = arith.constant 408 : index
    %c0_43 = arith.constant 0 : index
    %143 = vector.load %arg2[%c408, %c0_43] : memref<920x128xf32, #tpu.memory_space<vmem>>, vector<1x32xf32>
    %144 = vector.shape_cast %143 : vector<1x32xf32> to vector<1x1x32xf32>
    %145 = vector.broadcast %144 : vector<1x1x32xf32> to vector<1x16x32xf32>
    %146 = arith.addf %142, %145 : vector<1x16x32xf32>
    %147 = arith.addf %128, %146 : vector<1x16x32xf32>
    %c416 = arith.constant 416 : index
    %c0_44 = arith.constant 0 : index
    %148 = vector.load %arg2[%c416, %c0_44] : memref<920x128xf32, #tpu.memory_space<vmem>>, vector<1x32xf32>
    %c424 = arith.constant 424 : index
    %c0_45 = arith.constant 0 : index
    %149 = vector.load %arg2[%c424, %c0_45] : memref<920x128xf32, #tpu.memory_space<vmem>>, vector<1x32xf32>
    %cst_46 = arith.constant dense<0.000000e+00> : vector<1x16xf32>
    %150 = vector.multi_reduction <add>, %147, %cst_46 [2] : vector<1x16x32xf32> to vector<1x16xf32>
    %151 = vector.shape_cast %150 : vector<1x16xf32> to vector<1x16x1xf32>
    %cst_47 = arith.constant 3.200000e+01 : f32
    %152 = vector.broadcast %cst_47 : f32 to vector<1x16x1xf32>
    %153 = arith.divf %151, %152 : vector<1x16x1xf32>
    %154 = vector.broadcast %153 : vector<1x16x1xf32> to vector<1x16x32xf32>
    %155 = arith.subf %147, %154 : vector<1x16x32xf32>
    %156 = arith.mulf %155, %155 : vector<1x16x32xf32>
    %cst_48 = arith.constant dense<0.000000e+00> : vector<1x16xf32>
    %157 = vector.multi_reduction <add>, %156, %cst_48 [2] : vector<1x16x32xf32> to vector<1x16xf32>
    %158 = vector.shape_cast %157 : vector<1x16xf32> to vector<1x16x1xf32>
    %cst_49 = arith.constant 3.200000e+01 : f32
    %159 = vector.broadcast %cst_49 : f32 to vector<1x16x1xf32>
    %160 = arith.divf %158, %159 : vector<1x16x1xf32>
    %161 = vector.broadcast %153 : vector<1x16x1xf32> to vector<1x16x32xf32>
    %162 = arith.subf %147, %161 : vector<1x16x32xf32>
    %cst_50 = arith.constant 9.99999974E-6 : f32
    %163 = vector.broadcast %cst_50 : f32 to vector<1x16x1xf32>
    %164 = arith.addf %160, %163 : vector<1x16x1xf32>
    %165 = math.rsqrt %164 : vector<1x16x1xf32>
    %166 = vector.broadcast %165 : vector<1x16x1xf32> to vector<1x16x32xf32>
    %167 = arith.mulf %162, %166 : vector<1x16x32xf32>
    %168 = vector.shape_cast %148 : vector<1x32xf32> to vector<1x1x32xf32>
    %169 = vector.broadcast %168 : vector<1x1x32xf32> to vector<1x16x32xf32>
    %170 = arith.mulf %167, %169 : vector<1x16x32xf32>
    %171 = vector.shape_cast %149 : vector<1x32xf32> to vector<1x1x32xf32>
    %172 = vector.broadcast %171 : vector<1x1x32xf32> to vector<1x16x32xf32>
    %173 = arith.addf %170, %172 : vector<1x16x32xf32>
    %cst_51 = arith.constant 0.000000e+00 : f32
    %174 = vector.broadcast %cst_51 : f32 to vector<1x8x32xf32>
    %c432 = arith.constant 432 : index
    %c0_52 = arith.constant 0 : index
    %175 = vector.load %arg2[%c432, %c0_52] : memref<920x128xf32, #tpu.memory_space<vmem>>, vector<32x96xf32>
    %176 = vector.shape_cast %174 : vector<1x8x32xf32> to vector<8x32xf32>
    %cst_53 = arith.constant dense<0.000000e+00> : vector<8x96xf32>
    %177 = tpu.matmul %176, %175, %cst_53 {dimension_numbers = #tpu.dot_dimension_numbers<[1], [0], [0], [1], [0, 0, 1, 1], [], []>} : vector<8x32xf32>, vector<32x96xf32>, vector<8x96xf32> -> vector<8x96xf32>
    %178 = vector.shape_cast %177 : vector<8x96xf32> to vector<1x8x96xf32>
    %c464 = arith.constant 464 : index
    %c0_54 = arith.constant 0 : index
    %179 = vector.load %arg2[%c464, %c0_54] : memref<920x128xf32, #tpu.memory_space<vmem>>, vector<8x96xf32>
    %180 = vector.shape_cast %179 : vector<8x96xf32> to vector<1x8x96xf32>
    %181 = arith.addf %178, %180 : vector<1x8x96xf32>
    %182 = vector.extract_strided_slice %181 {offsets = [0, 0, 0], sizes = [1, 8, 32], strides = [1, 1, 1]} : vector<1x8x96xf32> to vector<1x8x32xf32>
    %183 = vector.extract_strided_slice %181 {offsets = [0, 0, 32], sizes = [1, 8, 32], strides = [1, 1, 1]} : vector<1x8x96xf32> to vector<1x8x32xf32>
    %184 = vector.extract_strided_slice %181 {offsets = [0, 0, 64], sizes = [1, 8, 32], strides = [1, 1, 1]} : vector<1x8x96xf32> to vector<1x8x32xf32>
    %c472 = arith.constant 472 : index
    %c0_55 = arith.constant 0 : index
    %185 = vector.load %arg2[%c472, %c0_55] : memref<920x128xf32, #tpu.memory_space<vmem>>, vector<32x32xf32>
    %c504 = arith.constant 504 : index
    %c0_56 = arith.constant 0 : index
    %186 = vector.load %arg2[%c504, %c0_56] : memref<920x128xf32, #tpu.memory_space<vmem>>, vector<1x32xf32>
    %187 = vector.extract_strided_slice %182 {offsets = [0, 0, 0], sizes = [1, 8, 8], strides = [1, 1, 1]} : vector<1x8x32xf32> to vector<1x8x8xf32>
    %188 = vector.extract_strided_slice %183 {offsets = [0, 0, 0], sizes = [1, 8, 8], strides = [1, 1, 1]} : vector<1x8x32xf32> to vector<1x8x8xf32>
    "tpu.trace_start"() <{level = 10 : i32, message = "bqd,bkd->bqk"}> : () -> ()
    %cst_57 = arith.constant dense<0.000000e+00> : vector<1x8x8xf32>
    %189 = tpu.matmul %187, %188, %cst_57 {dimension_numbers = #tpu.dot_dimension_numbers<[2], [2], [1], [1], [0, 0, 0, 1, 1, 1], [0], [0]>} : vector<1x8x8xf32>, vector<1x8x8xf32>, vector<1x8x8xf32> -> vector<1x8x8xf32>
    "tpu.trace_stop"() : () -> ()
    %cst_58 = arith.constant dense<0xFF800000> : vector<1x8xf32>
    %190 = vector.multi_reduction <maximumf>, %189, %cst_58 [2] : vector<1x8x8xf32> to vector<1x8xf32>
    %191 = vector.shape_cast %190 : vector<1x8xf32> to vector<1x8x1xf32>
    %192 = vector.broadcast %191 : vector<1x8x1xf32> to vector<1x8x8xf32>
    %193 = arith.subf %189, %192 : vector<1x8x8xf32>
    %194 = math.exp %193 : vector<1x8x8xf32>
    %cst_59 = arith.constant dense<0.000000e+00> : vector<1x8xf32>
    %195 = vector.multi_reduction <add>, %194, %cst_59 [2] : vector<1x8x8xf32> to vector<1x8xf32>
    %196 = vector.shape_cast %195 : vector<1x8xf32> to vector<1x8x1xf32>
    %197 = tpu.reciprocal %196 {approx = true} : vector<1x8x1xf32> -> vector<1x8x1xf32>
    %198 = vector.broadcast %197 : vector<1x8x1xf32> to vector<1x8x8xf32>
    %199 = arith.mulf %194, %198 : vector<1x8x8xf32>
    %200 = vector.extract_strided_slice %184 {offsets = [0, 0, 0], sizes = [1, 8, 8], strides = [1, 1, 1]} : vector<1x8x32xf32> to vector<1x8x8xf32>
    "tpu.trace_start"() <{level = 10 : i32, message = "bqk,bkd->bqd"}> : () -> ()
    %cst_60 = arith.constant dense<0.000000e+00> : vector<1x8x8xf32>
    %201 = tpu.matmul %199, %200, %cst_60 {dimension_numbers = #tpu.dot_dimension_numbers<[2], [1], [1], [2], [0, 0, 0, 1, 1, 2], [0], [0]>} : vector<1x8x8xf32>, vector<1x8x8xf32>, vector<1x8x8xf32> -> vector<1x8x8xf32>
    "tpu.trace_stop"() : () -> ()
    %202 = vector.extract_strided_slice %185 {offsets = [0, 0], sizes = [8, 32], strides = [1, 1]} : vector<32x32xf32> to vector<8x32xf32>
    %203 = vector.shape_cast %201 : vector<1x8x8xf32> to vector<8x8xf32>
    %cst_61 = arith.constant dense<0.000000e+00> : vector<8x32xf32>
    %204 = tpu.matmul %203, %202, %cst_61 {dimension_numbers = #tpu.dot_dimension_numbers<[1], [0], [0], [1], [0, 0, 1, 1], [], []>} : vector<8x8xf32>, vector<8x32xf32>, vector<8x32xf32> -> vector<8x32xf32>
    %205 = vector.shape_cast %204 : vector<8x32xf32> to vector<1x8x32xf32>
    %206 = vector.extract_strided_slice %182 {offsets = [0, 0, 8], sizes = [1, 8, 8], strides = [1, 1, 1]} : vector<1x8x32xf32> to vector<1x8x8xf32>
    %207 = vector.extract_strided_slice %183 {offsets = [0, 0, 8], sizes = [1, 8, 8], strides = [1, 1, 1]} : vector<1x8x32xf32> to vector<1x8x8xf32>
    "tpu.trace_start"() <{level = 10 : i32, message = "bqd,bkd->bqk"}> : () -> ()
    %cst_62 = arith.constant dense<0.000000e+00> : vector<1x8x8xf32>
    %208 = tpu.matmul %206, %207, %cst_62 {dimension_numbers = #tpu.dot_dimension_numbers<[2], [2], [1], [1], [0, 0, 0, 1, 1, 1], [0], [0]>} : vector<1x8x8xf32>, vector<1x8x8xf32>, vector<1x8x8xf32> -> vector<1x8x8xf32>
    "tpu.trace_stop"() : () -> ()
    %cst_63 = arith.constant dense<0xFF800000> : vector<1x8xf32>
    %209 = vector.multi_reduction <maximumf>, %208, %cst_63 [2] : vector<1x8x8xf32> to vector<1x8xf32>
    %210 = vector.shape_cast %209 : vector<1x8xf32> to vector<1x8x1xf32>
    %211 = vector.broadcast %210 : vector<1x8x1xf32> to vector<1x8x8xf32>
    %212 = arith.subf %208, %211 : vector<1x8x8xf32>
    %213 = math.exp %212 : vector<1x8x8xf32>
    %cst_64 = arith.constant dense<0.000000e+00> : vector<1x8xf32>
    %214 = vector.multi_reduction <add>, %213, %cst_64 [2] : vector<1x8x8xf32> to vector<1x8xf32>
    %215 = vector.shape_cast %214 : vector<1x8xf32> to vector<1x8x1xf32>
    %216 = tpu.reciprocal %215 {approx = true} : vector<1x8x1xf32> -> vector<1x8x1xf32>
    %217 = vector.broadcast %216 : vector<1x8x1xf32> to vector<1x8x8xf32>
    %218 = arith.mulf %213, %217 : vector<1x8x8xf32>
    %219 = vector.extract_strided_slice %184 {offsets = [0, 0, 8], sizes = [1, 8, 8], strides = [1, 1, 1]} : vector<1x8x32xf32> to vector<1x8x8xf32>
    "tpu.trace_start"() <{level = 10 : i32, message = "bqk,bkd->bqd"}> : () -> ()
    %cst_65 = arith.constant dense<0.000000e+00> : vector<1x8x8xf32>
    %220 = tpu.matmul %218, %219, %cst_65 {dimension_numbers = #tpu.dot_dimension_numbers<[2], [1], [1], [2], [0, 0, 0, 1, 1, 2], [0], [0]>} : vector<1x8x8xf32>, vector<1x8x8xf32>, vector<1x8x8xf32> -> vector<1x8x8xf32>
    "tpu.trace_stop"() : () -> ()
    %221 = vector.extract_strided_slice %185 {offsets = [8, 0], sizes = [8, 32], strides = [1, 1]} : vector<32x32xf32> to vector<8x32xf32>
    %222 = vector.shape_cast %220 : vector<1x8x8xf32> to vector<8x8xf32>
    %cst_66 = arith.constant dense<0.000000e+00> : vector<8x32xf32>
    %223 = tpu.matmul %222, %221, %cst_66 {dimension_numbers = #tpu.dot_dimension_numbers<[1], [0], [0], [1], [0, 0, 1, 1], [], []>} : vector<8x8xf32>, vector<8x32xf32>, vector<8x32xf32> -> vector<8x32xf32>
    %224 = vector.shape_cast %223 : vector<8x32xf32> to vector<1x8x32xf32>
    %225 = arith.addf %205, %224 : vector<1x8x32xf32>
    %226 = vector.extract_strided_slice %182 {offsets = [0, 0, 16], sizes = [1, 8, 8], strides = [1, 1, 1]} : vector<1x8x32xf32> to vector<1x8x8xf32>
    %227 = vector.extract_strided_slice %183 {offsets = [0, 0, 16], sizes = [1, 8, 8], strides = [1, 1, 1]} : vector<1x8x32xf32> to vector<1x8x8xf32>
    "tpu.trace_start"() <{level = 10 : i32, message = "bqd,bkd->bqk"}> : () -> ()
    %cst_67 = arith.constant dense<0.000000e+00> : vector<1x8x8xf32>
    %228 = tpu.matmul %226, %227, %cst_67 {dimension_numbers = #tpu.dot_dimension_numbers<[2], [2], [1], [1], [0, 0, 0, 1, 1, 1], [0], [0]>} : vector<1x8x8xf32>, vector<1x8x8xf32>, vector<1x8x8xf32> -> vector<1x8x8xf32>
    "tpu.trace_stop"() : () -> ()
    %cst_68 = arith.constant dense<0xFF800000> : vector<1x8xf32>
    %229 = vector.multi_reduction <maximumf>, %228, %cst_68 [2] : vector<1x8x8xf32> to vector<1x8xf32>
    %230 = vector.shape_cast %229 : vector<1x8xf32> to vector<1x8x1xf32>
    %231 = vector.broadcast %230 : vector<1x8x1xf32> to vector<1x8x8xf32>
    %232 = arith.subf %228, %231 : vector<1x8x8xf32>
    %233 = math.exp %232 : vector<1x8x8xf32>
    %cst_69 = arith.constant dense<0.000000e+00> : vector<1x8xf32>
    %234 = vector.multi_reduction <add>, %233, %cst_69 [2] : vector<1x8x8xf32> to vector<1x8xf32>
    %235 = vector.shape_cast %234 : vector<1x8xf32> to vector<1x8x1xf32>
    %236 = tpu.reciprocal %235 {approx = true} : vector<1x8x1xf32> -> vector<1x8x1xf32>
    %237 = vector.broadcast %236 : vector<1x8x1xf32> to vector<1x8x8xf32>
    %238 = arith.mulf %233, %237 : vector<1x8x8xf32>
    %239 = vector.extract_strided_slice %184 {offsets = [0, 0, 16], sizes = [1, 8, 8], strides = [1, 1, 1]} : vector<1x8x32xf32> to vector<1x8x8xf32>
    "tpu.trace_start"() <{level = 10 : i32, message = "bqk,bkd->bqd"}> : () -> ()
    %cst_70 = arith.constant dense<0.000000e+00> : vector<1x8x8xf32>
    %240 = tpu.matmul %238, %239, %cst_70 {dimension_numbers = #tpu.dot_dimension_numbers<[2], [1], [1], [2], [0, 0, 0, 1, 1, 2], [0], [0]>} : vector<1x8x8xf32>, vector<1x8x8xf32>, vector<1x8x8xf32> -> vector<1x8x8xf32>
    "tpu.trace_stop"() : () -> ()
    %241 = vector.extract_strided_slice %185 {offsets = [16, 0], sizes = [8, 32], strides = [1, 1]} : vector<32x32xf32> to vector<8x32xf32>
    %242 = vector.shape_cast %240 : vector<1x8x8xf32> to vector<8x8xf32>
    %cst_71 = arith.constant dense<0.000000e+00> : vector<8x32xf32>
    %243 = tpu.matmul %242, %241, %cst_71 {dimension_numbers = #tpu.dot_dimension_numbers<[1], [0], [0], [1], [0, 0, 1, 1], [], []>} : vector<8x8xf32>, vector<8x32xf32>, vector<8x32xf32> -> vector<8x32xf32>
    %244 = vector.shape_cast %243 : vector<8x32xf32> to vector<1x8x32xf32>
    %245 = arith.addf %225, %244 : vector<1x8x32xf32>
    %246 = vector.extract_strided_slice %182 {offsets = [0, 0, 24], sizes = [1, 8, 8], strides = [1, 1, 1]} : vector<1x8x32xf32> to vector<1x8x8xf32>
    %247 = vector.extract_strided_slice %183 {offsets = [0, 0, 24], sizes = [1, 8, 8], strides = [1, 1, 1]} : vector<1x8x32xf32> to vector<1x8x8xf32>
    "tpu.trace_start"() <{level = 10 : i32, message = "bqd,bkd->bqk"}> : () -> ()
    %cst_72 = arith.constant dense<0.000000e+00> : vector<1x8x8xf32>
    %248 = tpu.matmul %246, %247, %cst_72 {dimension_numbers = #tpu.dot_dimension_numbers<[2], [2], [1], [1], [0, 0, 0, 1, 1, 1], [0], [0]>} : vector<1x8x8xf32>, vector<1x8x8xf32>, vector<1x8x8xf32> -> vector<1x8x8xf32>
    "tpu.trace_stop"() : () -> ()
    %cst_73 = arith.constant dense<0xFF800000> : vector<1x8xf32>
    %249 = vector.multi_reduction <maximumf>, %248, %cst_73 [2] : vector<1x8x8xf32> to vector<1x8xf32>
    %250 = vector.shape_cast %249 : vector<1x8xf32> to vector<1x8x1xf32>
    %251 = vector.broadcast %250 : vector<1x8x1xf32> to vector<1x8x8xf32>
    %252 = arith.subf %248, %251 : vector<1x8x8xf32>
    %253 = math.exp %252 : vector<1x8x8xf32>
    %cst_74 = arith.constant dense<0.000000e+00> : vector<1x8xf32>
    %254 = vector.multi_reduction <add>, %253, %cst_74 [2] : vector<1x8x8xf32> to vector<1x8xf32>
    %255 = vector.shape_cast %254 : vector<1x8xf32> to vector<1x8x1xf32>
    %256 = tpu.reciprocal %255 {approx = true} : vector<1x8x1xf32> -> vector<1x8x1xf32>
    %257 = vector.broadcast %256 : vector<1x8x1xf32> to vector<1x8x8xf32>
    %258 = arith.mulf %253, %257 : vector<1x8x8xf32>
    %259 = vector.extract_strided_slice %184 {offsets = [0, 0, 24], sizes = [1, 8, 8], strides = [1, 1, 1]} : vector<1x8x32xf32> to vector<1x8x8xf32>
    "tpu.trace_start"() <{level = 10 : i32, message = "bqk,bkd->bqd"}> : () -> ()
    %cst_75 = arith.constant dense<0.000000e+00> : vector<1x8x8xf32>
    %260 = tpu.matmul %258, %259, %cst_75 {dimension_numbers = #tpu.dot_dimension_numbers<[2], [1], [1], [2], [0, 0, 0, 1, 1, 2], [0], [0]>} : vector<1x8x8xf32>, vector<1x8x8xf32>, vector<1x8x8xf32> -> vector<1x8x8xf32>
    "tpu.trace_stop"() : () -> ()
    %261 = vector.extract_strided_slice %185 {offsets = [24, 0], sizes = [8, 32], strides = [1, 1]} : vector<32x32xf32> to vector<8x32xf32>
    %262 = vector.shape_cast %260 : vector<1x8x8xf32> to vector<8x8xf32>
    %cst_76 = arith.constant dense<0.000000e+00> : vector<8x32xf32>
    %263 = tpu.matmul %262, %261, %cst_76 {dimension_numbers = #tpu.dot_dimension_numbers<[1], [0], [0], [1], [0, 0, 1, 1], [], []>} : vector<8x8xf32>, vector<8x32xf32>, vector<8x32xf32> -> vector<8x32xf32>
    %264 = vector.shape_cast %263 : vector<8x32xf32> to vector<1x8x32xf32>
    %265 = arith.addf %245, %264 : vector<1x8x32xf32>
    %266 = vector.shape_cast %186 : vector<1x32xf32> to vector<1x1x32xf32>
    %267 = vector.broadcast %266 : vector<1x1x32xf32> to vector<1x8x32xf32>
    %268 = arith.addf %265, %267 : vector<1x8x32xf32>
    %269 = arith.addf %174, %268 : vector<1x8x32xf32>
    %c512 = arith.constant 512 : index
    %c0_77 = arith.constant 0 : index
    %270 = vector.load %arg2[%c512, %c0_77] : memref<920x128xf32, #tpu.memory_space<vmem>>, vector<1x32xf32>
    %c520 = arith.constant 520 : index
    %c0_78 = arith.constant 0 : index
    %271 = vector.load %arg2[%c520, %c0_78] : memref<920x128xf32, #tpu.memory_space<vmem>>, vector<1x32xf32>
    %cst_79 = arith.constant dense<0.000000e+00> : vector<1x8xf32>
    %272 = vector.multi_reduction <add>, %269, %cst_79 [2] : vector<1x8x32xf32> to vector<1x8xf32>
    %273 = vector.shape_cast %272 : vector<1x8xf32> to vector<1x8x1xf32>
    %cst_80 = arith.constant 3.200000e+01 : f32
    %274 = vector.broadcast %cst_80 : f32 to vector<1x8x1xf32>
    %275 = arith.divf %273, %274 : vector<1x8x1xf32>
    %276 = vector.broadcast %275 : vector<1x8x1xf32> to vector<1x8x32xf32>
    %277 = arith.subf %269, %276 : vector<1x8x32xf32>
    %278 = arith.mulf %277, %277 : vector<1x8x32xf32>
    %cst_81 = arith.constant dense<0.000000e+00> : vector<1x8xf32>
    %279 = vector.multi_reduction <add>, %278, %cst_81 [2] : vector<1x8x32xf32> to vector<1x8xf32>
    %280 = vector.shape_cast %279 : vector<1x8xf32> to vector<1x8x1xf32>
    %cst_82 = arith.constant 3.200000e+01 : f32
    %281 = vector.broadcast %cst_82 : f32 to vector<1x8x1xf32>
    %282 = arith.divf %280, %281 : vector<1x8x1xf32>
    %283 = vector.broadcast %275 : vector<1x8x1xf32> to vector<1x8x32xf32>
    %284 = arith.subf %269, %283 : vector<1x8x32xf32>
    %cst_83 = arith.constant 9.99999974E-6 : f32
    %285 = vector.broadcast %cst_83 : f32 to vector<1x8x1xf32>
    %286 = arith.addf %282, %285 : vector<1x8x1xf32>
    %287 = math.rsqrt %286 : vector<1x8x1xf32>
    %288 = vector.broadcast %287 : vector<1x8x1xf32> to vector<1x8x32xf32>
    %289 = arith.mulf %284, %288 : vector<1x8x32xf32>
    %290 = vector.shape_cast %270 : vector<1x32xf32> to vector<1x1x32xf32>
    %291 = vector.broadcast %290 : vector<1x1x32xf32> to vector<1x8x32xf32>
    %292 = arith.mulf %289, %291 : vector<1x8x32xf32>
    %293 = vector.shape_cast %271 : vector<1x32xf32> to vector<1x1x32xf32>
    %294 = vector.broadcast %293 : vector<1x1x32xf32> to vector<1x8x32xf32>
    %295 = arith.addf %292, %294 : vector<1x8x32xf32>
    %c528 = arith.constant 528 : index
    %c0_84 = arith.constant 0 : index
    %296 = vector.load %arg2[%c528, %c0_84] : memref<920x128xf32, #tpu.memory_space<vmem>>, vector<32x32xf32>
    %297 = vector.shape_cast %295 : vector<1x8x32xf32> to vector<8x32xf32>
    %cst_85 = arith.constant dense<0.000000e+00> : vector<8x32xf32>
    %298 = tpu.matmul %297, %296, %cst_85 {dimension_numbers = #tpu.dot_dimension_numbers<[1], [0], [0], [1], [0, 0, 1, 1], [], []>} : vector<8x32xf32>, vector<32x32xf32>, vector<8x32xf32> -> vector<8x32xf32>
    %299 = vector.shape_cast %298 : vector<8x32xf32> to vector<1x8x32xf32>
    %c560 = arith.constant 560 : index
    %c0_86 = arith.constant 0 : index
    %300 = vector.load %arg2[%c560, %c0_86] : memref<920x128xf32, #tpu.memory_space<vmem>>, vector<8x32xf32>
    %301 = vector.shape_cast %300 : vector<8x32xf32> to vector<1x8x32xf32>
    %302 = arith.addf %299, %301 : vector<1x8x32xf32>
    %c568 = arith.constant 568 : index
    %c0_87 = arith.constant 0 : index
    %303 = vector.load %arg2[%c568, %c0_87] : memref<920x128xf32, #tpu.memory_space<vmem>>, vector<32x64xf32>
    %304 = vector.shape_cast %173 : vector<1x16x32xf32> to vector<16x32xf32>
    %cst_88 = arith.constant dense<0.000000e+00> : vector<16x64xf32>
    %305 = tpu.matmul %304, %303, %cst_88 {dimension_numbers = #tpu.dot_dimension_numbers<[1], [0], [0], [1], [0, 0, 1, 1], [], []>} : vector<16x32xf32>, vector<32x64xf32>, vector<16x64xf32> -> vector<16x64xf32>
    %306 = vector.shape_cast %305 : vector<16x64xf32> to vector<1x16x64xf32>
    %c600 = arith.constant 600 : index
    %c0_89 = arith.constant 0 : index
    %307 = vector.load %arg2[%c600, %c0_89] : memref<920x128xf32, #tpu.memory_space<vmem>>, vector<16x64xf32>
    %308 = vector.shape_cast %307 : vector<16x64xf32> to vector<1x16x64xf32>
    %309 = arith.addf %306, %308 : vector<1x16x64xf32>
    %310 = vector.extract_strided_slice %309 {offsets = [0, 0, 0], sizes = [1, 16, 32], strides = [1, 1, 1]} : vector<1x16x64xf32> to vector<1x16x32xf32>
    %311 = vector.extract_strided_slice %309 {offsets = [0, 0, 32], sizes = [1, 16, 32], strides = [1, 1, 1]} : vector<1x16x64xf32> to vector<1x16x32xf32>
    %c616 = arith.constant 616 : index
    %c0_90 = arith.constant 0 : index
    %312 = vector.load %arg2[%c616, %c0_90] : memref<920x128xf32, #tpu.memory_space<vmem>>, vector<32x32xf32>
    %c648 = arith.constant 648 : index
    %c0_91 = arith.constant 0 : index
    %313 = vector.load %arg2[%c648, %c0_91] : memref<920x128xf32, #tpu.memory_space<vmem>>, vector<1x32xf32>
    %314 = vector.extract_strided_slice %302 {offsets = [0, 0, 0], sizes = [1, 8, 8], strides = [1, 1, 1]} : vector<1x8x32xf32> to vector<1x8x8xf32>
    %315 = vector.extract_strided_slice %310 {offsets = [0, 0, 0], sizes = [1, 16, 8], strides = [1, 1, 1]} : vector<1x16x32xf32> to vector<1x16x8xf32>
    "tpu.trace_start"() <{level = 10 : i32, message = "bqd,bkd->bqk"}> : () -> ()
    %cst_92 = arith.constant dense<0.000000e+00> : vector<1x8x16xf32>
    %316 = tpu.matmul %314, %315, %cst_92 {dimension_numbers = #tpu.dot_dimension_numbers<[2], [2], [1], [1], [0, 0, 0, 1, 1, 1], [0], [0]>} : vector<1x8x8xf32>, vector<1x16x8xf32>, vector<1x8x16xf32> -> vector<1x8x16xf32>
    "tpu.trace_stop"() : () -> ()
    %cst_93 = arith.constant dense<0xFF800000> : vector<1x8xf32>
    %317 = vector.multi_reduction <maximumf>, %316, %cst_93 [2] : vector<1x8x16xf32> to vector<1x8xf32>
    %318 = vector.shape_cast %317 : vector<1x8xf32> to vector<1x8x1xf32>
    %319 = vector.broadcast %318 : vector<1x8x1xf32> to vector<1x8x16xf32>
    %320 = arith.subf %316, %319 : vector<1x8x16xf32>
    %321 = math.exp %320 : vector<1x8x16xf32>
    %cst_94 = arith.constant dense<0.000000e+00> : vector<1x8xf32>
    %322 = vector.multi_reduction <add>, %321, %cst_94 [2] : vector<1x8x16xf32> to vector<1x8xf32>
    %323 = vector.shape_cast %322 : vector<1x8xf32> to vector<1x8x1xf32>
    %324 = tpu.reciprocal %323 {approx = true} : vector<1x8x1xf32> -> vector<1x8x1xf32>
    %325 = vector.broadcast %324 : vector<1x8x1xf32> to vector<1x8x16xf32>
    %326 = arith.mulf %321, %325 : vector<1x8x16xf32>
    %327 = vector.extract_strided_slice %311 {offsets = [0, 0, 0], sizes = [1, 16, 8], strides = [1, 1, 1]} : vector<1x16x32xf32> to vector<1x16x8xf32>
    "tpu.trace_start"() <{level = 10 : i32, message = "bqk,bkd->bqd"}> : () -> ()
    %cst_95 = arith.constant dense<0.000000e+00> : vector<1x8x8xf32>
    %328 = tpu.matmul %326, %327, %cst_95 {dimension_numbers = #tpu.dot_dimension_numbers<[2], [1], [1], [2], [0, 0, 0, 1, 1, 2], [0], [0]>} : vector<1x8x16xf32>, vector<1x16x8xf32>, vector<1x8x8xf32> -> vector<1x8x8xf32>
    "tpu.trace_stop"() : () -> ()
    %329 = vector.extract_strided_slice %312 {offsets = [0, 0], sizes = [8, 32], strides = [1, 1]} : vector<32x32xf32> to vector<8x32xf32>
    %330 = vector.shape_cast %328 : vector<1x8x8xf32> to vector<8x8xf32>
    %cst_96 = arith.constant dense<0.000000e+00> : vector<8x32xf32>
    %331 = tpu.matmul %330, %329, %cst_96 {dimension_numbers = #tpu.dot_dimension_numbers<[1], [0], [0], [1], [0, 0, 1, 1], [], []>} : vector<8x8xf32>, vector<8x32xf32>, vector<8x32xf32> -> vector<8x32xf32>
    %332 = vector.shape_cast %331 : vector<8x32xf32> to vector<1x8x32xf32>
    %333 = vector.extract_strided_slice %302 {offsets = [0, 0, 8], sizes = [1, 8, 8], strides = [1, 1, 1]} : vector<1x8x32xf32> to vector<1x8x8xf32>
    %334 = vector.extract_strided_slice %310 {offsets = [0, 0, 8], sizes = [1, 16, 8], strides = [1, 1, 1]} : vector<1x16x32xf32> to vector<1x16x8xf32>
    "tpu.trace_start"() <{level = 10 : i32, message = "bqd,bkd->bqk"}> : () -> ()
    %cst_97 = arith.constant dense<0.000000e+00> : vector<1x8x16xf32>
    %335 = tpu.matmul %333, %334, %cst_97 {dimension_numbers = #tpu.dot_dimension_numbers<[2], [2], [1], [1], [0, 0, 0, 1, 1, 1], [0], [0]>} : vector<1x8x8xf32>, vector<1x16x8xf32>, vector<1x8x16xf32> -> vector<1x8x16xf32>
    "tpu.trace_stop"() : () -> ()
    %cst_98 = arith.constant dense<0xFF800000> : vector<1x8xf32>
    %336 = vector.multi_reduction <maximumf>, %335, %cst_98 [2] : vector<1x8x16xf32> to vector<1x8xf32>
    %337 = vector.shape_cast %336 : vector<1x8xf32> to vector<1x8x1xf32>
    %338 = vector.broadcast %337 : vector<1x8x1xf32> to vector<1x8x16xf32>
    %339 = arith.subf %335, %338 : vector<1x8x16xf32>
    %340 = math.exp %339 : vector<1x8x16xf32>
    %cst_99 = arith.constant dense<0.000000e+00> : vector<1x8xf32>
    %341 = vector.multi_reduction <add>, %340, %cst_99 [2] : vector<1x8x16xf32> to vector<1x8xf32>
    %342 = vector.shape_cast %341 : vector<1x8xf32> to vector<1x8x1xf32>
    %343 = tpu.reciprocal %342 {approx = true} : vector<1x8x1xf32> -> vector<1x8x1xf32>
    %344 = vector.broadcast %343 : vector<1x8x1xf32> to vector<1x8x16xf32>
    %345 = arith.mulf %340, %344 : vector<1x8x16xf32>
    %346 = vector.extract_strided_slice %311 {offsets = [0, 0, 8], sizes = [1, 16, 8], strides = [1, 1, 1]} : vector<1x16x32xf32> to vector<1x16x8xf32>
    "tpu.trace_start"() <{level = 10 : i32, message = "bqk,bkd->bqd"}> : () -> ()
    %cst_100 = arith.constant dense<0.000000e+00> : vector<1x8x8xf32>
    %347 = tpu.matmul %345, %346, %cst_100 {dimension_numbers = #tpu.dot_dimension_numbers<[2], [1], [1], [2], [0, 0, 0, 1, 1, 2], [0], [0]>} : vector<1x8x16xf32>, vector<1x16x8xf32>, vector<1x8x8xf32> -> vector<1x8x8xf32>
    "tpu.trace_stop"() : () -> ()
    %348 = vector.extract_strided_slice %312 {offsets = [8, 0], sizes = [8, 32], strides = [1, 1]} : vector<32x32xf32> to vector<8x32xf32>
    %349 = vector.shape_cast %347 : vector<1x8x8xf32> to vector<8x8xf32>
    %cst_101 = arith.constant dense<0.000000e+00> : vector<8x32xf32>
    %350 = tpu.matmul %349, %348, %cst_101 {dimension_numbers = #tpu.dot_dimension_numbers<[1], [0], [0], [1], [0, 0, 1, 1], [], []>} : vector<8x8xf32>, vector<8x32xf32>, vector<8x32xf32> -> vector<8x32xf32>
    %351 = vector.shape_cast %350 : vector<8x32xf32> to vector<1x8x32xf32>
    %352 = arith.addf %332, %351 : vector<1x8x32xf32>
    %353 = vector.extract_strided_slice %302 {offsets = [0, 0, 16], sizes = [1, 8, 8], strides = [1, 1, 1]} : vector<1x8x32xf32> to vector<1x8x8xf32>
    %354 = vector.extract_strided_slice %310 {offsets = [0, 0, 16], sizes = [1, 16, 8], strides = [1, 1, 1]} : vector<1x16x32xf32> to vector<1x16x8xf32>
    "tpu.trace_start"() <{level = 10 : i32, message = "bqd,bkd->bqk"}> : () -> ()
    %cst_102 = arith.constant dense<0.000000e+00> : vector<1x8x16xf32>
    %355 = tpu.matmul %353, %354, %cst_102 {dimension_numbers = #tpu.dot_dimension_numbers<[2], [2], [1], [1], [0, 0, 0, 1, 1, 1], [0], [0]>} : vector<1x8x8xf32>, vector<1x16x8xf32>, vector<1x8x16xf32> -> vector<1x8x16xf32>
    "tpu.trace_stop"() : () -> ()
    %cst_103 = arith.constant dense<0xFF800000> : vector<1x8xf32>
    %356 = vector.multi_reduction <maximumf>, %355, %cst_103 [2] : vector<1x8x16xf32> to vector<1x8xf32>
    %357 = vector.shape_cast %356 : vector<1x8xf32> to vector<1x8x1xf32>
    %358 = vector.broadcast %357 : vector<1x8x1xf32> to vector<1x8x16xf32>
    %359 = arith.subf %355, %358 : vector<1x8x16xf32>
    %360 = math.exp %359 : vector<1x8x16xf32>
    %cst_104 = arith.constant dense<0.000000e+00> : vector<1x8xf32>
    %361 = vector.multi_reduction <add>, %360, %cst_104 [2] : vector<1x8x16xf32> to vector<1x8xf32>
    %362 = vector.shape_cast %361 : vector<1x8xf32> to vector<1x8x1xf32>
    %363 = tpu.reciprocal %362 {approx = true} : vector<1x8x1xf32> -> vector<1x8x1xf32>
    %364 = vector.broadcast %363 : vector<1x8x1xf32> to vector<1x8x16xf32>
    %365 = arith.mulf %360, %364 : vector<1x8x16xf32>
    %366 = vector.extract_strided_slice %311 {offsets = [0, 0, 16], sizes = [1, 16, 8], strides = [1, 1, 1]} : vector<1x16x32xf32> to vector<1x16x8xf32>
    "tpu.trace_start"() <{level = 10 : i32, message = "bqk,bkd->bqd"}> : () -> ()
    %cst_105 = arith.constant dense<0.000000e+00> : vector<1x8x8xf32>
    %367 = tpu.matmul %365, %366, %cst_105 {dimension_numbers = #tpu.dot_dimension_numbers<[2], [1], [1], [2], [0, 0, 0, 1, 1, 2], [0], [0]>} : vector<1x8x16xf32>, vector<1x16x8xf32>, vector<1x8x8xf32> -> vector<1x8x8xf32>
    "tpu.trace_stop"() : () -> ()
    %368 = vector.extract_strided_slice %312 {offsets = [16, 0], sizes = [8, 32], strides = [1, 1]} : vector<32x32xf32> to vector<8x32xf32>
    %369 = vector.shape_cast %367 : vector<1x8x8xf32> to vector<8x8xf32>
    %cst_106 = arith.constant dense<0.000000e+00> : vector<8x32xf32>
    %370 = tpu.matmul %369, %368, %cst_106 {dimension_numbers = #tpu.dot_dimension_numbers<[1], [0], [0], [1], [0, 0, 1, 1], [], []>} : vector<8x8xf32>, vector<8x32xf32>, vector<8x32xf32> -> vector<8x32xf32>
    %371 = vector.shape_cast %370 : vector<8x32xf32> to vector<1x8x32xf32>
    %372 = arith.addf %352, %371 : vector<1x8x32xf32>
    %373 = vector.extract_strided_slice %302 {offsets = [0, 0, 24], sizes = [1, 8, 8], strides = [1, 1, 1]} : vector<1x8x32xf32> to vector<1x8x8xf32>
    %374 = vector.extract_strided_slice %310 {offsets = [0, 0, 24], sizes = [1, 16, 8], strides = [1, 1, 1]} : vector<1x16x32xf32> to vector<1x16x8xf32>
    "tpu.trace_start"() <{level = 10 : i32, message = "bqd,bkd->bqk"}> : () -> ()
    %cst_107 = arith.constant dense<0.000000e+00> : vector<1x8x16xf32>
    %375 = tpu.matmul %373, %374, %cst_107 {dimension_numbers = #tpu.dot_dimension_numbers<[2], [2], [1], [1], [0, 0, 0, 1, 1, 1], [0], [0]>} : vector<1x8x8xf32>, vector<1x16x8xf32>, vector<1x8x16xf32> -> vector<1x8x16xf32>
    "tpu.trace_stop"() : () -> ()
    %cst_108 = arith.constant dense<0xFF800000> : vector<1x8xf32>
    %376 = vector.multi_reduction <maximumf>, %375, %cst_108 [2] : vector<1x8x16xf32> to vector<1x8xf32>
    %377 = vector.shape_cast %376 : vector<1x8xf32> to vector<1x8x1xf32>
    %378 = vector.broadcast %377 : vector<1x8x1xf32> to vector<1x8x16xf32>
    %379 = arith.subf %375, %378 : vector<1x8x16xf32>
    %380 = math.exp %379 : vector<1x8x16xf32>
    %cst_109 = arith.constant dense<0.000000e+00> : vector<1x8xf32>
    %381 = vector.multi_reduction <add>, %380, %cst_109 [2] : vector<1x8x16xf32> to vector<1x8xf32>
    %382 = vector.shape_cast %381 : vector<1x8xf32> to vector<1x8x1xf32>
    %383 = tpu.reciprocal %382 {approx = true} : vector<1x8x1xf32> -> vector<1x8x1xf32>
    %384 = vector.broadcast %383 : vector<1x8x1xf32> to vector<1x8x16xf32>
    %385 = arith.mulf %380, %384 : vector<1x8x16xf32>
    %386 = vector.extract_strided_slice %311 {offsets = [0, 0, 24], sizes = [1, 16, 8], strides = [1, 1, 1]} : vector<1x16x32xf32> to vector<1x16x8xf32>
    "tpu.trace_start"() <{level = 10 : i32, message = "bqk,bkd->bqd"}> : () -> ()
    %cst_110 = arith.constant dense<0.000000e+00> : vector<1x8x8xf32>
    %387 = tpu.matmul %385, %386, %cst_110 {dimension_numbers = #tpu.dot_dimension_numbers<[2], [1], [1], [2], [0, 0, 0, 1, 1, 2], [0], [0]>} : vector<1x8x16xf32>, vector<1x16x8xf32>, vector<1x8x8xf32> -> vector<1x8x8xf32>
    "tpu.trace_stop"() : () -> ()
    %388 = vector.extract_strided_slice %312 {offsets = [24, 0], sizes = [8, 32], strides = [1, 1]} : vector<32x32xf32> to vector<8x32xf32>
    %389 = vector.shape_cast %387 : vector<1x8x8xf32> to vector<8x8xf32>
    %cst_111 = arith.constant dense<0.000000e+00> : vector<8x32xf32>
    %390 = tpu.matmul %389, %388, %cst_111 {dimension_numbers = #tpu.dot_dimension_numbers<[1], [0], [0], [1], [0, 0, 1, 1], [], []>} : vector<8x8xf32>, vector<8x32xf32>, vector<8x32xf32> -> vector<8x32xf32>
    %391 = vector.shape_cast %390 : vector<8x32xf32> to vector<1x8x32xf32>
    %392 = arith.addf %372, %391 : vector<1x8x32xf32>
    %393 = vector.shape_cast %313 : vector<1x32xf32> to vector<1x1x32xf32>
    %394 = vector.broadcast %393 : vector<1x1x32xf32> to vector<1x8x32xf32>
    %395 = arith.addf %392, %394 : vector<1x8x32xf32>
    %396 = arith.addf %295, %395 : vector<1x8x32xf32>
    %c656 = arith.constant 656 : index
    %c0_112 = arith.constant 0 : index
    %397 = vector.load %arg2[%c656, %c0_112] : memref<920x128xf32, #tpu.memory_space<vmem>>, vector<1x32xf32>
    %c664 = arith.constant 664 : index
    %c0_113 = arith.constant 0 : index
    %398 = vector.load %arg2[%c664, %c0_113] : memref<920x128xf32, #tpu.memory_space<vmem>>, vector<1x32xf32>
    %cst_114 = arith.constant dense<0.000000e+00> : vector<1x8xf32>
    %399 = vector.multi_reduction <add>, %396, %cst_114 [2] : vector<1x8x32xf32> to vector<1x8xf32>
    %400 = vector.shape_cast %399 : vector<1x8xf32> to vector<1x8x1xf32>
    %cst_115 = arith.constant 3.200000e+01 : f32
    %401 = vector.broadcast %cst_115 : f32 to vector<1x8x1xf32>
    %402 = arith.divf %400, %401 : vector<1x8x1xf32>
    %403 = vector.broadcast %402 : vector<1x8x1xf32> to vector<1x8x32xf32>
    %404 = arith.subf %396, %403 : vector<1x8x32xf32>
    %405 = arith.mulf %404, %404 : vector<1x8x32xf32>
    %cst_116 = arith.constant dense<0.000000e+00> : vector<1x8xf32>
    %406 = vector.multi_reduction <add>, %405, %cst_116 [2] : vector<1x8x32xf32> to vector<1x8xf32>
    %407 = vector.shape_cast %406 : vector<1x8xf32> to vector<1x8x1xf32>
    %cst_117 = arith.constant 3.200000e+01 : f32
    %408 = vector.broadcast %cst_117 : f32 to vector<1x8x1xf32>
    %409 = arith.divf %407, %408 : vector<1x8x1xf32>
    %410 = vector.broadcast %402 : vector<1x8x1xf32> to vector<1x8x32xf32>
    %411 = arith.subf %396, %410 : vector<1x8x32xf32>
    %cst_118 = arith.constant 9.99999974E-6 : f32
    %412 = vector.broadcast %cst_118 : f32 to vector<1x8x1xf32>
    %413 = arith.addf %409, %412 : vector<1x8x1xf32>
    %414 = math.rsqrt %413 : vector<1x8x1xf32>
    %415 = vector.broadcast %414 : vector<1x8x1xf32> to vector<1x8x32xf32>
    %416 = arith.mulf %411, %415 : vector<1x8x32xf32>
    %417 = vector.shape_cast %397 : vector<1x32xf32> to vector<1x1x32xf32>
    %418 = vector.broadcast %417 : vector<1x1x32xf32> to vector<1x8x32xf32>
    %419 = arith.mulf %416, %418 : vector<1x8x32xf32>
    %420 = vector.shape_cast %398 : vector<1x32xf32> to vector<1x1x32xf32>
    %421 = vector.broadcast %420 : vector<1x1x32xf32> to vector<1x8x32xf32>
    %422 = arith.addf %419, %421 : vector<1x8x32xf32>
    %c672 = arith.constant 672 : index
    %c0_119 = arith.constant 0 : index
    %423 = vector.load %arg2[%c672, %c0_119] : memref<920x128xf32, #tpu.memory_space<vmem>>, vector<32x64xf32>
    %424 = vector.shape_cast %422 : vector<1x8x32xf32> to vector<8x32xf32>
    %cst_120 = arith.constant dense<0.000000e+00> : vector<8x64xf32>
    %425 = tpu.matmul %424, %423, %cst_120 {dimension_numbers = #tpu.dot_dimension_numbers<[1], [0], [0], [1], [0, 0, 1, 1], [], []>} : vector<8x32xf32>, vector<32x64xf32>, vector<8x64xf32> -> vector<8x64xf32>
    %426 = vector.shape_cast %425 : vector<8x64xf32> to vector<1x8x64xf32>
    %c704 = arith.constant 704 : index
    %c0_121 = arith.constant 0 : index
    %427 = vector.load %arg2[%c704, %c0_121] : memref<920x128xf32, #tpu.memory_space<vmem>>, vector<1x64xf32>
    %428 = vector.shape_cast %427 : vector<1x64xf32> to vector<1x1x64xf32>
    %429 = vector.broadcast %428 : vector<1x1x64xf32> to vector<1x8x64xf32>
    %430 = arith.addf %426, %429 : vector<1x8x64xf32>
    %cst_122 = arith.constant 0.000000e+00 : f32
    %431 = vector.broadcast %cst_122 : f32 to vector<1x8x64xf32>
    %432 = arith.maximumf %430, %431 : vector<1x8x64xf32>
    %c712 = arith.constant 712 : index
    %c0_123 = arith.constant 0 : index
    %433 = vector.load %arg2[%c712, %c0_123] : memref<920x128xf32, #tpu.memory_space<vmem>>, vector<64x32xf32>
    %434 = vector.shape_cast %432 : vector<1x8x64xf32> to vector<8x64xf32>
    %cst_124 = arith.constant dense<0.000000e+00> : vector<8x32xf32>
    %435 = tpu.matmul %434, %433, %cst_124 {dimension_numbers = #tpu.dot_dimension_numbers<[1], [0], [0], [1], [0, 0, 1, 1], [], []>} : vector<8x64xf32>, vector<64x32xf32>, vector<8x32xf32> -> vector<8x32xf32>
    %436 = vector.shape_cast %435 : vector<8x32xf32> to vector<1x8x32xf32>
    %c776 = arith.constant 776 : index
    %c0_125 = arith.constant 0 : index
    %437 = vector.load %arg2[%c776, %c0_125] : memref<920x128xf32, #tpu.memory_space<vmem>>, vector<1x32xf32>
    %438 = vector.shape_cast %437 : vector<1x32xf32> to vector<1x1x32xf32>
    %439 = vector.broadcast %438 : vector<1x1x32xf32> to vector<1x8x32xf32>
    %440 = arith.addf %436, %439 : vector<1x8x32xf32>
    %441 = arith.addf %422, %440 : vector<1x8x32xf32>
    %c784 = arith.constant 784 : index
    %c0_126 = arith.constant 0 : index
    %442 = vector.load %arg2[%c784, %c0_126] : memref<920x128xf32, #tpu.memory_space<vmem>>, vector<1x32xf32>
    %c792 = arith.constant 792 : index
    %c0_127 = arith.constant 0 : index
    %443 = vector.load %arg2[%c792, %c0_127] : memref<920x128xf32, #tpu.memory_space<vmem>>, vector<1x32xf32>
    %cst_128 = arith.constant dense<0.000000e+00> : vector<1x8xf32>
    %444 = vector.multi_reduction <add>, %441, %cst_128 [2] : vector<1x8x32xf32> to vector<1x8xf32>
    %445 = vector.shape_cast %444 : vector<1x8xf32> to vector<1x8x1xf32>
    %cst_129 = arith.constant 3.200000e+01 : f32
    %446 = vector.broadcast %cst_129 : f32 to vector<1x8x1xf32>
    %447 = arith.divf %445, %446 : vector<1x8x1xf32>
    %448 = vector.broadcast %447 : vector<1x8x1xf32> to vector<1x8x32xf32>
    %449 = arith.subf %441, %448 : vector<1x8x32xf32>
    %450 = arith.mulf %449, %449 : vector<1x8x32xf32>
    %cst_130 = arith.constant dense<0.000000e+00> : vector<1x8xf32>
    %451 = vector.multi_reduction <add>, %450, %cst_130 [2] : vector<1x8x32xf32> to vector<1x8xf32>
    %452 = vector.shape_cast %451 : vector<1x8xf32> to vector<1x8x1xf32>
    %cst_131 = arith.constant 3.200000e+01 : f32
    %453 = vector.broadcast %cst_131 : f32 to vector<1x8x1xf32>
    %454 = arith.divf %452, %453 : vector<1x8x1xf32>
    %455 = vector.broadcast %447 : vector<1x8x1xf32> to vector<1x8x32xf32>
    %456 = arith.subf %441, %455 : vector<1x8x32xf32>
    %cst_132 = arith.constant 9.99999974E-6 : f32
    %457 = vector.broadcast %cst_132 : f32 to vector<1x8x1xf32>
    %458 = arith.addf %454, %457 : vector<1x8x1xf32>
    %459 = math.rsqrt %458 : vector<1x8x1xf32>
    %460 = vector.broadcast %459 : vector<1x8x1xf32> to vector<1x8x32xf32>
    %461 = arith.mulf %456, %460 : vector<1x8x32xf32>
    %462 = vector.shape_cast %442 : vector<1x32xf32> to vector<1x1x32xf32>
    %463 = vector.broadcast %462 : vector<1x1x32xf32> to vector<1x8x32xf32>
    %464 = arith.mulf %461, %463 : vector<1x8x32xf32>
    %465 = vector.shape_cast %443 : vector<1x32xf32> to vector<1x1x32xf32>
    %466 = vector.broadcast %465 : vector<1x1x32xf32> to vector<1x8x32xf32>
    %467 = arith.addf %464, %466 : vector<1x8x32xf32>
    %c800 = arith.constant 800 : index
    %c0_133 = arith.constant 0 : index
    %468 = vector.load %arg2[%c800, %c0_133] : memref<920x128xf32, #tpu.memory_space<vmem>>, vector<32x37xf32>
    %469 = vector.shape_cast %467 : vector<1x8x32xf32> to vector<8x32xf32>
    %cst_134 = arith.constant dense<0.000000e+00> : vector<8x37xf32>
    %470 = tpu.matmul %469, %468, %cst_134 {dimension_numbers = #tpu.dot_dimension_numbers<[1], [0], [0], [1], [0, 0, 1, 1], [], []>} : vector<8x32xf32>, vector<32x37xf32>, vector<8x37xf32> -> vector<8x37xf32>
    %471 = vector.shape_cast %470 : vector<8x37xf32> to vector<1x8x37xf32>
    %c832 = arith.constant 832 : index
    %c0_135 = arith.constant 0 : index
    %472 = vector.load %arg2[%c832, %c0_135] : memref<920x128xf32, #tpu.memory_space<vmem>>, vector<1x37xf32>
    %473 = vector.shape_cast %472 : vector<1x37xf32> to vector<1x1x37xf32>
    %474 = vector.broadcast %473 : vector<1x1x37xf32> to vector<1x8x37xf32>
    %475 = arith.addf %471, %474 : vector<1x8x37xf32>
    %476 = vector.extract_strided_slice %475 {offsets = [0, 0, 0], sizes = [1, 8, 32], strides = [1, 1, 1]} : vector<1x8x37xf32> to vector<1x8x32xf32>
    %cst_136 = arith.constant 0.000000e+00 : f32
    %477 = vector.broadcast %cst_136 : f32 to vector<1x8x32xf32>
    %478 = arith.maximumf %476, %477 : vector<1x8x32xf32>
    %479 = vector.extract_strided_slice %475 {offsets = [0, 0, 32], sizes = [1, 8, 5], strides = [1, 1, 1]} : vector<1x8x37xf32> to vector<1x8x5xf32>
    %c840 = arith.constant 840 : index
    %c0_137 = arith.constant 0 : index
    %480 = vector.load %arg2[%c840, %c0_137] : memref<920x128xf32, #tpu.memory_space<vmem>>, vector<32x32xf32>
    %481 = vector.shape_cast %478 : vector<1x8x32xf32> to vector<8x32xf32>
    %cst_138 = arith.constant dense<0.000000e+00> : vector<8x32xf32>
    %482 = tpu.matmul %481, %480, %cst_138 {dimension_numbers = #tpu.dot_dimension_numbers<[1], [0], [0], [1], [0, 0, 1, 1], [], []>} : vector<8x32xf32>, vector<32x32xf32>, vector<8x32xf32> -> vector<8x32xf32>
    %483 = vector.shape_cast %482 : vector<8x32xf32> to vector<1x8x32xf32>
    %c872 = arith.constant 872 : index
    %c0_139 = arith.constant 0 : index
    %484 = vector.load %arg2[%c872, %c0_139] : memref<920x128xf32, #tpu.memory_space<vmem>>, vector<1x32xf32>
    %485 = vector.shape_cast %484 : vector<1x32xf32> to vector<1x1x32xf32>
    %486 = vector.broadcast %485 : vector<1x1x32xf32> to vector<1x8x32xf32>
    %487 = arith.addf %483, %486 : vector<1x8x32xf32>
    %cst_140 = arith.constant 0.000000e+00 : f32
    %488 = vector.broadcast %cst_140 : f32 to vector<1x8x32xf32>
    %489 = arith.maximumf %487, %488 : vector<1x8x32xf32>
    %c880 = arith.constant 880 : index
    %c0_141 = arith.constant 0 : index
    %490 = vector.load %arg2[%c880, %c0_141] : memref<920x128xf32, #tpu.memory_space<vmem>>, vector<32x4xf32>
    %491 = vector.shape_cast %489 : vector<1x8x32xf32> to vector<8x32xf32>
    %cst_142 = arith.constant dense<0.000000e+00> : vector<8x4xf32>
    %492 = tpu.matmul %491, %490, %cst_142 {dimension_numbers = #tpu.dot_dimension_numbers<[1], [0], [0], [1], [0, 0, 1, 1], [], []>} : vector<8x32xf32>, vector<32x4xf32>, vector<8x4xf32> -> vector<8x4xf32>
    %493 = vector.shape_cast %492 : vector<8x4xf32> to vector<1x8x4xf32>
    %c912 = arith.constant 912 : index
    %c0_143 = arith.constant 0 : index
    %494 = vector.load %arg2[%c912, %c0_143] : memref<920x128xf32, #tpu.memory_space<vmem>>, vector<1x4xf32>
    %495 = vector.shape_cast %494 : vector<1x4xf32> to vector<1x1x4xf32>
    %496 = vector.broadcast %495 : vector<1x1x4xf32> to vector<1x8x4xf32>
    %497 = arith.addf %493, %496 : vector<1x8x4xf32>
    %498 = arith.negf %497 : vector<1x8x4xf32>
    %499 = math.exp %498 : vector<1x8x4xf32>
    %cst_144 = arith.constant 1.000000e+00 : f32
    %500 = vector.broadcast %cst_144 : f32 to vector<1x8x4xf32>
    %501 = arith.addf %500, %499 : vector<1x8x4xf32>
    %502 = arith.divf %500, %501 : vector<1x8x4xf32>
    %cst_145 = arith.constant dense<0xFF800000> : vector<1x8xf32>
    %503 = vector.multi_reduction <maximumf>, %479, %cst_145 [2] : vector<1x8x5xf32> to vector<1x8xf32>
    %504 = vector.shape_cast %503 : vector<1x8xf32> to vector<1x8x1xf32>
    %505 = vector.broadcast %504 : vector<1x8x1xf32> to vector<1x8x5xf32>
    %506 = arith.subf %479, %505 : vector<1x8x5xf32>
    %507 = math.exp %506 : vector<1x8x5xf32>
    %cst_146 = arith.constant dense<0.000000e+00> : vector<1x8xf32>
    %508 = vector.multi_reduction <add>, %507, %cst_146 [2] : vector<1x8x5xf32> to vector<1x8xf32>
    %509 = vector.shape_cast %508 : vector<1x8xf32> to vector<1x8x1xf32>
    %510 = vector.broadcast %509 : vector<1x8x1xf32> to vector<1x8x5xf32>
    %511 = arith.divf %507, %510 : vector<1x8x5xf32>
    %512 = vector.extract_strided_slice %511 {offsets = [0, 0, 0], sizes = [1, 8, 4], strides = [1, 1, 1]} : vector<1x8x5xf32> to vector<1x8x4xf32>
    %cst_147 = arith.constant dense<0xFF800000> : vector<1x8xf32>
    %513 = vector.multi_reduction <maximumf>, %512, %cst_147 [2] : vector<1x8x4xf32> to vector<1x8xf32>
    %514 = vector.shape_cast %513 : vector<1x8xf32> to vector<1x8x1xf32>
    %515 = tpu.iota {dimensions = array<i32: 2>} : vector<1x8x4xi32>
    %516 = vector.broadcast %514 : vector<1x8x1xf32> to vector<1x8x4xf32>
    %517 = arith.cmpf oeq, %512, %516 : vector<1x8x4xf32>
    %c4_i32 = arith.constant 4 : i32
    %518 = vector.broadcast %c4_i32 : i32 to vector<1x8x4xi32>
    %519 = arith.select %517, %515, %518 : vector<1x8x4xi1>, vector<1x8x4xi32>
    %cst_148 = arith.constant dense<2147483647> : vector<1x8xi32>
    %520 = vector.multi_reduction <minsi>, %519, %cst_148 [2] : vector<1x8x4xi32> to vector<1x8xi32>
    %521 = vector.shape_cast %520 : vector<1x8xi32> to vector<1x8x1xi32>
    %cst_149 = arith.constant 0.899999976 : f32
    %522 = vector.broadcast %cst_149 : f32 to vector<1x8x1xf32>
    %523 = arith.cmpf ogt, %514, %522 : vector<1x8x1xf32>
    %524 = arith.extui %523 : vector<1x8x1xi1> to vector<1x8x1xi32>
    %525 = arith.sitofp %524 : vector<1x8x1xi32> to vector<1x8x1xf32>
    %526 = vector.extract_strided_slice %502 {offsets = [0, 0, 0], sizes = [1, 8, 1], strides = [1, 1, 1]} : vector<1x8x4xf32> to vector<1x8x1xf32>
    %527 = vector.extract_strided_slice %502 {offsets = [0, 0, 1], sizes = [1, 8, 1], strides = [1, 1, 1]} : vector<1x8x4xf32> to vector<1x8x1xf32>
    %528 = vector.extract_strided_slice %502 {offsets = [0, 0, 2], sizes = [1, 8, 1], strides = [1, 1, 1]} : vector<1x8x4xf32> to vector<1x8x1xf32>
    %529 = vector.extract_strided_slice %502 {offsets = [0, 0, 3], sizes = [1, 8, 1], strides = [1, 1, 1]} : vector<1x8x4xf32> to vector<1x8x1xf32>
    %cst_150 = arith.constant 5.000000e-01 : f32
    %530 = vector.broadcast %cst_150 : f32 to vector<1x8x1xf32>
    %531 = arith.mulf %530, %528 : vector<1x8x1xf32>
    %532 = arith.subf %526, %531 : vector<1x8x1xf32>
    %cst_151 = arith.constant 3.200000e+01 : f32
    %533 = vector.broadcast %cst_151 : f32 to vector<1x8x1xf32>
    %534 = arith.mulf %532, %533 : vector<1x8x1xf32>
    %cst_152 = arith.constant 5.000000e-01 : f32
    %535 = vector.broadcast %cst_152 : f32 to vector<1x8x1xf32>
    %536 = arith.mulf %535, %529 : vector<1x8x1xf32>
    %537 = arith.subf %527, %536 : vector<1x8x1xf32>
    %cst_153 = arith.constant 3.200000e+01 : f32
    %538 = vector.broadcast %cst_153 : f32 to vector<1x8x1xf32>
    %539 = arith.mulf %537, %538 : vector<1x8x1xf32>
    %cst_154 = arith.constant 5.000000e-01 : f32
    %540 = vector.broadcast %cst_154 : f32 to vector<1x8x1xf32>
    %541 = arith.mulf %540, %528 : vector<1x8x1xf32>
    %542 = arith.addf %526, %541 : vector<1x8x1xf32>
    %cst_155 = arith.constant 3.200000e+01 : f32
    %543 = vector.broadcast %cst_155 : f32 to vector<1x8x1xf32>
    %544 = arith.mulf %542, %543 : vector<1x8x1xf32>
    %cst_156 = arith.constant 5.000000e-01 : f32
    %545 = vector.broadcast %cst_156 : f32 to vector<1x8x1xf32>
    %546 = arith.mulf %545, %529 : vector<1x8x1xf32>
    %547 = arith.addf %527, %546 : vector<1x8x1xf32>
    %cst_157 = arith.constant 3.200000e+01 : f32
    %548 = vector.broadcast %cst_157 : f32 to vector<1x8x1xf32>
    %549 = arith.mulf %547, %548 : vector<1x8x1xf32>
    %c0_158 = arith.constant 0 : index
    %c0_159 = arith.constant 0 : index
    %c0_160 = arith.constant 0 : index
    %550 = vector.load %arg3[%c0_158, %c0_159, %c0_160] : memref<1x8x128xf32, #tpu.memory_space<vmem>>, vector<1x8x5xf32>
    tpu.vector_store %arg3[%c0_158, %c0_159, %c0_160], %479 {strides = array<i32>} : memref<1x8x128xf32, #tpu.memory_space<vmem>>, vector<1x8x5xf32>,
    %c0_161 = arith.constant 0 : index
    %c0_162 = arith.constant 0 : index
    %c5 = arith.constant 5 : index
    %551 = vector.load %arg3[%c0_161, %c0_162, %c5] : memref<1x8x128xf32, #tpu.memory_space<vmem>>, vector<1x8x4xf32>
    tpu.vector_store %arg3[%c0_161, %c0_162, %c5], %502 {strides = array<i32>} : memref<1x8x128xf32, #tpu.memory_space<vmem>>, vector<1x8x4xf32>,
    %552 = arith.addf %534, %544 : vector<1x8x1xf32>
    %cst_163 = arith.constant 5.000000e-01 : f32
    %553 = vector.broadcast %cst_163 : f32 to vector<1x8x1xf32>
    %554 = arith.mulf %552, %553 : vector<1x8x1xf32>
    %c0_164 = arith.constant 0 : index
    %c0_165 = arith.constant 0 : index
    %c9 = arith.constant 9 : index
    %555 = vector.load %arg3[%c0_164, %c0_165, %c9] : memref<1x8x128xf32, #tpu.memory_space<vmem>>, vector<1x8x1xf32>
    tpu.vector_store %arg3[%c0_164, %c0_165, %c9], %554 {strides = array<i32>} : memref<1x8x128xf32, #tpu.memory_space<vmem>>, vector<1x8x1xf32>,
    %556 = arith.addf %539, %549 : vector<1x8x1xf32>
    %cst_166 = arith.constant 5.000000e-01 : f32
    %557 = vector.broadcast %cst_166 : f32 to vector<1x8x1xf32>
    %558 = arith.mulf %556, %557 : vector<1x8x1xf32>
    %c0_167 = arith.constant 0 : index
    %c0_168 = arith.constant 0 : index
    %c10 = arith.constant 10 : index
    %559 = vector.load %arg3[%c0_167, %c0_168, %c10] : memref<1x8x128xf32, #tpu.memory_space<vmem>>, vector<1x8x1xf32>
    tpu.vector_store %arg3[%c0_167, %c0_168, %c10], %558 {strides = array<i32>} : memref<1x8x128xf32, #tpu.memory_space<vmem>>, vector<1x8x1xf32>,
    %560 = arith.subf %544, %534 : vector<1x8x1xf32>
    %c0_169 = arith.constant 0 : index
    %c0_170 = arith.constant 0 : index
    %c11 = arith.constant 11 : index
    %561 = vector.load %arg3[%c0_169, %c0_170, %c11] : memref<1x8x128xf32, #tpu.memory_space<vmem>>, vector<1x8x1xf32>
    tpu.vector_store %arg3[%c0_169, %c0_170, %c11], %560 {strides = array<i32>} : memref<1x8x128xf32, #tpu.memory_space<vmem>>, vector<1x8x1xf32>,
    %562 = arith.subf %549, %539 : vector<1x8x1xf32>
    %c0_171 = arith.constant 0 : index
    %c0_172 = arith.constant 0 : index
    %c12 = arith.constant 12 : index
    %563 = vector.load %arg3[%c0_171, %c0_172, %c12] : memref<1x8x128xf32, #tpu.memory_space<vmem>>, vector<1x8x1xf32>
    tpu.vector_store %arg3[%c0_171, %c0_172, %c12], %562 {strides = array<i32>} : memref<1x8x128xf32, #tpu.memory_space<vmem>>, vector<1x8x1xf32>,
    %c0_173 = arith.constant 0 : index
    %c0_174 = arith.constant 0 : index
    %c13 = arith.constant 13 : index
    %564 = vector.load %arg3[%c0_173, %c0_174, %c13] : memref<1x8x128xf32, #tpu.memory_space<vmem>>, vector<1x8x1xf32>
    tpu.vector_store %arg3[%c0_173, %c0_174, %c13], %514 {strides = array<i32>} : memref<1x8x128xf32, #tpu.memory_space<vmem>>, vector<1x8x1xf32>,
    %565 = arith.sitofp %521 : vector<1x8x1xi32> to vector<1x8x1xf32>
    %c0_175 = arith.constant 0 : index
    %c0_176 = arith.constant 0 : index
    %c14 = arith.constant 14 : index
    %566 = vector.load %arg3[%c0_175, %c0_176, %c14] : memref<1x8x128xf32, #tpu.memory_space<vmem>>, vector<1x8x1xf32>
    tpu.vector_store %arg3[%c0_175, %c0_176, %c14], %565 {strides = array<i32>} : memref<1x8x128xf32, #tpu.memory_space<vmem>>, vector<1x8x1xf32>,
    %c0_177 = arith.constant 0 : index
    %c0_178 = arith.constant 0 : index
    %c15 = arith.constant 15 : index
    %567 = vector.load %arg3[%c0_177, %c0_178, %c15] : memref<1x8x128xf32, #tpu.memory_space<vmem>>, vector<1x8x1xf32>
    tpu.vector_store %arg3[%c0_177, %c0_178, %c15], %525 {strides = array<i32>} : memref<1x8x128xf32, #tpu.memory_space<vmem>>, vector<1x8x1xf32>,
    %cst_179 = arith.constant 0.000000e+00 : f32
    %568 = vector.broadcast %cst_179 : f32 to vector<1x8x112xf32>
    %c0_180 = arith.constant 0 : index
    %c0_181 = arith.constant 0 : index
    %c16 = arith.constant 16 : index
    %569 = vector.load %arg3[%c0_180, %c0_181, %c16] : memref<1x8x128xf32, #tpu.memory_space<vmem>>, vector<1x8x112xf32>
    tpu.vector_store %arg3[%c0_180, %c0_181, %c16], %568 {strides = array<i32>} : memref<1x8x128xf32, #tpu.memory_space<vmem>>, vector<1x8x112xf32>,
    return
  }
  func.func @transform_0(%arg0: i32) -> (i32, i32, i32) {
    %c0_i32 = arith.constant 0 : i32
    %c0_i32_0 = arith.constant 0 : i32
    %c0_i32_1 = arith.constant 0 : i32
    return %arg0, %c0_i32, %c0_i32_0 : i32, i32, i32
  }
  func.func @transform_1(%arg0: i32) -> (i32, i32) {
    %c0_i32 = arith.constant 0 : i32
    %c0_i32_0 = arith.constant 0 : i32
    %c0_i32_1 = arith.constant 0 : i32
    return %c0_i32, %c0_i32_0 : i32, i32
  }
  func.func @transform_2(%arg0: i32) -> (i32, i32, i32) {
    %c0_i32 = arith.constant 0 : i32
    %c0_i32_0 = arith.constant 0 : i32
    %c0_i32_1 = arith.constant 0 : i32
    return %arg0, %c0_i32, %c0_i32_0 : i32, i32, i32
  }
}

</mosaic_0001>

<llo_original>
// kernel: base_detr_forward.1
$region0: #{base_detr_forward.1}
  #allocation0 [shape = 'u32[]', space=smem, size = 0x4, offset = 0x4, fixed_abs, tag = 'smem constant byte address 0x4 - core index']
  #allocation1 [shape = 'u32[144,128]{1,0:T(1,128)}', space=vmem, size = 0x12000, scoped, tag = 'internal scratch']
  %s0 = inlined_call_operand.vmem [shape: f32[2,16,192], index: 0, kind: input, shape index: {}]
  %s1 = inlined_call_operand.vmem [shape: f32[920,128], index: 1, kind: input, shape index: {}]
  %s2 = inlined_call_operand.vmem [shape: f32[2,8,128], index: 2, kind: output, shape index: {}]
  %s3 = sld [smem:[#allocation0]]
  $region41: #{base_detr_forward.1} parent=0
    _
  %s5 = ssub.s32 1, %s3
  %s6 = scalar_select 0, %s5, %s3
  loop: start=0, step=1, limit=4
  $region2: #{base_detr_forward.1} parent=0 // loop_pre_header
    _
  $region3: #{base_detr_forward.1} parent=0 // loop_header
    %s8 = sphi 0, %s12
    %p9 = scmp.ge.s32.totalorder %s8, 4
    %s18 = sphi 0, %s20
    %s21 = sphi 0, %s18
    %s22 = sphi 0, %s21
    %s38 = sphi 0, %s22
    %s42 = sphi 0, %s42
    %s44 = sphi 0, %s42
    %s45 = sphi 0, %s44
    %s59 = sphi 0, %s45
    %s65 = sphi 0, %s67
    %s68 = sphi 0, %s65
    %s69 = sphi 0, %s68
    %s85 = sphi 0, %s69
  $region4: #{base_detr_forward.1} parent=0 // loop_header_branch
    %11 = sbr.rel (%p9) target = $region8
  $region5: #{base_detr_forward.1} parent=0 // loop_body
    %s13 = ssub.s32 %s8, 1
    %s14 = ssub.s32 %s8, 2
    %s15 = sadd.s32 %s8, 1
    %s16 = ssub.s32 %s8, %s15
    %p17 = scmp.eq.s32.totalorder %s16, 0
    %s19 = sadd.s32 %s18, 1
    %s20 = scalar_select %p17, %s18, %s19
    %p23 = pneg %p17
    %p24 = scmp.eq.s32.totalorder %s8, 1
    %p25 = por %p23, %p24
    %p26 = scmp.ne.s32.totalorder %s18, %s21
    %p27 = scmp.eq.s32.totalorder %s8, 0
    %p28 = por %p26, %p27
    %p29 = scmp.ne.s32.totalorder %s18, %s21
    %p30 = scmp.eq.s32.totalorder %s13, 1
    %p31 = por %p29, %p30
    %p32 = scmp.ne.s32.totalorder %s21, %s22
    %p33 = scmp.eq.s32.totalorder %s13, 0
    %p34 = por %p32, %p33
    %p35 = scmp.ne.s32.totalorder %s21, %s22
    %p36 = scmp.eq.s32.totalorder %s14, 1
    %p37 = por %p35, %p36
    %p39 = scmp.ne.s32.totalorder %s22, %s38
    %p40 = scmp.eq.s32.totalorder %s14, 0
    %p41 = por %p39, %p40
    %s43 = sadd.s32 %s42, 1
    %p46 = scmp.eq.s32.totalorder %s8, 1
    %p47 = scmp.ne.s32.totalorder %s42, %s44
    %p48 = scmp.eq.s32.totalorder %s8, 0
    %p49 = por %p47, %p48
    %p50 = scmp.ne.s32.totalorder %s42, %s44
    %p51 = scmp.eq.s32.totalorder %s13, 1
    %p52 = por %p50, %p51
    %p53 = scmp.ne.s32.totalorder %s44, %s45
    %p54 = scmp.eq.s32.totalorder %s13, 0
    %p55 = por %p53, %p54
    %p56 = scmp.ne.s32.totalorder %s44, %s45
    %p57 = scmp.eq.s32.totalorder %s14, 1
    %p58 = por %p56, %p57
    %p60 = scmp.ne.s32.totalorder %s45, %s59
    %p61 = scmp.eq.s32.totalorder %s14, 0
    %p62 = por %p60, %p61
    %s63 = ssub.s32 %s8, %s15
    %p64 = scmp.eq.s32.totalorder %s63, 0
    %s66 = sadd.s32 %s65, 1
    %s67 = scalar_select %p64, %s65, %s66
    %p70 = pneg %p64
    %p71 = scmp.eq.s32.totalorder %s8, 1
    %p72 = por %p70, %p71
    %p73 = scmp.ne.s32.totalorder %s65, %s68
    %p74 = scmp.eq.s32.totalorder %s8, 0
    %p75 = por %p73, %p74
    %p76 = scmp.ne.s32.totalorder %s65, %s68
    %p77 = scmp.eq.s32.totalorder %s13, 1
    %p78 = por %p76, %p77
    %p79 = scmp.ne.s32.totalorder %s68, %s69
    %p80 = scmp.eq.s32.totalorder %s13, 0
    %p81 = por %p79, %p80
    %p82 = scmp.ne.s32.totalorder %s68, %s69
    %p83 = scmp.eq.s32.totalorder %s14, 1
    %p84 = por %p82, %p83
    %p86 = scmp.ne.s32.totalorder %s69, %s85
    %p87 = scmp.eq.s32.totalorder %s14, 0
    %p88 = por %p86, %p87
    %p89 = scmp.le.s32.totalorder 1, %s8
    %p90 = scmp.lt.s32.totalorder %s8, 3
    %p91 = pnand %p89, %p90
    %p92 = pneg %p91
    // Predicated region
    $region9: #{base_detr_forward.1} parent=5 // pred_check
      _
    $region10: #{base_detr_forward.1} parent=5 // pred_check_branch
      %94 = sbr.rel (%p91) target = $region12
    $region11: #{base_detr_forward.1} parent=5 // pred_region
      %s95 = ssub.s32 %s8, 1
      // Predicated region
      $region13: #{base_detr_forward.1} parent=11 // pred_check
        %p96 = pneg %p55
      $region14: #{base_detr_forward.1} parent=11 // pred_check_branch
        %98 = sbr.rel (%p96) target = $region16
      $region15: #{base_detr_forward.1} parent=11 // pred_region
        _
      $region16: #{base_detr_forward.1} parent=11 // pred_fallthru
        _
    $region12: #{base_detr_forward.1} parent=5 // pred_fallthru
      _
    %p99 = scmp.lt.s32.totalorder %s8, 2
    // Predicated region
    $region17: #{base_detr_forward.1} parent=5 // pred_check
      %p100 = pneg %p99
    $region18: #{base_detr_forward.1} parent=5 // pred_check_branch
      %102 = sbr.rel (%p100) target = $region20
    $region19: #{base_detr_forward.1} parent=5 // pred_region
      // Predicated region
      $region21: #{base_detr_forward.1} parent=19 // pred_check
        %p103 = pneg %p28
      $region22: #{base_detr_forward.1} parent=19 // pred_check_branch
        %105 = sbr.rel (%p103) target = $region24
      $region23: #{base_detr_forward.1} parent=19 // pred_region
        %p106 = scmp.lt.s32.totalorder %s8, 1
        %s107 = scalar_select %p106, %s8, 1
        %s108 = smul.addr %s107, 4
        %s109 = smul.addr %s108, 8
        %s110 = scalar_lea.vmem %s0, %s109
      $region24: #{base_detr_forward.1} parent=19 // pred_fallthru
        _
    $region20: #{base_detr_forward.1} parent=5 // pred_fallthru
      _
    %p111 = scmp.le.s32.totalorder 1, %s8
    %p112 = scmp.lt.s32.totalorder %s8, 3
    %p113 = pnand %p111, %p112
    %p114 = pneg %p113
    // Predicated region
    $region25: #{base_detr_forward.1} parent=5 // pred_check
      _
    $region26: #{base_detr_forward.1} parent=5 // pred_check_branch
      %116 = sbr.rel (%p113) target = $region28
    $region27: #{base_detr_forward.1} parent=5 // pred_region
      %s117 = ssub.s32 %s8, 1
      %p118 = scmp.lt.s32.totalorder %s13, 1
      %s119 = scalar_select %p118, %s13, 1
      %s120 = smul.addr %s119, 4
      %s121 = smul.addr %s120, 8
      %s122 = scalar_lea.vmem %s0, %s121
      %p123 = pneg %p34
      %p124 = pneg %p31
      %p125 = pneg %p55
      %p126 = pneg %p52
      %p127 = pneg %p81
      %p128 = pneg %p78
      %p129 = scmp.lt.s32.totalorder %s13, 1
      %s130 = scalar_select %p129, %s13, 1
      %s131 = smul.addr %s130, 8
      %s132 = scalar_lea.vmem %s2, %s131
      %p133 = scmp.lt.s32.totalorder %s13, 1
      %s134 = scalar_select %p133, %s13, 1
      %s135 = smul.addr %s134, 4
      %s136 = smul.addr %s135, 8
      %s137 = scalar_lea.vmem %s0, %s136
      %p138 = scmp.lt.s32.totalorder %s13, 1
      %s139 = scalar_select %p138, %s13, 1
      %s140 = smul.addr %s139, 8
      %s141 = scalar_lea.vmem %s2, %s140
      %v142 = vld [vmem:[%s137] sm:$0xff]
      %v143 = vld [vmem:[%s137 + $0x8] sm:$0xff]
      %v144 = vld [vmem:[%s137 + $0x10] sm:$0xff]
      %v145 = vld [vmem:[%s137 + $0x18] sm:$0xff]
      %v146 = vld [vmem:[%s1] sm:$0xff]
      %v147 = vld [vmem:[%s1 + $0x8] sm:$0xff]
      %v148 = vld [vmem:[%s1 + $0x10] sm:$0xff]
      %v149 = vld [vmem:[%s1 + $0x18] sm:$0xff]
      %v150 = vld [vmem:[%s1 + $0x20] sm:$0xff]
      %v151 = vld [vmem:[%s1 + $0x28] sm:$0xff]
      %v152 = vld [vmem:[%s1 + $0x30] sm:$0xff]
      %v153 = vld [vmem:[%s1 + $0x38] sm:$0xff]
      %v154 = vld [vmem:[%s1 + $0x40] sm:$0xff]
      %v155 = vld [vmem:[%s1 + $0x48] sm:$0xff]
      %v156 = vld [vmem:[%s1 + $0x50] sm:$0xff]
      %v157 = vld [vmem:[%s1 + $0x58] sm:$0xff]
      %v158 = vld [vmem:[%s1 + $0x60] sm:$0xff]
      %v159 = vld [vmem:[%s1 + $0x68] sm:$0xff]
      %v160 = vld [vmem:[%s1 + $0x70] sm:$0xff]
      %v161 = vld [vmem:[%s1 + $0x78] sm:$0xff]
      %v162 = vld [vmem:[%s1 + $0x80] sm:$0xff]
      %v163 = vld [vmem:[%s1 + $0x88] sm:$0xff]
      %v164 = vld [vmem:[%s1 + $0x90] sm:$0xff]
      %v165 = vld [vmem:[%s1 + $0x98] sm:$0xff]
      %v166 = vld [vmem:[%s1 + $0xa0] sm:$0xff]
      %v167 = vld [vmem:[%s1 + $0xa8] sm:$0xff]
      %v168 = vld [vmem:[%s1 + $0xb0] sm:$0xff]
      %v169 = vld [vmem:[%s1 + $0xb8] sm:$0xff]
      %v170 = vld [vmem:[%s1 + $0xc0] sm:$0x1]
      %v171 = vlaneseq
      %v172 = vshrl.u32 %v171, 7
      %v173 = vsub.s32 0, %v172
      %v174 = vrot.slane %v170, %v173
      %vm175 = vcmask 523264
      %v177 = vsel %vm175, %v143, 0
      %v180 = vsel %vm175, %v145, 0
      %182 = vmatprep.subr.mxu0 0.0
      %183 = vmatpush1.msra.mxu0 %v146
      %184 = vmatprep.subr.mxu0 0.0
      %185 = vmatpush1.msra.mxu0 %v147
      %186 = vmatprep.subr.mxu0 0.0
      %187 = vmatpush1.msra.mxu0 %v148
      %188 = vmatprep.subr.mxu0 0.0
      %189 = vmatpush1.msra.mxu0 %v149
      %190 = vmatprep.subr.mxu0 0.0
      %191 = vmatpush1.msra.mxu0 %v150
      %192 = vmatprep.subr.mxu0 0.0
      %193 = vmatpush1.msra.mxu0 %v151
      %194 = vmatprep.subr.mxu0 0.0
      %195 = vmatpush1.msra.mxu0 %v152
      %196 = vmatprep.subr.mxu0 0.0
      %197 = vmatpush1.msra.mxu0 %v153
      %198 = vmatprep.subr.mxu0 0.0
      %199 = vmatpush1.msra.mxu0 %v154
      %200 = vmatprep.subr.mxu0 0.0
      %201 = vmatpush1.msra.mxu0 %v155
      %202 = vmatprep.subr.mxu0 0.0
      %203 = vmatpush1.msra.mxu0 %v156
      %204 = vmatprep.subr.mxu0 0.0
      %205 = vmatpush1.msra.mxu0 %v157
      %206 = vmatprep.subr.mxu0 0.0
      %207 = vmatpush1.msra.mxu0 %v158
      %208 = vmatprep.subr.mxu0 0.0
      %209 = vmatpush1.msra.mxu0 %v159
      %210 = vmatprep.subr.mxu0 0.0
      %211 = vmatpush1.msra.mxu0 %v160
      %212 = vmatprep.subr.mxu0 0.0
      %213 = vmatpush1.msra.mxu0 %v161
      %214 = vmatprep.subr.mxu0 0.0
      %215 = vmatpush1.msra.mxu0 %v162
      %216 = vmatprep.subr.mxu0 0.0
      %217 = vmatpush1.msra.mxu0 %v163
      %218 = vmatprep.subr.mxu0 0.0
      %219 = vmatpush1.msra.mxu0 %v164
      %220 = vmatprep.subr.mxu0 0.0
      %221 = vmatpush1.msra.mxu0 %v165
      %222 = vmatprep.subr.mxu0 0.0
      %223 = vmatpush1.msra.mxu0 %v166
      %224 = vmatprep.subr.mxu0 0.0
      %225 = vmatpush1.msra.mxu0 %v167
      %226 = vmatprep.subr.mxu0 0.0
      %227 = vmatpush1.msra.mxu0 %v168
      %228 = vmatprep.subr.mxu0 0.0
      %229 = vmatpush1.msra.mxu0 %v169
      %230 = vmatprep.subr.mxu0 0.0
      %231 = vmatpush1.msra.mxu0 0.0
      %232 = vmatprep.subr.mxu0 0.0
      %233 = vmatpush1.msra.mxu0 0.0
      %234 = vmatprep.subr.mxu0 0.0
      %235 = vmatpush1.msra.mxu0 0.0
      %236 = vmatprep.subr.mxu0 0.0
      %237 = vmatpush1.msra.mxu0 0.0
      %238 = vmatprep.subr.mxu0 0.0
      %239 = vmatpush1.msra.mxu0 0.0
      %240 = vmatprep.subr.mxu0 0.0
      %241 = vmatpush1.msra.mxu0 0.0
      %242 = vmatprep.subr.mxu0 0.0
      %243 = vmatpush1.msra.mxu0 0.0
      %244 = vmatprep.subr.mxu0 0.0
      %245 = vmatpush1.msra.mxu0 0.0
      %246 = vmatprep.mubr.f32.mxu0 %v177
      %247 = vmatmul.mubr.f32.gmra.mrb[0].mxu0 %v142
      %v248 = vpop.f32.mrb[0].mxu0
      %v249 = vadd.f32 %v174, %v248
      %v250 = vpop.f32.mrb[0].mxu0
      %251 = vmatprep.mubr.f32.mxu0 %v180
      %252 = vmatmul.mubr.f32.gmra.mrb[0].mxu0 %v144
      %v253 = vpop.f32.mrb[0].mxu0
      %v254 = vadd.f32 %v174, %v253
      %v255 = vpop.f32.mrb[0].mxu0
      %256 = vdwg.mxu0
      %v257 = vld [vmem:[%s1 + $0xc8] sm:$0xff]
      %v258 = vld [vmem:[%s1 + $0xd0] sm:$0xff]
      %v259 = vld [vmem:[%s1 + $0xd8] sm:$0xff]
      %v260 = vld [vmem:[%s1 + $0xe0] sm:$0xff]
      %vm261 = vcmask 261120
      %v263 = vsel %vm261, %v249, 0
      %v266 = vsel %vm261, %v254, 0
      %268 = vmatprep.subr.mxu0 0.0
      %269 = vmatpush1.msra.mxu0 %v257
      %270 = vmatprep.subr.mxu0 0.0
      %271 = vmatpush1.msra.mxu0 %v258
      %272 = vmatprep.subr.mxu0 0.0
      %273 = vmatpush1.msra.mxu0 %v259
      %274 = vmatprep.subr.mxu0 0.0
      %275 = vmatpush1.msra.mxu0 %v260
      %276 = vmatprep.subr.mxu0 0.0
      %277 = vmatpush1.msra.mxu0 0.0
      %278 = vmatprep.subr.mxu0 0.0
      %279 = vmatpush1.msra.mxu0 0.0
      %280 = vmatprep.subr.mxu0 0.0
      %281 = vmatpush1.msra.mxu0 0.0
      %282 = vmatprep.subr.mxu0 0.0
      %283 = vmatpush1.msra.mxu0 0.0
      %284 = vmatprep.subr.mxu0 0.0
      %285 = vmatpush1.msra.mxu0 0.0
      %286 = vmatprep.subr.mxu0 0.0
      %287 = vmatpush1.msra.mxu0 0.0
      %288 = vmatprep.subr.mxu0 0.0
      %289 = vmatpush1.msra.mxu0 0.0
      %290 = vmatprep.subr.mxu0 0.0
      %291 = vmatpush1.msra.mxu0 0.0
      %292 = vmatprep.subr.mxu0 0.0
      %293 = vmatpush1.msra.mxu0 0.0
      %294 = vmatprep.subr.mxu0 0.0
      %295 = vmatpush1.msra.mxu0 0.0
      %296 = vmatprep.subr.mxu0 0.0
      %297 = vmatpush1.msra.mxu0 0.0
      %298 = vmatprep.subr.mxu0 0.0
      %299 = vmatpush1.msra.mxu0 0.0
      %300 = vmatprep.subr.mxu0 0.0
      %301 = vmatpush1.msra.mxu0 0.0
      %302 = vmatprep.subr.mxu0 0.0
      %303 = vmatpush1.msra.mxu0 0.0
      %304 = vmatprep.subr.mxu0 0.0
      %305 = vmatpush1.msra.mxu0 0.0
      %306 = vmatprep.subr.mxu0 0.0
      %307 = vmatpush1.msra.mxu0 0.0
      %308 = vmatprep.subr.mxu0 0.0
      %309 = vmatpush1.msra.mxu0 0.0
      %310 = vmatprep.subr.mxu0 0.0
      %311 = vmatpush1.msra.mxu0 0.0
      %312 = vmatprep.subr.mxu0 0.0
      %313 = vmatpush1.msra.mxu0 0.0
      %314 = vmatprep.subr.mxu0 0.0
      %315 = vmatpush1.msra.mxu0 0.0
      %316 = vmatprep.subr.mxu0 0.0
      %317 = vmatpush1.msra.mxu0 0.0
      %318 = vmatprep.subr.mxu0 0.0
      %319 = vmatpush1.msra.mxu0 0.0
      %320 = vmatprep.subr.mxu0 0.0
      %321 = vmatpush1.msra.mxu0 0.0
      %322 = vmatprep.subr.mxu0 0.0
      %323 = vmatpush1.msra.mxu0 0.0
      %324 = vmatprep.subr.mxu0 0.0
      %325 = vmatpush1.msra.mxu0 0.0
      %326 = vmatprep.subr.mxu0 0.0
      %327 = vmatpush1.msra.mxu0 0.0
      %328 = vmatprep.subr.mxu0 0.0
      %329 = vmatpush1.msra.mxu0 0.0
      %330 = vmatprep.subr.mxu0 0.0
      %331 = vmatpush1.msra.mxu0 0.0
      %332 = vmatprep.mubr.f32.mxu0 0.0
      %333 = vmatmul.mubr.f32.gmra.mrb[0].mxu0 %v263
      %v334 = vpop.f32.mrb[0].mxu0
      %v335 = vadd.f32 0.0, %v334
      %v336 = vpop.f32.mrb[0].mxu0
      %337 = vmatprep.mubr.f32.mxu0 0.0
      %338 = vmatmul.mubr.f32.gmra.mrb[0].mxu0 %v266
      %v339 = vpop.f32.mrb[0].mxu0
      %v340 = vadd.f32 0.0, %v339
      %v341 = vpop.f32.mrb[0].mxu0
      %342 = vdwg.mxu0
      %v343 = vld [vmem:[%s1 + $0xe8] sm:$0xff]
      %v344 = vld [vmem:[%s1 + $0xf0] sm:$0xff]
      %v345 = vadd.f32 %v335, %v343
      %v346 = vadd.f32 %v340, %v344
      %v347 = vld [vmem:[%s1 + $0xf8] sm:$0xff]
      %v348 = vld [vmem:[%s1 + $0x100] sm:$0xff]
      %v349 = vld [vmem:[%s1 + $0x108] sm:$0xff]
      %v350 = vld [vmem:[%s1 + $0x110] sm:$0xff]
      %v351 = vld [vmem:[%s1 + $0x118] sm:$0x1]
      %354 = vrot.lane.b32.xlu0 %v345, 96
      %v355 = vpop.permute.xlu0 %354
      %356 = vrot.lane.b32.xlu0 %v346, 96
      %v357 = vpop.permute.xlu0 %356
      %vm358 = vcmask 64512
      %v359 = vsel %vm358, %v345, 0
      %v361 = vsel %vm358, %v346, 0
      %v363 = vsel %vm358, %v355, 0
      %v365 = vsel %vm358, %v357, 0
      %367 = vmatprep.subr.mxu0 0.0
      %368 = vmatpush1.xpose.msra.mxu0 %v363
      %369 = vmatprep.subr.mxu0 0.0
      %370 = vmatpush1.xpose.msra.mxu0 %v365
      %371 = vmatprep.subr.mxu0 0.0
      %372 = vmatpush1.xpose.msra.mxu0 0.0
      %373 = vmatprep.subr.mxu0 0.0
      %374 = vmatpush1.xpose.msra.mxu0 0.0
      %375 = vmatprep.subr.mxu0 0.0
      %376 = vmatpush1.xpose.msra.mxu0 0.0
      %377 = vmatprep.subr.mxu0 0.0
      %378 = vmatpush1.xpose.msra.mxu0 0.0
      %379 = vmatprep.subr.mxu0 0.0
      %380 = vmatpush1.xpose.msra.mxu0 0.0
      %381 = vmatprep.subr.mxu0 0.0
      %382 = vmatpush1.xpose.msra.mxu0 0.0
      %383 = vmatprep.subr.mxu0 0.0
      %384 = vmatpush1.xpose.msra.mxu0 0.0
      %385 = vmatprep.subr.mxu0 0.0
      %386 = vmatpush1.xpose.msra.mxu0 0.0
      %387 = vmatprep.subr.mxu0 0.0
      %388 = vmatpush1.xpose.msra.mxu0 0.0
      %389 = vmatprep.subr.mxu0 0.0
      %390 = vmatpush1.xpose.msra.mxu0 0.0
      %391 = vmatprep.subr.mxu0 0.0
      %392 = vmatpush1.xpose.msra.mxu0 0.0
      %393 = vmatprep.subr.mxu0 0.0
      %394 = vmatpush1.xpose.msra.mxu0 0.0
      %395 = vmatprep.subr.mxu0 0.0
      %396 = vmatpush1.xpose.msra.mxu0 0.0
      %397 = vmatprep.subr.mxu0 0.0
      %398 = vmatpush1.xpose.msra.mxu0 0.0
      %399 = vmatprep.subr.mxu0 0.0
      %400 = vmatpush1.xpose.msra.mxu0 0.0
      %401 = vmatprep.subr.mxu0 0.0
      %402 = vmatpush1.xpose.msra.mxu0 0.0
      %403 = vmatprep.subr.mxu0 0.0
      %404 = vmatpush1.xpose.msra.mxu0 0.0
      %405 = vmatprep.subr.mxu0 0.0
      %406 = vmatpush1.xpose.msra.mxu0 0.0
      %407 = vmatprep.subr.mxu0 0.0
      %408 = vmatpush1.xpose.msra.mxu0 0.0
      %409 = vmatprep.subr.mxu0 0.0
      %410 = vmatpush1.xpose.msra.mxu0 0.0
      %411 = vmatprep.subr.mxu0 0.0
      %412 = vmatpush1.xpose.msra.mxu0 0.0
      %413 = vmatprep.subr.mxu0 0.0
      %414 = vmatpush1.xpose.msra.mxu0 0.0
      %415 = vmatprep.subr.mxu0 0.0
      %416 = vmatpush1.xpose.msra.mxu0 0.0
      %417 = vmatprep.subr.mxu0 0.0
      %418 = vmatpush1.xpose.msra.mxu0 0.0
      %419 = vmatprep.subr.mxu0 0.0
      %420 = vmatpush1.xpose.msra.mxu0 0.0
      %421 = vmatprep.subr.mxu0 0.0
      %422 = vmatpush1.xpose.msra.mxu0 0.0
      %423 = vmatprep.subr.mxu0 0.0
      %424 = vmatpush1.xpose.msra.mxu0 0.0
      %425 = vmatprep.subr.mxu0 0.0
      %426 = vmatpush1.xpose.msra.mxu0 0.0
      %427 = vmatprep.subr.mxu0 0.0
      %428 = vmatpush1.xpose.msra.mxu0 0.0
      %429 = vmatprep.subr.mxu0 0.0
      %430 = vmatpush1.xpose.msra.mxu0 0.0
      %431 = vmatprep.mubr.f32.mxu0 0.0
      %432 = vmatmul.mubr.f32.gmra.mrb[0].mxu0 %v359
      %v433 = vpop.f32.mrb[0].mxu0
      %v434 = vadd.f32 0.0, %v433
      %v435 = vpop.f32.mrb[0].mxu0
      %436 = vmatprep.mubr.f32.mxu0 0.0
      %437 = vmatmul.mubr.f32.gmra.mrb[0].mxu0 %v361
      %v438 = vpop.f32.mrb[0].mxu0
      %v439 = vadd.f32 0.0, %v438
      %v440 = vpop.f32.mrb[0].mxu0
      %441 = vdwg.mxu0
      %vm442 = vcmask 130048
      %v443 = vsel %vm442, %v434, -inf
      %444 = vmax.xlane.f32.xlu0 %v443
      %v445 = vpop.xlane.xlu0 %444
      %v446 = vsel %vm442, %v439, -inf
      %447 = vmax.xlane.f32.xlu0 %v446
      %v448 = vpop.xlane.xlu0 %447
      %v449 = vsub.f32 %v434, %v445
      %v450 = vsub.f32 %v439, %v448
      %v451 = vmul.f32 %v449, 1.442695
      %v452 = vpow.pop %v451
      %v453 = vmul.f32 %v450, 1.442695
      %v454 = vpow.pop %v453
      %v455 = vsel %vm442, %v452, 0.0
      %456 = vadd.xlane.f32.xlu0 %v455
      %v457 = vpop.xlane.xlu0 %456
      %v458 = vsel %vm442, %v454, 0.0
      %459 = vadd.xlane.f32.xlu0 %v458
      %v460 = vpop.xlane.xlu0 %459
      %v461 = vrcp.pop %v457
      %v462 = vrcp.pop %v460
      %v463 = vmul.f32 %v452, %v461
      %v464 = vmul.f32 %v454, %v462
      %465 = vrot.lane.b32.xlu0 %v345, 64
      %v466 = vpop.permute.xlu0 %465
      %467 = vrot.lane.b32.xlu0 %v346, 64
      %v468 = vpop.permute.xlu0 %467
      %v472 = vsel %vm442, %v463, 0
      %v475 = vsel %vm442, %v464, 0
      %477 = vmatprep.subr.mxu0 0.0
      %478 = vmatpush1.msra.mxu0 %v466
      %479 = vmatprep.subr.mxu0 0.0
      %480 = vmatpush1.msra.mxu0 %v468
      %481 = vmatprep.subr.mxu0 0.0
      %482 = vmatpush1.msra.mxu0 0.0
      %483 = vmatprep.subr.mxu0 0.0
      %484 = vmatpush1.msra.mxu0 0.0
      %485 = vmatprep.subr.mxu0 0.0
      %486 = vmatpush1.msra.mxu0 0.0
      %487 = vmatprep.subr.mxu0 0.0
      %488 = vmatpush1.msra.mxu0 0.0
      %489 = vmatprep.subr.mxu0 0.0
      %490 = vmatpush1.msra.mxu0 0.0
      %491 = vmatprep.subr.mxu0 0.0
      %492 = vmatpush1.msra.mxu0 0.0
      %493 = vmatprep.subr.mxu0 0.0
      %494 = vmatpush1.msra.mxu0 0.0
      %495 = vmatprep.subr.mxu0 0.0
      %496 = vmatpush1.msra.mxu0 0.0
      %497 = vmatprep.subr.mxu0 0.0
      %498 = vmatpush1.msra.mxu0 0.0
      %499 = vmatprep.subr.mxu0 0.0
      %500 = vmatpush1.msra.mxu0 0.0
      %501 = vmatprep.subr.mxu0 0.0
      %502 = vmatpush1.msra.mxu0 0.0
      %503 = vmatprep.subr.mxu0 0.0
      %504 = vmatpush1.msra.mxu0 0.0
      %505 = vmatprep.subr.mxu0 0.0
      %506 = vmatpush1.msra.mxu0 0.0
      %507 = vmatprep.subr.mxu0 0.0
      %508 = vmatpush1.msra.mxu0 0.0
      %509 = vmatprep.subr.mxu0 0.0
      %510 = vmatpush1.msra.mxu0 0.0
      %511 = vmatprep.subr.mxu0 0.0
      %512 = vmatpush1.msra.mxu0 0.0
      %513 = vmatprep.subr.mxu0 0.0
      %514 = vmatpush1.msra.mxu0 0.0
      %515 = vmatprep.subr.mxu0 0.0
      %516 = vmatpush1.msra.mxu0 0.0
      %517 = vmatprep.subr.mxu0 0.0
      %518 = vmatpush1.msra.mxu0 0.0
      %519 = vmatprep.subr.mxu0 0.0
      %520 = vmatpush1.msra.mxu0 0.0
      %521 = vmatprep.subr.mxu0 0.0
      %522 = vmatpush1.msra.mxu0 0.0
      %523 = vmatprep.subr.mxu0 0.0
      %524 = vmatpush1.msra.mxu0 0.0
      %525 = vmatprep.subr.mxu0 0.0
      %526 = vmatpush1.msra.mxu0 0.0
      %527 = vmatprep.subr.mxu0 0.0
      %528 = vmatpush1.msra.mxu0 0.0
      %529 = vmatprep.subr.mxu0 0.0
      %530 = vmatpush1.msra.mxu0 0.0
      %531 = vmatprep.subr.mxu0 0.0
      %532 = vmatpush1.msra.mxu0 0.0
      %533 = vmatprep.subr.mxu0 0.0
      %534 = vmatpush1.msra.mxu0 0.0
      %535 = vmatprep.subr.mxu0 0.0
      %536 = vmatpush1.msra.mxu0 0.0
      %537 = vmatprep.subr.mxu0 0.0
      %538 = vmatpush1.msra.mxu0 0.0
      %539 = vmatprep.subr.mxu0 0.0
      %540 = vmatpush1.msra.mxu0 0.0
      %541 = vmatprep.mubr.f32.mxu0 0.0
      %542 = vmatmul.mubr.f32.gmra.mrb[0].mxu0 %v472
      %v543 = vpop.f32.mrb[0].mxu0
      %v544 = vadd.f32 0.0, %v543
      %v545 = vpop.f32.mrb[0].mxu0
      %546 = vmatprep.mubr.f32.mxu0 0.0
      %547 = vmatmul.mubr.f32.gmra.mrb[0].mxu0 %v475
      %v548 = vpop.f32.mrb[0].mxu0
      %v549 = vadd.f32 0.0, %v548
      %v550 = vpop.f32.mrb[0].mxu0
      %551 = vdwg.mxu0
      %v553 = vsel %vm358, %v544, 0
      %v556 = vsel %vm358, %v549, 0
      %558 = vmatprep.subr.mxu0 0.0
      %559 = vmatpush1.msra.mxu0 %v347
      %560 = vmatprep.subr.mxu0 0.0
      %561 = vmatpush1.msra.mxu0 0.0
      %562 = vmatprep.subr.mxu0 0.0
      %563 = vmatpush1.msra.mxu0 0.0
      %564 = vmatprep.subr.mxu0 0.0
      %565 = vmatpush1.msra.mxu0 0.0
      %566 = vmatprep.subr.mxu0 0.0
      %567 = vmatpush1.msra.mxu0 0.0
      %568 = vmatprep.subr.mxu0 0.0
      %569 = vmatpush1.msra.mxu0 0.0
      %570 = vmatprep.subr.mxu0 0.0
      %571 = vmatpush1.msra.mxu0 0.0
      %572 = vmatprep.subr.mxu0 0.0
      %573 = vmatpush1.msra.mxu0 0.0
      %574 = vmatprep.subr.mxu0 0.0
      %575 = vmatpush1.msra.mxu0 0.0
      %576 = vmatprep.subr.mxu0 0.0
      %577 = vmatpush1.msra.mxu0 0.0
      %578 = vmatprep.subr.mxu0 0.0
      %579 = vmatpush1.msra.mxu0 0.0
      %580 = vmatprep.subr.mxu0 0.0
      %581 = vmatpush1.msra.mxu0 0.0
      %582 = vmatprep.subr.mxu0 0.0
      %583 = vmatpush1.msra.mxu0 0.0
      %584 = vmatprep.subr.mxu0 0.0
      %585 = vmatpush1.msra.mxu0 0.0
      %586 = vmatprep.subr.mxu0 0.0
      %587 = vmatpush1.msra.mxu0 0.0
      %588 = vmatprep.subr.mxu0 0.0
      %589 = vmatpush1.msra.mxu0 0.0
      %590 = vmatprep.subr.mxu0 0.0
      %591 = vmatpush1.msra.mxu0 0.0
      %592 = vmatprep.subr.mxu0 0.0
      %593 = vmatpush1.msra.mxu0 0.0
      %594 = vmatprep.subr.mxu0 0.0
      %595 = vmatpush1.msra.mxu0 0.0
      %596 = vmatprep.subr.mxu0 0.0
      %597 = vmatpush1.msra.mxu0 0.0
      %598 = vmatprep.subr.mxu0 0.0
      %599 = vmatpush1.msra.mxu0 0.0
      %600 = vmatprep.subr.mxu0 0.0
      %601 = vmatpush1.msra.mxu0 0.0
      %602 = vmatprep.subr.mxu0 0.0
      %603 = vmatpush1.msra.mxu0 0.0
      %604 = vmatprep.subr.mxu0 0.0
      %605 = vmatpush1.msra.mxu0 0.0
      %606 = vmatprep.subr.mxu0 0.0
      %607 = vmatpush1.msra.mxu0 0.0
      %608 = vmatprep.subr.mxu0 0.0
      %609 = vmatpush1.msra.mxu0 0.0
      %610 = vmatprep.subr.mxu0 0.0
      %611 = vmatpush1.msra.mxu0 0.0
      %612 = vmatprep.subr.mxu0 0.0
      %613 = vmatpush1.msra.mxu0 0.0
      %614 = vmatprep.subr.mxu0 0.0
      %615 = vmatpush1.msra.mxu0 0.0
      %616 = vmatprep.subr.mxu0 0.0
      %617 = vmatpush1.msra.mxu0 0.0
      %618 = vmatprep.subr.mxu0 0.0
      %619 = vmatpush1.msra.mxu0 0.0
      %620 = vmatprep.subr.mxu0 0.0
      %621 = vmatpush1.msra.mxu0 0.0
      %622 = vmatprep.mubr.f32.mxu0 0.0
      %623 = vmatmul.mubr.f32.gmra.mrb[0].mxu0 %v553
      %v624 = vpop.f32.mrb[0].mxu0
      %v625 = vadd.f32 0.0, %v624
      %v626 = vpop.f32.mrb[0].mxu0
      %627 = vmatprep.mubr.f32.mxu0 0.0
      %628 = vmatmul.mubr.f32.gmra.mrb[0].mxu0 %v556
      %v629 = vpop.f32.mrb[0].mxu0
      %v630 = vadd.f32 0.0, %v629
      %v631 = vpop.f32.mrb[0].mxu0
      %632 = vdwg.mxu0
      %633 = vrot.lane.b32.xlu0 %v345, 120
      %v634 = vpop.permute.xlu0 %633
      %635 = vrot.lane.b32.xlu0 %v346, 120
      %v636 = vpop.permute.xlu0 %635
      %637 = vrot.lane.b32.xlu0 %v345, 88
      %v638 = vpop.permute.xlu0 %637
      %639 = vrot.lane.b32.xlu0 %v346, 88
      %v640 = vpop.permute.xlu0 %639
      %v641 = vsel %vm358, %v634, 0
      %v643 = vsel %vm358, %v636, 0
      %v645 = vsel %vm358, %v638, 0
      %v647 = vsel %vm358, %v640, 0
      %649 = vmatprep.subr.mxu0 0.0
      %650 = vmatpush1.xpose.msra.mxu0 %v645
      %651 = vmatprep.subr.mxu0 0.0
      %652 = vmatpush1.xpose.msra.mxu0 %v647
      %653 = vmatprep.subr.mxu0 0.0
      %654 = vmatpush1.xpose.msra.mxu0 0.0
      %655 = vmatprep.subr.mxu0 0.0
      %656 = vmatpush1.xpose.msra.mxu0 0.0
      %657 = vmatprep.subr.mxu0 0.0
      %658 = vmatpush1.xpose.msra.mxu0 0.0
      %659 = vmatprep.subr.mxu0 0.0
      %660 = vmatpush1.xpose.msra.mxu0 0.0
      %661 = vmatprep.subr.mxu0 0.0
      %662 = vmatpush1.xpose.msra.mxu0 0.0
      %663 = vmatprep.subr.mxu0 0.0
      %664 = vmatpush1.xpose.msra.mxu0 0.0
      %665 = vmatprep.subr.mxu0 0.0
      %666 = vmatpush1.xpose.msra.mxu0 0.0
      %667 = vmatprep.subr.mxu0 0.0
      %668 = vmatpush1.xpose.msra.mxu0 0.0
      %669 = vmatprep.subr.mxu0 0.0
      %670 = vmatpush1.xpose.msra.mxu0 0.0
      %671 = vmatprep.subr.mxu0 0.0
      %672 = vmatpush1.xpose.msra.mxu0 0.0
      %673 = vmatprep.subr.mxu0 0.0
      %674 = vmatpush1.xpose.msra.mxu0 0.0
      %675 = vmatprep.subr.mxu0 0.0
      %676 = vmatpush1.xpose.msra.mxu0 0.0
      %677 = vmatprep.subr.mxu0 0.0
      %678 = vmatpush1.xpose.msra.mxu0 0.0
      %679 = vmatprep.subr.mxu0 0.0
      %680 = vmatpush1.xpose.msra.mxu0 0.0
      %681 = vmatprep.subr.mxu0 0.0
      %682 = vmatpush1.xpose.msra.mxu0 0.0
      %683 = vmatprep.subr.mxu0 0.0
      %684 = vmatpush1.xpose.msra.mxu0 0.0
      %685 = vmatprep.subr.mxu0 0.0
      %686 = vmatpush1.xpose.msra.mxu0 0.0
      %687 = vmatprep.subr.mxu0 0.0
      %688 = vmatpush1.xpose.msra.mxu0 0.0
      %689 = vmatprep.subr.mxu0 0.0
      %690 = vmatpush1.xpose.msra.mxu0 0.0
      %691 = vmatprep.subr.mxu0 0.0
      %692 = vmatpush1.xpose.msra.mxu0 0.0
      %693 = vmatprep.subr.mxu0 0.0
      %694 = vmatpush1.xpose.msra.mxu0 0.0
      %695 = vmatprep.subr.mxu0 0.0
      %696 = vmatpush1.xpose.msra.mxu0 0.0
      %697 = vmatprep.subr.mxu0 0.0
      %698 = vmatpush1.xpose.msra.mxu0 0.0
      %699 = vmatprep.subr.mxu0 0.0
      %700 = vmatpush1.xpose.msra.mxu0 0.0
      %701 = vmatprep.subr.mxu0 0.0
      %702 = vmatpush1.xpose.msra.mxu0 0.0
      %703 = vmatprep.subr.mxu0 0.0
      %704 = vmatpush1.xpose.msra.mxu0 0.0
      %705 = vmatprep.subr.mxu0 0.0
      %706 = vmatpush1.xpose.msra.mxu0 0.0
      %707 = vmatprep.subr.mxu0 0.0
      %708 = vmatpush1.xpose.msra.mxu0 0.0
      %709 = vmatprep.subr.mxu0 0.0
      %710 = vmatpush1.xpose.msra.mxu0 0.0
      %711 = vmatprep.subr.mxu0 0.0
      %712 = vmatpush1.xpose.msra.mxu0 0.0
      %713 = vmatprep.mubr.f32.mxu0 0.0
      %714 = vmatmul.mubr.f32.gmra.mrb[0].mxu0 %v641
      %v715 = vpop.f32.mrb[0].mxu0
      %v716 = vadd.f32 0.0, %v715
      %v717 = vpop.f32.mrb[0].mxu0
      %718 = vmatprep.mubr.f32.mxu0 0.0
      %719 = vmatmul.mubr.f32.gmra.mrb[0].mxu0 %v643
      %v720 = vpop.f32.mrb[0].mxu0
      %v721 = vadd.f32 0.0, %v720
      %v722 = vpop.f32.mrb[0].mxu0
      %723 = vdwg.mxu0
      %v724 = vsel %vm442, %v716, -inf
      %725 = vmax.xlane.f32.xlu0 %v724
      %v726 = vpop.xlane.xlu0 %725
      %v727 = vsel %vm442, %v721, -inf
      %728 = vmax.xlane.f32.xlu0 %v727
      %v729 = vpop.xlane.xlu0 %728
      %v730 = vsub.f32 %v716, %v726
      %v731 = vsub.f32 %v721, %v729
      %v732 = vmul.f32 %v730, 1.442695
      %v733 = vpow.pop %v732
      %v734 = vmul.f32 %v731, 1.442695
      %v735 = vpow.pop %v734
      %v736 = vsel %vm442, %v733, 0.0
      %737 = vadd.xlane.f32.xlu0 %v736
      %v738 = vpop.xlane.xlu0 %737
      %v739 = vsel %vm442, %v735, 0.0
      %740 = vadd.xlane.f32.xlu0 %v739
      %v741 = vpop.xlane.xlu0 %740
      %v742 = vrcp.pop %v738
      %v743 = vrcp.pop %v741
      %v744 = vmul.f32 %v733, %v742
      %v745 = vmul.f32 %v735, %v743
      %746 = vrot.lane.b32.xlu0 %v345, 56
      %v747 = vpop.permute.xlu0 %746
      %748 = vrot.lane.b32.xlu0 %v346, 56
      %v749 = vpop.permute.xlu0 %748
      %v753 = vsel %vm442, %v744, 0
      %v756 = vsel %vm442, %v745, 0
      %758 = vmatprep.subr.mxu0 0.0
      %759 = vmatpush1.msra.mxu0 %v747
      %760 = vmatprep.subr.mxu0 0.0
      %761 = vmatpush1.msra.mxu0 %v749
      %762 = vmatprep.subr.mxu0 0.0
      %763 = vmatpush1.msra.mxu0 0.0
      %764 = vmatprep.subr.mxu0 0.0
      %765 = vmatpush1.msra.mxu0 0.0
      %766 = vmatprep.subr.mxu0 0.0
      %767 = vmatpush1.msra.mxu0 0.0
      %768 = vmatprep.subr.mxu0 0.0
      %769 = vmatpush1.msra.mxu0 0.0
      %770 = vmatprep.subr.mxu0 0.0
      %771 = vmatpush1.msra.mxu0 0.0
      %772 = vmatprep.subr.mxu0 0.0
      %773 = vmatpush1.msra.mxu0 0.0
      %774 = vmatprep.subr.mxu0 0.0
      %775 = vmatpush1.msra.mxu0 0.0
      %776 = vmatprep.subr.mxu0 0.0
      %777 = vmatpush1.msra.mxu0 0.0
      %778 = vmatprep.subr.mxu0 0.0
      %779 = vmatpush1.msra.mxu0 0.0
      %780 = vmatprep.subr.mxu0 0.0
      %781 = vmatpush1.msra.mxu0 0.0
      %782 = vmatprep.subr.mxu0 0.0
      %783 = vmatpush1.msra.mxu0 0.0
      %784 = vmatprep.subr.mxu0 0.0
      %785 = vmatpush1.msra.mxu0 0.0
      %786 = vmatprep.subr.mxu0 0.0
      %787 = vmatpush1.msra.mxu0 0.0
      %788 = vmatprep.subr.mxu0 0.0
      %789 = vmatpush1.msra.mxu0 0.0
      %790 = vmatprep.subr.mxu0 0.0
      %791 = vmatpush1.msra.mxu0 0.0
      %792 = vmatprep.subr.mxu0 0.0
      %793 = vmatpush1.msra.mxu0 0.0
      %794 = vmatprep.subr.mxu0 0.0
      %795 = vmatpush1.msra.mxu0 0.0
      %796 = vmatprep.subr.mxu0 0.0
      %797 = vmatpush1.msra.mxu0 0.0
      %798 = vmatprep.subr.mxu0 0.0
      %799 = vmatpush1.msra.mxu0 0.0
      %800 = vmatprep.subr.mxu0 0.0
      %801 = vmatpush1.msra.mxu0 0.0
      %802 = vmatprep.subr.mxu0 0.0
      %803 = vmatpush1.msra.mxu0 0.0
      %804 = vmatprep.subr.mxu0 0.0
      %805 = vmatpush1.msra.mxu0 0.0
      %806 = vmatprep.subr.mxu0 0.0
      %807 = vmatpush1.msra.mxu0 0.0
      %808 = vmatprep.subr.mxu0 0.0
      %809 = vmatpush1.msra.mxu0 0.0
      %810 = vmatprep.subr.mxu0 0.0
      %811 = vmatpush1.msra.mxu0 0.0
      %812 = vmatprep.subr.mxu0 0.0
      %813 = vmatpush1.msra.mxu0 0.0
      %814 = vmatprep.subr.mxu0 0.0
      %815 = vmatpush1.msra.mxu0 0.0
      %816 = vmatprep.subr.mxu0 0.0
      %817 = vmatpush1.msra.mxu0 0.0
      %818 = vmatprep.subr.mxu0 0.0
      %819 = vmatpush1.msra.mxu0 0.0
      %820 = vmatprep.subr.mxu0 0.0
      %821 = vmatpush1.msra.mxu0 0.0
      %822 = vmatprep.mubr.f32.mxu0 0.0
      %823 = vmatmul.mubr.f32.gmra.mrb[0].mxu0 %v753
      %v824 = vpop.f32.mrb[0].mxu0
      %v825 = vadd.f32 0.0, %v824
      %v826 = vpop.f32.mrb[0].mxu0
      %827 = vmatprep.mubr.f32.mxu0 0.0
      %828 = vmatmul.mubr.f32.gmra.mrb[0].mxu0 %v756
      %v829 = vpop.f32.mrb[0].mxu0
      %v830 = vadd.f32 0.0, %v829
      %v831 = vpop.f32.mrb[0].mxu0
      %832 = vdwg.mxu0
      %v834 = vsel %vm358, %v825, 0
      %v837 = vsel %vm358, %v830, 0
      %839 = vmatprep.subr.mxu0 0.0
      %840 = vmatpush1.msra.mxu0 %v348
      %841 = vmatprep.subr.mxu0 0.0
      %842 = vmatpush1.msra.mxu0 0.0
      %843 = vmatprep.subr.mxu0 0.0
      %844 = vmatpush1.msra.mxu0 0.0
      %845 = vmatprep.subr.mxu0 0.0
      %846 = vmatpush1.msra.mxu0 0.0
      %847 = vmatprep.subr.mxu0 0.0
      %848 = vmatpush1.msra.mxu0 0.0
      %849 = vmatprep.subr.mxu0 0.0
      %850 = vmatpush1.msra.mxu0 0.0
      %851 = vmatprep.subr.mxu0 0.0
      %852 = vmatpush1.msra.mxu0 0.0
      %853 = vmatprep.subr.mxu0 0.0
      %854 = vmatpush1.msra.mxu0 0.0
      %855 = vmatprep.subr.mxu0 0.0
      %856 = vmatpush1.msra.mxu0 0.0
      %857 = vmatprep.subr.mxu0 0.0
      %858 = vmatpush1.msra.mxu0 0.0
      %859 = vmatprep.subr.mxu0 0.0
      %860 = vmatpush1.msra.mxu0 0.0
      %861 = vmatprep.subr.mxu0 0.0
      %862 = vmatpush1.msra.mxu0 0.0
      %863 = vmatprep.subr.mxu0 0.0
      %864 = vmatpush1.msra.mxu0 0.0
      %865 = vmatprep.subr.mxu0 0.0
      %866 = vmatpush1.msra.mxu0 0.0
      %867 = vmatprep.subr.mxu0 0.0
      %868 = vmatpush1.msra.mxu0 0.0
      %869 = vmatprep.subr.mxu0 0.0
      %870 = vmatpush1.msra.mxu0 0.0
      %871 = vmatprep.subr.mxu0 0.0
      %872 = vmatpush1.msra.mxu0 0.0
      %873 = vmatprep.subr.mxu0 0.0
      %874 = vmatpush1.msra.mxu0 0.0
      %875 = vmatprep.subr.mxu0 0.0
      %876 = vmatpush1.msra.mxu0 0.0
      %877 = vmatprep.subr.mxu0 0.0
      %878 = vmatpush1.msra.mxu0 0.0
      %879 = vmatprep.subr.mxu0 0.0
      %880 = vmatpush1.msra.mxu0 0.0
      %881 = vmatprep.subr.mxu0 0.0
      %882 = vmatpush1.msra.mxu0 0.0
      %883 = vmatprep.subr.mxu0 0.0
      %884 = vmatpush1.msra.mxu0 0.0
      %885 = vmatprep.subr.mxu0 0.0
      %886 = vmatpush1.msra.mxu0 0.0
      %887 = vmatprep.subr.mxu0 0.0
      %888 = vmatpush1.msra.mxu0 0.0
      %889 = vmatprep.subr.mxu0 0.0
      %890 = vmatpush1.msra.mxu0 0.0
      %891 = vmatprep.subr.mxu0 0.0
      %892 = vmatpush1.msra.mxu0 0.0
      %893 = vmatprep.subr.mxu0 0.0
      %894 = vmatpush1.msra.mxu0 0.0
      %895 = vmatprep.subr.mxu0 0.0
      %896 = vmatpush1.msra.mxu0 0.0
      %897 = vmatprep.subr.mxu0 0.0
      %898 = vmatpush1.msra.mxu0 0.0
      %899 = vmatprep.subr.mxu0 0.0
      %900 = vmatpush1.msra.mxu0 0.0
      %901 = vmatprep.subr.mxu0 0.0
      %902 = vmatpush1.msra.mxu0 0.0
      %903 = vmatprep.mubr.f32.mxu0 0.0
      %904 = vmatmul.mubr.f32.gmra.mrb[0].mxu0 %v834
      %v905 = vpop.f32.mrb[0].mxu0
      %v906 = vadd.f32 0.0, %v905
      %v907 = vpop.f32.mrb[0].mxu0
      %908 = vmatprep.mubr.f32.mxu0 0.0
      %909 = vmatmul.mubr.f32.gmra.mrb[0].mxu0 %v837
      %v910 = vpop.f32.mrb[0].mxu0
      %v911 = vadd.f32 0.0, %v910
      %v912 = vpop.f32.mrb[0].mxu0
      %913 = vdwg.mxu0
      %v914 = vadd.f32 %v625, %v906
      %v915 = vadd.f32 %v630, %v911
      %916 = vrot.lane.b32.xlu0 %v345, 112
      %v917 = vpop.permute.xlu0 %916
      %918 = vrot.lane.b32.xlu0 %v346, 112
      %v919 = vpop.permute.xlu0 %918
      %920 = vrot.lane.b32.xlu0 %v345, 80
      %v921 = vpop.permute.xlu0 %920
      %922 = vrot.lane.b32.xlu0 %v346, 80
      %v923 = vpop.permute.xlu0 %922
      %v924 = vsel %vm358, %v917, 0
      %v926 = vsel %vm358, %v919, 0
      %v928 = vsel %vm358, %v921, 0
      %v930 = vsel %vm358, %v923, 0
      %932 = vmatprep.subr.mxu0 0.0
      %933 = vmatpush1.xpose.msra.mxu0 %v928
      %934 = vmatprep.subr.mxu0 0.0
      %935 = vmatpush1.xpose.msra.mxu0 %v930
      %936 = vmatprep.subr.mxu0 0.0
      %937 = vmatpush1.xpose.msra.mxu0 0.0
      %938 = vmatprep.subr.mxu0 0.0
      %939 = vmatpush1.xpose.msra.mxu0 0.0
      %940 = vmatprep.subr.mxu0 0.0
      %941 = vmatpush1.xpose.msra.mxu0 0.0
      %942 = vmatprep.subr.mxu0 0.0
      %943 = vmatpush1.xpose.msra.mxu0 0.0
      %944 = vmatprep.subr.mxu0 0.0
      %945 = vmatpush1.xpose.msra.mxu0 0.0
      %946 = vmatprep.subr.mxu0 0.0
      %947 = vmatpush1.xpose.msra.mxu0 0.0
      %948 = vmatprep.subr.mxu0 0.0
      %949 = vmatpush1.xpose.msra.mxu0 0.0
      %950 = vmatprep.subr.mxu0 0.0
      %951 = vmatpush1.xpose.msra.mxu0 0.0
      %952 = vmatprep.subr.mxu0 0.0
      %953 = vmatpush1.xpose.msra.mxu0 0.0
      %954 = vmatprep.subr.mxu0 0.0
      %955 = vmatpush1.xpose.msra.mxu0 0.0
      %956 = vmatprep.subr.mxu0 0.0
      %957 = vmatpush1.xpose.msra.mxu0 0.0
      %958 = vmatprep.subr.mxu0 0.0
      %959 = vmatpush1.xpose.msra.mxu0 0.0
      %960 = vmatprep.subr.mxu0 0.0
      %961 = vmatpush1.xpose.msra.mxu0 0.0
      %962 = vmatprep.subr.mxu0 0.0
      %963 = vmatpush1.xpose.msra.mxu0 0.0
      %964 = vmatprep.subr.mxu0 0.0
      %965 = vmatpush1.xpose.msra.mxu0 0.0
      %966 = vmatprep.subr.mxu0 0.0
      %967 = vmatpush1.xpose.msra.mxu0 0.0
      %968 = vmatprep.subr.mxu0 0.0
      %969 = vmatpush1.xpose.msra.mxu0 0.0
      %970 = vmatprep.subr.mxu0 0.0
      %971 = vmatpush1.xpose.msra.mxu0 0.0
      %972 = vmatprep.subr.mxu0 0.0
      %973 = vmatpush1.xpose.msra.mxu0 0.0
      %974 = vmatprep.subr.mxu0 0.0
      %975 = vmatpush1.xpose.msra.mxu0 0.0
      %976 = vmatprep.subr.mxu0 0.0
      %977 = vmatpush1.xpose.msra.mxu0 0.0
      %978 = vmatprep.subr.mxu0 0.0
      %979 = vmatpush1.xpose.msra.mxu0 0.0
      %980 = vmatprep.subr.mxu0 0.0
      %981 = vmatpush1.xpose.msra.mxu0 0.0
      %982 = vmatprep.subr.mxu0 0.0
      %983 = vmatpush1.xpose.msra.mxu0 0.0
      %984 = vmatprep.subr.mxu0 0.0
      %985 = vmatpush1.xpose.msra.mxu0 0.0
      %986 = vmatprep.subr.mxu0 0.0
      %987 = vmatpush1.xpose.msra.mxu0 0.0
      %988 = vmatprep.subr.mxu0 0.0
      %989 = vmatpush1.xpose.msra.mxu0 0.0
      %990 = vmatprep.subr.mxu0 0.0
      %991 = vmatpush1.xpose.msra.mxu0 0.0
      %992 = vmatprep.subr.mxu0 0.0
      %993 = vmatpush1.xpose.msra.mxu0 0.0
      %994 = vmatprep.subr.mxu0 0.0
      %995 = vmatpush1.xpose.msra.mxu0 0.0
      %996 = vmatprep.mubr.f32.mxu0 0.0
      %997 = vmatmul.mubr.f32.gmra.mrb[0].mxu0 %v924
      %v998 = vpop.f32.mrb[0].mxu0
      %v999 = vadd.f32 0.0, %v998
      %v1000 = vpop.f32.mrb[0].mxu0
      %1001 = vmatprep.mubr.f32.mxu0 0.0
      %1002 = vmatmul.mubr.f32.gmra.mrb[0].mxu0 %v926
      %v1003 = vpop.f32.mrb[0].mxu0
      %v1004 = vadd.f32 0.0, %v1003
      %v1005 = vpop.f32.mrb[0].mxu0
      %1006 = vdwg.mxu0
      %v1007 = vsel %vm442, %v999, -inf
      %1008 = vmax.xlane.f32.xlu0 %v1007
      %v1009 = vpop.xlane.xlu0 %1008
      %v1010 = vsel %vm442, %v1004, -inf
      %1011 = vmax.xlane.f32.xlu0 %v1010
      %v1012 = vpop.xlane.xlu0 %1011
      %v1013 = vsub.f32 %v999, %v1009
      %v1014 = vsub.f32 %v1004, %v1012
      %v1015 = vmul.f32 %v1013, 1.442695
      %v1016 = vpow.pop %v1015
      %v1017 = vmul.f32 %v1014, 1.442695
      %v1018 = vpow.pop %v1017
      %v1019 = vsel %vm442, %v1016, 0.0
      %1020 = vadd.xlane.f32.xlu0 %v1019
      %v1021 = vpop.xlane.xlu0 %1020
      %v1022 = vsel %vm442, %v1018, 0.0
      %1023 = vadd.xlane.f32.xlu0 %v1022
      %v1024 = vpop.xlane.xlu0 %1023
      %v1025 = vrcp.pop %v1021
      %v1026 = vrcp.pop %v1024
      %v1027 = vmul.f32 %v1016, %v1025
      %v1028 = vmul.f32 %v1018, %v1026
      %1029 = vrot.lane.b32.xlu0 %v345, 48
      %v1030 = vpop.permute.xlu0 %1029
      %1031 = vrot.lane.b32.xlu0 %v346, 48
      %v1032 = vpop.permute.xlu0 %1031
      %v1036 = vsel %vm442, %v1027, 0
      %v1039 = vsel %vm442, %v1028, 0
      %1041 = vmatprep.subr.mxu0 0.0
      %1042 = vmatpush1.msra.mxu0 %v1030
      %1043 = vmatprep.subr.mxu0 0.0
      %1044 = vmatpush1.msra.mxu0 %v1032
      %1045 = vmatprep.subr.mxu0 0.0
      %1046 = vmatpush1.msra.mxu0 0.0
      %1047 = vmatprep.subr.mxu0 0.0
      %1048 = vmatpush1.msra.mxu0 0.0
      %1049 = vmatprep.subr.mxu0 0.0
      %1050 = vmatpush1.msra.mxu0 0.0
      %1051 = vmatprep.subr.mxu0 0.0
      %1052 = vmatpush1.msra.mxu0 0.0
      %1053 = vmatprep.subr.mxu0 0.0
      %1054 = vmatpush1.msra.mxu0 0.0
      %1055 = vmatprep.subr.mxu0 0.0
      %1056 = vmatpush1.msra.mxu0 0.0
      %1057 = vmatprep.subr.mxu0 0.0
      %1058 = vmatpush1.msra.mxu0 0.0
      %1059 = vmatprep.subr.mxu0 0.0
      %1060 = vmatpush1.msra.mxu0 0.0
      %1061 = vmatprep.subr.mxu0 0.0
      %1062 = vmatpush1.msra.mxu0 0.0
      %1063 = vmatprep.subr.mxu0 0.0
      %1064 = vmatpush1.msra.mxu0 0.0
      %1065 = vmatprep.subr.mxu0 0.0
      %1066 = vmatpush1.msra.mxu0 0.0
      %1067 = vmatprep.subr.mxu0 0.0
      %1068 = vmatpush1.msra.mxu0 0.0
      %1069 = vmatprep.subr.mxu0 0.0
      %1070 = vmatpush1.msra.mxu0 0.0
      %1071 = vmatprep.subr.mxu0 0.0
      %1072 = vmatpush1.msra.mxu0 0.0
      %1073 = vmatprep.subr.mxu0 0.0
      %1074 = vmatpush1.msra.mxu0 0.0
      %1075 = vmatprep.subr.mxu0 0.0
      %1076 = vmatpush1.msra.mxu0 0.0
      %1077 = vmatprep.subr.mxu0 0.0
      %1078 = vmatpush1.msra.mxu0 0.0
      %1079 = vmatprep.subr.mxu0 0.0
      %1080 = vmatpush1.msra.mxu0 0.0
      %1081 = vmatprep.subr.mxu0 0.0
      %1082 = vmatpush1.msra.mxu0 0.0
      %1083 = vmatprep.subr.mxu0 0.0
      %1084 = vmatpush1.msra.mxu0 0.0
      %1085 = vmatprep.subr.mxu0 0.0
      %1086 = vmatpush1.msra.mxu0 0.0
      %1087 = vmatprep.subr.mxu0 0.0
      %1088 = vmatpush1.msra.mxu0 0.0
      %1089 = vmatprep.subr.mxu0 0.0
      %1090 = vmatpush1.msra.mxu0 0.0
      %1091 = vmatprep.subr.mxu0 0.0
      %1092 = vmatpush1.msra.mxu0 0.0
      %1093 = vmatprep.subr.mxu0 0.0
      %1094 = vmatpush1.msra.mxu0 0.0
      %1095 = vmatprep.subr.mxu0 0.0
      %1096 = vmatpush1.msra.mxu0 0.0
      %1097 = vmatprep.subr.mxu0 0.0
      %1098 = vmatpush1.msra.mxu0 0.0
      %1099 = vmatprep.subr.mxu0 0.0
      %1100 = vmatpush1.msra.mxu0 0.0
      %1101 = vmatprep.subr.mxu0 0.0
      %1102 = vmatpush1.msra.mxu0 0.0
      %1103 = vmatprep.subr.mxu0 0.0
      %1104 = vmatpush1.msra.mxu0 0.0
      %1105 = vmatprep.mubr.f32.mxu0 0.0
      %1106 = vmatmul.mubr.f32.gmra.mrb[0].mxu0 %v1036
      %v1107 = vpop.f32.mrb[0].mxu0
      %v1108 = vadd.f32 0.0, %v1107
      %v1109 = vpop.f32.mrb[0].mxu0
      %1110 = vmatprep.mubr.f32.mxu0 0.0
      %1111 = vmatmul.mubr.f32.gmra.mrb[0].mxu0 %v1039
      %v1112 = vpop.f32.mrb[0].mxu0
      %v1113 = vadd.f32 0.0, %v1112
      %v1114 = vpop.f32.mrb[0].mxu0
      %1115 = vdwg.mxu0
      %v1117 = vsel %vm358, %v1108, 0
      %v1120 = vsel %vm358, %v1113, 0
      %1122 = vmatprep.subr.mxu0 0.0
      %1123 = vmatpush1.msra.mxu0 %v349
      %1124 = vmatprep.subr.mxu0 0.0
      %1125 = vmatpush1.msra.mxu0 0.0
      %1126 = vmatprep.subr.mxu0 0.0
      %1127 = vmatpush1.msra.mxu0 0.0
      %1128 = vmatprep.subr.mxu0 0.0
      %1129 = vmatpush1.msra.mxu0 0.0
      %1130 = vmatprep.subr.mxu0 0.0
      %1131 = vmatpush1.msra.mxu0 0.0
      %1132 = vmatprep.subr.mxu0 0.0
      %1133 = vmatpush1.msra.mxu0 0.0
      %1134 = vmatprep.subr.mxu0 0.0
      %1135 = vmatpush1.msra.mxu0 0.0
      %1136 = vmatprep.subr.mxu0 0.0
      %1137 = vmatpush1.msra.mxu0 0.0
      %1138 = vmatprep.subr.mxu0 0.0
      %1139 = vmatpush1.msra.mxu0 0.0
      %1140 = vmatprep.subr.mxu0 0.0
      %1141 = vmatpush1.msra.mxu0 0.0
      %1142 = vmatprep.subr.mxu0 0.0
      %1143 = vmatpush1.msra.mxu0 0.0
      %1144 = vmatprep.subr.mxu0 0.0
      %1145 = vmatpush1.msra.mxu0 0.0
      %1146 = vmatprep.subr.mxu0 0.0
      %1147 = vmatpush1.msra.mxu0 0.0
      %1148 = vmatprep.subr.mxu0 0.0
      %1149 = vmatpush1.msra.mxu0 0.0
      %1150 = vmatprep.subr.mxu0 0.0
      %1151 = vmatpush1.msra.mxu0 0.0
      %1152 = vmatprep.subr.mxu0 0.0
      %1153 = vmatpush1.msra.mxu0 0.0
      %1154 = vmatprep.subr.mxu0 0.0
      %1155 = vmatpush1.msra.mxu0 0.0
      %1156 = vmatprep.subr.mxu0 0.0
      %1157 = vmatpush1.msra.mxu0 0.0
      %1158 = vmatprep.subr.mxu0 0.0
      %1159 = vmatpush1.msra.mxu0 0.0
      %1160 = vmatprep.subr.mxu0 0.0
      %1161 = vmatpush1.msra.mxu0 0.0
      %1162 = vmatprep.subr.mxu0 0.0
      %1163 = vmatpush1.msra.mxu0 0.0
      %1164 = vmatprep.subr.mxu0 0.0
      %1165 = vmatpush1.msra.mxu0 0.0
      %1166 = vmatprep.subr.mxu0 0.0
      %1167 = vmatpush1.msra.mxu0 0.0
      %1168 = vmatprep.subr.mxu0 0.0
      %1169 = vmatpush1.msra.mxu0 0.0
      %1170 = vmatprep.subr.mxu0 0.0
      %1171 = vmatpush1.msra.mxu0 0.0
      %1172 = vmatprep.subr.mxu0 0.0
      %1173 = vmatpush1.msra.mxu0 0.0
      %1174 = vmatprep.subr.mxu0 0.0
      %1175 = vmatpush1.msra.mxu0 0.0
      %1176 = vmatprep.subr.mxu0 0.0
      %1177 = vmatpush1.msra.mxu0 0.0
      %1178 = vmatprep.subr.mxu0 0.0
      %1179 = vmatpush1.msra.mxu0 0.0
      %1180 = vmatprep.subr.mxu0 0.0
      %1181 = vmatpush1.msra.mxu0 0.0
      %1182 = vmatprep.subr.mxu0 0.0
      %1183 = vmatpush1.msra.mxu0 0.0
      %1184 = vmatprep.subr.mxu0 0.0
      %1185 = vmatpush1.msra.mxu0 0.0
      %1186 = vmatprep.mubr.f32.mxu0 0.0
      %1187 = vmatmul.mubr.f32.gmra.mrb[0].mxu0 %v1117
      %v1188 = vpop.f32.mrb[0].mxu0
      %v1189 = vadd.f32 0.0, %v1188
      %v1190 = vpop.f32.mrb[0].mxu0
      %1191 = vmatprep.mubr.f32.mxu0 0.0
      %1192 = vmatmul.mubr.f32.gmra.mrb[0].mxu0 %v1120
      %v1193 = vpop.f32.mrb[0].mxu0
      %v1194 = vadd.f32 0.0, %v1193
      %v1195 = vpop.f32.mrb[0].mxu0
      %1196 = vdwg.mxu0
      %v1197 = vadd.f32 %v914, %v1189
      %v1198 = vadd.f32 %v915, %v1194
      %1199 = vrot.lane.b32.xlu0 %v345, 104
      %v1200 = vpop.permute.xlu0 %1199
      %1201 = vrot.lane.b32.xlu0 %v346, 104
      %v1202 = vpop.permute.xlu0 %1201
      %1203 = vrot.lane.b32.xlu0 %v345, 72
      %v1204 = vpop.permute.xlu0 %1203
      %1205 = vrot.lane.b32.xlu0 %v346, 72
      %v1206 = vpop.permute.xlu0 %1205
      %v1207 = vsel %vm358, %v1200, 0
      %v1209 = vsel %vm358, %v1202, 0
      %v1211 = vsel %vm358, %v1204, 0
      %v1213 = vsel %vm358, %v1206, 0
      %1215 = vmatprep.subr.mxu0 0.0
      %1216 = vmatpush1.xpose.msra.mxu0 %v1211
      %1217 = vmatprep.subr.mxu0 0.0
      %1218 = vmatpush1.xpose.msra.mxu0 %v1213
      %1219 = vmatprep.subr.mxu0 0.0
      %1220 = vmatpush1.xpose.msra.mxu0 0.0
      %1221 = vmatprep.subr.mxu0 0.0
      %1222 = vmatpush1.xpose.msra.mxu0 0.0
      %1223 = vmatprep.subr.mxu0 0.0
      %1224 = vmatpush1.xpose.msra.mxu0 0.0
      %1225 = vmatprep.subr.mxu0 0.0
      %1226 = vmatpush1.xpose.msra.mxu0 0.0
      %1227 = vmatprep.subr.mxu0 0.0
      %1228 = vmatpush1.xpose.msra.mxu0 0.0
      %1229 = vmatprep.subr.mxu0 0.0
      %1230 = vmatpush1.xpose.msra.mxu0 0.0
      %1231 = vmatprep.subr.mxu0 0.0
      %1232 = vmatpush1.xpose.msra.mxu0 0.0
      %1233 = vmatprep.subr.mxu0 0.0
      %1234 = vmatpush1.xpose.msra.mxu0 0.0
      %1235 = vmatprep.subr.mxu0 0.0
      %1236 = vmatpush1.xpose.msra.mxu0 0.0
      %1237 = vmatprep.subr.mxu0 0.0
      %1238 = vmatpush1.xpose.msra.mxu0 0.0
      %1239 = vmatprep.subr.mxu0 0.0
      %1240 = vmatpush1.xpose.msra.mxu0 0.0
      %1241 = vmatprep.subr.mxu0 0.0
      %1242 = vmatpush1.xpose.msra.mxu0 0.0
      %1243 = vmatprep.subr.mxu0 0.0
      %1244 = vmatpush1.xpose.msra.mxu0 0.0
      %1245 = vmatprep.subr.mxu0 0.0
      %1246 = vmatpush1.xpose.msra.mxu0 0.0
      %1247 = vmatprep.subr.mxu0 0.0
      %1248 = vmatpush1.xpose.msra.mxu0 0.0
      %1249 = vmatprep.subr.mxu0 0.0
      %1250 = vmatpush1.xpose.msra.mxu0 0.0
      %1251 = vmatprep.subr.mxu0 0.0
      %1252 = vmatpush1.xpose.msra.mxu0 0.0
      %1253 = vmatprep.subr.mxu0 0.0
      %1254 = vmatpush1.xpose.msra.mxu0 0.0
      %1255 = vmatprep.subr.mxu0 0.0
      %1256 = vmatpush1.xpose.msra.mxu0 0.0
      %1257 = vmatprep.subr.mxu0 0.0
      %1258 = vmatpush1.xpose.msra.mxu0 0.0
      %1259 = vmatprep.subr.mxu0 0.0
      %1260 = vmatpush1.xpose.msra.mxu0 0.0
      %1261 = vmatprep.subr.mxu0 0.0
      %1262 = vmatpush1.xpose.msra.mxu0 0.0
      %1263 = vmatprep.subr.mxu0 0.0
      %1264 = vmatpush1.xpose.msra.mxu0 0.0
      %1265 = vmatprep.subr.mxu0 0.0
      %1266 = vmatpush1.xpose.msra.mxu0 0.0
      %1267 = vmatprep.subr.mxu0 0.0
      %1268 = vmatpush1.xpose.msra.mxu0 0.0
      %1269 = vmatprep.subr.mxu0 0.0
      %1270 = vmatpush1.xpose.msra.mxu0 0.0
      %1271 = vmatprep.subr.mxu0 0.0
      %1272 = vmatpush1.xpose.msra.mxu0 0.0
      %1273 = vmatprep.subr.mxu0 0.0
      %1274 = vmatpush1.xpose.msra.mxu0 0.0
      %1275 = vmatprep.subr.mxu0 0.0
      %1276 = vmatpush1.xpose.msra.mxu0 0.0
      %1277 = vmatprep.subr.mxu0 0.0
      %1278 = vmatpush1.xpose.msra.mxu0 0.0
      %1279 = vmatprep.mubr.f32.mxu0 0.0
      %1280 = vmatmul.mubr.f32.gmra.mrb[0].mxu0 %v1207
      %v1281 = vpop.f32.mrb[0].mxu0
      %v1282 = vadd.f32 0.0, %v1281
      %v1283 = vpop.f32.mrb[0].mxu0
      %1284 = vmatprep.mubr.f32.mxu0 0.0
      %1285 = vmatmul.mubr.f32.gmra.mrb[0].mxu0 %v1209
      %v1286 = vpop.f32.mrb[0].mxu0
      %v1287 = vadd.f32 0.0, %v1286
      %v1288 = vpop.f32.mrb[0].mxu0
      %1289 = vdwg.mxu0
      %v1290 = vsel %vm442, %v1282, -inf
      %1291 = vmax.xlane.f32.xlu0 %v1290
      %v1292 = vpop.xlane.xlu0 %1291
      %v1293 = vsel %vm442, %v1287, -inf
      %1294 = vmax.xlane.f32.xlu0 %v1293
      %v1295 = vpop.xlane.xlu0 %1294
      %v1296 = vsub.f32 %v1282, %v1292
      %v1297 = vsub.f32 %v1287, %v1295
      %v1298 = vmul.f32 %v1296, 1.442695
      %v1299 = vpow.pop %v1298
      %v1300 = vmul.f32 %v1297, 1.442695
      %v1301 = vpow.pop %v1300
      %v1302 = vsel %vm442, %v1299, 0.0
      %1303 = vadd.xlane.f32.xlu0 %v1302
      %v1304 = vpop.xlane.xlu0 %1303
      %v1305 = vsel %vm442, %v1301, 0.0
      %1306 = vadd.xlane.f32.xlu0 %v1305
      %v1307 = vpop.xlane.xlu0 %1306
      %v1308 = vrcp.pop %v1304
      %v1309 = vrcp.pop %v1307
      %v1310 = vmul.f32 %v1299, %v1308
      %v1311 = vmul.f32 %v1301, %v1309
      %1312 = vrot.lane.b32.xlu0 %v345, 40
      %v1313 = vpop.permute.xlu0 %1312
      %1314 = vrot.lane.b32.xlu0 %v346, 40
      %v1315 = vpop.permute.xlu0 %1314
      %v1319 = vsel %vm442, %v1310, 0
      %v1322 = vsel %vm442, %v1311, 0
      %1324 = vmatprep.subr.mxu0 0.0
      %1325 = vmatpush1.msra.mxu0 %v1313
      %1326 = vmatprep.subr.mxu0 0.0
      %1327 = vmatpush1.msra.mxu0 %v1315
      %1328 = vmatprep.subr.mxu0 0.0
      %1329 = vmatpush1.msra.mxu0 0.0
      %1330 = vmatprep.subr.mxu0 0.0
      %1331 = vmatpush1.msra.mxu0 0.0
      %1332 = vmatprep.subr.mxu0 0.0
      %1333 = vmatpush1.msra.mxu0 0.0
      %1334 = vmatprep.subr.mxu0 0.0
      %1335 = vmatpush1.msra.mxu0 0.0
      %1336 = vmatprep.subr.mxu0 0.0
      %1337 = vmatpush1.msra.mxu0 0.0
      %1338 = vmatprep.subr.mxu0 0.0
      %1339 = vmatpush1.msra.mxu0 0.0
      %1340 = vmatprep.subr.mxu0 0.0
      %1341 = vmatpush1.msra.mxu0 0.0
      %1342 = vmatprep.subr.mxu0 0.0
      %1343 = vmatpush1.msra.mxu0 0.0
      %1344 = vmatprep.subr.mxu0 0.0
      %1345 = vmatpush1.msra.mxu0 0.0
      %1346 = vmatprep.subr.mxu0 0.0
      %1347 = vmatpush1.msra.mxu0 0.0
      %1348 = vmatprep.subr.mxu0 0.0
      %1349 = vmatpush1.msra.mxu0 0.0
      %1350 = vmatprep.subr.mxu0 0.0
      %1351 = vmatpush1.msra.mxu0 0.0
      %1352 = vmatprep.subr.mxu0 0.0
      %1353 = vmatpush1.msra.mxu0 0.0
      %1354 = vmatprep.subr.mxu0 0.0
      %1355 = vmatpush1.msra.mxu0 0.0
      %1356 = vmatprep.subr.mxu0 0.0
      %1357 = vmatpush1.msra.mxu0 0.0
      %1358 = vmatprep.subr.mxu0 0.0
      %1359 = vmatpush1.msra.mxu0 0.0
      %1360 = vmatprep.subr.mxu0 0.0
      %1361 = vmatpush1.msra.mxu0 0.0
      %1362 = vmatprep.subr.mxu0 0.0
      %1363 = vmatpush1.msra.mxu0 0.0
      %1364 = vmatprep.subr.mxu0 0.0
      %1365 = vmatpush1.msra.mxu0 0.0
      %1366 = vmatprep.subr.mxu0 0.0
      %1367 = vmatpush1.msra.mxu0 0.0
      %1368 = vmatprep.subr.mxu0 0.0
      %1369 = vmatpush1.msra.mxu0 0.0
      %1370 = vmatprep.subr.mxu0 0.0
      %1371 = vmatpush1.msra.mxu0 0.0
      %1372 = vmatprep.subr.mxu0 0.0
      %1373 = vmatpush1.msra.mxu0 0.0
      %1374 = vmatprep.subr.mxu0 0.0
      %1375 = vmatpush1.msra.mxu0 0.0
      %1376 = vmatprep.subr.mxu0 0.0
      %1377 = vmatpush1.msra.mxu0 0.0
      %1378 = vmatprep.subr.mxu0 0.0
      %1379 = vmatpush1.msra.mxu0 0.0
      %1380 = vmatprep.subr.mxu0 0.0
      %1381 = vmatpush1.msra.mxu0 0.0
      %1382 = vmatprep.subr.mxu0 0.0
      %1383 = vmatpush1.msra.mxu0 0.0
      %1384 = vmatprep.subr.mxu0 0.0
      %1385 = vmatpush1.msra.mxu0 0.0
      %1386 = vmatprep.subr.mxu0 0.0
      %1387 = vmatpush1.msra.mxu0 0.0
      %1388 = vmatprep.mubr.f32.mxu0 0.0
      %1389 = vmatmul.mubr.f32.gmra.mrb[0].mxu0 %v1319
      %v1390 = vpop.f32.mrb[0].mxu0
      %v1391 = vadd.f32 0.0, %v1390
      %v1392 = vpop.f32.mrb[0].mxu0
      %1393 = vmatprep.mubr.f32.mxu0 0.0
      %1394 = vmatmul.mubr.f32.gmra.mrb[0].mxu0 %v1322
      %v1395 = vpop.f32.mrb[0].mxu0
      %v1396 = vadd.f32 0.0, %v1395
      %v1397 = vpop.f32.mrb[0].mxu0
      %1398 = vdwg.mxu0
      %v1400 = vsel %vm358, %v1391, 0
      %v1403 = vsel %vm358, %v1396, 0
      %1405 = vmatprep.subr.mxu0 0.0
      %1406 = vmatpush1.msra.mxu0 %v350
      %1407 = vmatprep.subr.mxu0 0.0
      %1408 = vmatpush1.msra.mxu0 0.0
      %1409 = vmatprep.subr.mxu0 0.0
      %1410 = vmatpush1.msra.mxu0 0.0
      %1411 = vmatprep.subr.mxu0 0.0
      %1412 = vmatpush1.msra.mxu0 0.0
      %1413 = vmatprep.subr.mxu0 0.0
      %1414 = vmatpush1.msra.mxu0 0.0
      %1415 = vmatprep.subr.mxu0 0.0
      %1416 = vmatpush1.msra.mxu0 0.0
      %1417 = vmatprep.subr.mxu0 0.0
      %1418 = vmatpush1.msra.mxu0 0.0
      %1419 = vmatprep.subr.mxu0 0.0
      %1420 = vmatpush1.msra.mxu0 0.0
      %1421 = vmatprep.subr.mxu0 0.0
      %1422 = vmatpush1.msra.mxu0 0.0
      %1423 = vmatprep.subr.mxu0 0.0
      %1424 = vmatpush1.msra.mxu0 0.0
      %1425 = vmatprep.subr.mxu0 0.0
      %1426 = vmatpush1.msra.mxu0 0.0
      %1427 = vmatprep.subr.mxu0 0.0
      %1428 = vmatpush1.msra.mxu0 0.0
      %1429 = vmatprep.subr.mxu0 0.0
      %1430 = vmatpush1.msra.mxu0 0.0
      %1431 = vmatprep.subr.mxu0 0.0
      %1432 = vmatpush1.msra.mxu0 0.0
      %1433 = vmatprep.subr.mxu0 0.0
      %1434 = vmatpush1.msra.mxu0 0.0
      %1435 = vmatprep.subr.mxu0 0.0
      %1436 = vmatpush1.msra.mxu0 0.0
      %1437 = vmatprep.subr.mxu0 0.0
      %1438 = vmatpush1.msra.mxu0 0.0
      %1439 = vmatprep.subr.mxu0 0.0
      %1440 = vmatpush1.msra.mxu0 0.0
      %1441 = vmatprep.subr.mxu0 0.0
      %1442 = vmatpush1.msra.mxu0 0.0
      %1443 = vmatprep.subr.mxu0 0.0
      %1444 = vmatpush1.msra.mxu0 0.0
      %1445 = vmatprep.subr.mxu0 0.0
      %1446 = vmatpush1.msra.mxu0 0.0
      %1447 = vmatprep.subr.mxu0 0.0
      %1448 = vmatpush1.msra.mxu0 0.0
      %1449 = vmatprep.subr.mxu0 0.0
      %1450 = vmatpush1.msra.mxu0 0.0
      %1451 = vmatprep.subr.mxu0 0.0
      %1452 = vmatpush1.msra.mxu0 0.0
      %1453 = vmatprep.subr.mxu0 0.0
      %1454 = vmatpush1.msra.mxu0 0.0
      %1455 = vmatprep.subr.mxu0 0.0
      %1456 = vmatpush1.msra.mxu0 0.0
      %1457 = vmatprep.subr.mxu0 0.0
      %1458 = vmatpush1.msra.mxu0 0.0
      %1459 = vmatprep.subr.mxu0 0.0
      %1460 = vmatpush1.msra.mxu0 0.0
      %1461 = vmatprep.subr.mxu0 0.0
      %1462 = vmatpush1.msra.mxu0 0.0
      %1463 = vmatprep.subr.mxu0 0.0
      %1464 = vmatpush1.msra.mxu0 0.0
      %1465 = vmatprep.subr.mxu0 0.0
      %1466 = vmatpush1.msra.mxu0 0.0
      %1467 = vmatprep.subr.mxu0 0.0
      %1468 = vmatpush1.msra.mxu0 0.0
      %1469 = vmatprep.mubr.f32.mxu0 0.0
      %1470 = vmatmul.mubr.f32.gmra.mrb[0].mxu0 %v1400
      %v1471 = vpop.f32.mrb[0].mxu0
      %v1472 = vadd.f32 0.0, %v1471
      %v1473 = vpop.f32.mrb[0].mxu0
      %1474 = vmatprep.mubr.f32.mxu0 0.0
      %1475 = vmatmul.mubr.f32.gmra.mrb[0].mxu0 %v1403
      %v1476 = vpop.f32.mrb[0].mxu0
      %v1477 = vadd.f32 0.0, %v1476
      %v1478 = vpop.f32.mrb[0].mxu0
      %1479 = vdwg.mxu0
      %v1480 = vadd.f32 %v1197, %v1472
      %v1481 = vadd.f32 %v1198, %v1477
      %v1482 = vlaneseq
      %v1483 = vshrl.u32 %v1482, 7
      %v1484 = vsub.s32 0, %v1483
      %v1485 = vrot.slane %v351, %v1484
      %v1486 = vadd.f32 %v1480, %v1485
      %v1487 = vadd.f32 %v1481, %v1485
      %v1488 = vadd.f32 %v249, %v1486
      %v1489 = vadd.f32 %v254, %v1487
      %v1490 = vld [vmem:[%s1 + $0x120] sm:$0x1]
      %v1491 = vld [vmem:[%s1 + $0x128] sm:$0x1]
      %v1492 = vsel %vm261, %v1488, 0.0
      %1493 = vadd.xlane.f32.xlu0 %v1492
      %v1494 = vpop.xlane.xlu0 %1493
      %v1495 = vsel %vm261, %v1489, 0.0
      %1496 = vadd.xlane.f32.xlu0 %v1495
      %v1497 = vpop.xlane.xlu0 %1496
      %v1498 = vrcp.pop 32.0
      %v1499 = vmul.f32 %v1494, %v1498
      %v1500 = vmul.f32 %v1497, %v1498
      %v1501 = vsub.f32 %v1488, %v1499
      %v1502 = vsub.f32 %v1489, %v1500
      %v1503 = vmul.f32 %v1501, %v1501
      %v1504 = vmul.f32 %v1502, %v1502
      %v1505 = vsel %vm261, %v1503, 0.0
      %1506 = vadd.xlane.f32.xlu0 %v1505
      %v1507 = vpop.xlane.xlu0 %1506
      %v1508 = vsel %vm261, %v1504, 0.0
      %1509 = vadd.xlane.f32.xlu0 %v1508
      %v1510 = vpop.xlane.xlu0 %1509
      %v1511 = vmul.f32 %v1507, %v1498
      %v1512 = vmul.f32 %v1510, %v1498
      %v1513 = vadd.f32 %v1511, 1e-05
      %v1514 = vadd.f32 %v1512, 1e-05
      %v1515 = vrsqrt.pop %v1513
      %v1516 = vrsqrt.pop %v1514
      %v1517 = vmul.f32 %v1501, %v1515
      %v1518 = vmul.f32 %v1502, %v1516
      %v1519 = vlaneseq
      %v1520 = vshrl.u32 %v1519, 7
      %v1521 = vsub.s32 0, %v1520
      %v1522 = vrot.slane %v1490, %v1521
      %v1523 = vmul.f32 %v1517, %v1522
      %v1524 = vmul.f32 %v1518, %v1522
      %v1525 = vlaneseq
      %v1526 = vshrl.u32 %v1525, 7
      %v1527 = vsub.s32 0, %v1526
      %v1528 = vrot.slane %v1491, %v1527
      %v1529 = vadd.f32 %v1523, %v1528
      %v1530 = vadd.f32 %v1524, %v1528
      %v1531 = vld [vmem:[%s1 + $0x130] sm:$0xff]
      %v1532 = vld [vmem:[%s1 + $0x138] sm:$0xff]
      %v1533 = vld [vmem:[%s1 + $0x140] sm:$0xff]
      %v1534 = vld [vmem:[%s1 + $0x148] sm:$0xff]
      %v1536 = vsel %vm261, %v1529, 0
      %v1539 = vsel %vm261, %v1530, 0
      %1541 = vmatprep.subr.mxu0 0.0
      %1542 = vmatpush1.msra.mxu0 %v1531
      %1543 = vmatprep.subr.mxu0 0.0
      %1544 = vmatpush1.msra.mxu0 %v1532
      %1545 = vmatprep.subr.mxu0 0.0
      %1546 = vmatpush1.msra.mxu0 %v1533
      %1547 = vmatprep.subr.mxu0 0.0
      %1548 = vmatpush1.msra.mxu0 %v1534
      %1549 = vmatprep.subr.mxu0 0.0
      %1550 = vmatpush1.msra.mxu0 0.0
      %1551 = vmatprep.subr.mxu0 0.0
      %1552 = vmatpush1.msra.mxu0 0.0
      %1553 = vmatprep.subr.mxu0 0.0
      %1554 = vmatpush1.msra.mxu0 0.0
      %1555 = vmatprep.subr.mxu0 0.0
      %1556 = vmatpush1.msra.mxu0 0.0
      %1557 = vmatprep.subr.mxu0 0.0
      %1558 = vmatpush1.msra.mxu0 0.0
      %1559 = vmatprep.subr.mxu0 0.0
      %1560 = vmatpush1.msra.mxu0 0.0
      %1561 = vmatprep.subr.mxu0 0.0
      %1562 = vmatpush1.msra.mxu0 0.0
      %1563 = vmatprep.subr.mxu0 0.0
      %1564 = vmatpush1.msra.mxu0 0.0
      %1565 = vmatprep.subr.mxu0 0.0
      %1566 = vmatpush1.msra.mxu0 0.0
      %1567 = vmatprep.subr.mxu0 0.0
      %1568 = vmatpush1.msra.mxu0 0.0
      %1569 = vmatprep.subr.mxu0 0.0
      %1570 = vmatpush1.msra.mxu0 0.0
      %1571 = vmatprep.subr.mxu0 0.0
      %1572 = vmatpush1.msra.mxu0 0.0
      %1573 = vmatprep.subr.mxu0 0.0
      %1574 = vmatpush1.msra.mxu0 0.0
      %1575 = vmatprep.subr.mxu0 0.0
      %1576 = vmatpush1.msra.mxu0 0.0
      %1577 = vmatprep.subr.mxu0 0.0
      %1578 = vmatpush1.msra.mxu0 0.0
      %1579 = vmatprep.subr.mxu0 0.0
      %1580 = vmatpush1.msra.mxu0 0.0
      %1581 = vmatprep.subr.mxu0 0.0
      %1582 = vmatpush1.msra.mxu0 0.0
      %1583 = vmatprep.subr.mxu0 0.0
      %1584 = vmatpush1.msra.mxu0 0.0
      %1585 = vmatprep.subr.mxu0 0.0
      %1586 = vmatpush1.msra.mxu0 0.0
      %1587 = vmatprep.subr.mxu0 0.0
      %1588 = vmatpush1.msra.mxu0 0.0
      %1589 = vmatprep.subr.mxu0 0.0
      %1590 = vmatpush1.msra.mxu0 0.0
      %1591 = vmatprep.subr.mxu0 0.0
      %1592 = vmatpush1.msra.mxu0 0.0
      %1593 = vmatprep.subr.mxu0 0.0
      %1594 = vmatpush1.msra.mxu0 0.0
      %1595 = vmatprep.subr.mxu0 0.0
      %1596 = vmatpush1.msra.mxu0 0.0
      %1597 = vmatprep.subr.mxu0 0.0
      %1598 = vmatpush1.msra.mxu0 0.0
      %1599 = vmatprep.subr.mxu0 0.0
      %1600 = vmatpush1.msra.mxu0 0.0
      %1601 = vmatprep.subr.mxu0 0.0
      %1602 = vmatpush1.msra.mxu0 0.0
      %1603 = vmatprep.subr.mxu0 0.0
      %1604 = vmatpush1.msra.mxu0 0.0
      %1605 = vmatprep.mubr.f32.mxu0 0.0
      %1606 = vmatmul.mubr.f32.gmra.mrb[0].mxu0 %v1536
      %v1607 = vpop.f32.mrb[0].mxu0
      %v1608 = vadd.f32 0.0, %v1607
      %v1609 = vpop.f32.mrb[0].mxu0
      %1610 = vmatprep.mubr.f32.mxu0 0.0
      %1611 = vmatmul.mubr.f32.gmra.mrb[0].mxu0 %v1539
      %v1612 = vpop.f32.mrb[0].mxu0
      %v1613 = vadd.f32 0.0, %v1612
      %v1614 = vpop.f32.mrb[0].mxu0
      %1615 = vdwg.mxu0
      %v1616 = vld [vmem:[%s1 + $0x150] sm:$0x1]
      %v1617 = vlaneseq
      %v1618 = vshrl.u32 %v1617, 7
      %v1619 = vsub.s32 0, %v1618
      %v1620 = vrot.slane %v1616, %v1619
      %v1621 = vadd.f32 %v1608, %v1620
      %v1622 = vadd.f32 %v1613, %v1620
      %v1623 = vmax.f32 %v1621, 0.0
      %v1624 = vmax.f32 %v1622, 0.0
      %v1625 = vld [vmem:[%s1 + $0x158] sm:$0xff]
      %v1626 = vld [vmem:[%s1 + $0x160] sm:$0xff]
      %v1627 = vld [vmem:[%s1 + $0x168] sm:$0xff]
      %v1628 = vld [vmem:[%s1 + $0x170] sm:$0xff]
      %v1629 = vld [vmem:[%s1 + $0x178] sm:$0xff]
      %v1630 = vld [vmem:[%s1 + $0x180] sm:$0xff]
      %v1631 = vld [vmem:[%s1 + $0x188] sm:$0xff]
      %v1632 = vld [vmem:[%s1 + $0x190] sm:$0xff]
      %v1634 = vsel %vm175, %v1623, 0
      %v1637 = vsel %vm175, %v1624, 0
      %1639 = vmatprep.subr.mxu0 0.0
      %1640 = vmatpush1.msra.mxu0 %v1625
      %1641 = vmatprep.subr.mxu0 0.0
      %1642 = vmatpush1.msra.mxu0 %v1626
      %1643 = vmatprep.subr.mxu0 0.0
      %1644 = vmatpush1.msra.mxu0 %v1627
      %1645 = vmatprep.subr.mxu0 0.0
      %1646 = vmatpush1.msra.mxu0 %v1628
      %1647 = vmatprep.subr.mxu0 0.0
      %1648 = vmatpush1.msra.mxu0 %v1629
      %1649 = vmatprep.subr.mxu0 0.0
      %1650 = vmatpush1.msra.mxu0 %v1630
      %1651 = vmatprep.subr.mxu0 0.0
      %1652 = vmatpush1.msra.mxu0 %v1631
      %1653 = vmatprep.subr.mxu0 0.0
      %1654 = vmatpush1.msra.mxu0 %v1632
      %1655 = vmatprep.subr.mxu0 0.0
      %1656 = vmatpush1.msra.mxu0 0.0
      %1657 = vmatprep.subr.mxu0 0.0
      %1658 = vmatpush1.msra.mxu0 0.0
      %1659 = vmatprep.subr.mxu0 0.0
      %1660 = vmatpush1.msra.mxu0 0.0
      %1661 = vmatprep.subr.mxu0 0.0
      %1662 = vmatpush1.msra.mxu0 0.0
      %1663 = vmatprep.subr.mxu0 0.0
      %1664 = vmatpush1.msra.mxu0 0.0
      %1665 = vmatprep.subr.mxu0 0.0
      %1666 = vmatpush1.msra.mxu0 0.0
      %1667 = vmatprep.subr.mxu0 0.0
      %1668 = vmatpush1.msra.mxu0 0.0
      %1669 = vmatprep.subr.mxu0 0.0
      %1670 = vmatpush1.msra.mxu0 0.0
      %1671 = vmatprep.subr.mxu0 0.0
      %1672 = vmatpush1.msra.mxu0 0.0
      %1673 = vmatprep.subr.mxu0 0.0
      %1674 = vmatpush1.msra.mxu0 0.0
      %1675 = vmatprep.subr.mxu0 0.0
      %1676 = vmatpush1.msra.mxu0 0.0
      %1677 = vmatprep.subr.mxu0 0.0
      %1678 = vmatpush1.msra.mxu0 0.0
      %1679 = vmatprep.subr.mxu0 0.0
      %1680 = vmatpush1.msra.mxu0 0.0
      %1681 = vmatprep.subr.mxu0 0.0
      %1682 = vmatpush1.msra.mxu0 0.0
      %1683 = vmatprep.subr.mxu0 0.0
      %1684 = vmatpush1.msra.mxu0 0.0
      %1685 = vmatprep.subr.mxu0 0.0
      %1686 = vmatpush1.msra.mxu0 0.0
      %1687 = vmatprep.subr.mxu0 0.0
      %1688 = vmatpush1.msra.mxu0 0.0
      %1689 = vmatprep.subr.mxu0 0.0
      %1690 = vmatpush1.msra.mxu0 0.0
      %1691 = vmatprep.subr.mxu0 0.0
      %1692 = vmatpush1.msra.mxu0 0.0
      %1693 = vmatprep.subr.mxu0 0.0
      %1694 = vmatpush1.msra.mxu0 0.0
      %1695 = vmatprep.subr.mxu0 0.0
      %1696 = vmatpush1.msra.mxu0 0.0
      %1697 = vmatprep.subr.mxu0 0.0
      %1698 = vmatpush1.msra.mxu0 0.0
      %1699 = vmatprep.subr.mxu0 0.0
      %1700 = vmatpush1.msra.mxu0 0.0
      %1701 = vmatprep.subr.mxu0 0.0
      %1702 = vmatpush1.msra.mxu0 0.0
      %1703 = vmatprep.mubr.f32.mxu0 0.0
      %1704 = vmatmul.mubr.f32.gmra.mrb[0].mxu0 %v1634
      %v1705 = vpop.f32.mrb[0].mxu0
      %v1706 = vadd.f32 0.0, %v1705
      %v1707 = vpop.f32.mrb[0].mxu0
      %1708 = vmatprep.mubr.f32.mxu0 0.0
      %1709 = vmatmul.mubr.f32.gmra.mrb[0].mxu0 %v1637
      %v1710 = vpop.f32.mrb[0].mxu0
      %v1711 = vadd.f32 0.0, %v1710
      %v1712 = vpop.f32.mrb[0].mxu0
      %1713 = vdwg.mxu0
      %v1714 = vld [vmem:[%s1 + $0x198] sm:$0x1]
      %v1715 = vlaneseq
      %v1716 = vshrl.u32 %v1715, 7
      %v1717 = vsub.s32 0, %v1716
      %v1718 = vrot.slane %v1714, %v1717
      %v1719 = vadd.f32 %v1706, %v1718
      %v1720 = vadd.f32 %v1711, %v1718
      %v1721 = vadd.f32 %v1529, %v1719
      %v1722 = vadd.f32 %v1530, %v1720
      %v1723 = vld [vmem:[%s1 + $0x1a0] sm:$0x1]
      %v1724 = vld [vmem:[%s1 + $0x1a8] sm:$0x1]
      %v1725 = vsel %vm261, %v1721, 0.0
      %1726 = vadd.xlane.f32.xlu0 %v1725
      %v1727 = vpop.xlane.xlu0 %1726
      %v1728 = vsel %vm261, %v1722, 0.0
      %1729 = vadd.xlane.f32.xlu0 %v1728
      %v1730 = vpop.xlane.xlu0 %1729
      %v1731 = vmul.f32 %v1727, %v1498
      %v1732 = vmul.f32 %v1730, %v1498
      %v1733 = vsub.f32 %v1721, %v1731
      %v1734 = vsub.f32 %v1722, %v1732
      %v1735 = vmul.f32 %v1733, %v1733
      %v1736 = vmul.f32 %v1734, %v1734
      %v1737 = vsel %vm261, %v1735, 0.0
      %1738 = vadd.xlane.f32.xlu0 %v1737
      %v1739 = vpop.xlane.xlu0 %1738
      %v1740 = vsel %vm261, %v1736, 0.0
      %1741 = vadd.xlane.f32.xlu0 %v1740
      %v1742 = vpop.xlane.xlu0 %1741
      %v1743 = vmul.f32 %v1739, %v1498
      %v1744 = vmul.f32 %v1742, %v1498
      %v1745 = vadd.f32 %v1743, 1e-05
      %v1746 = vadd.f32 %v1744, 1e-05
      %v1747 = vrsqrt.pop %v1745
      %v1748 = vrsqrt.pop %v1746
      %v1749 = vmul.f32 %v1733, %v1747
      %v1750 = vmul.f32 %v1734, %v1748
      %v1751 = vlaneseq
      %v1752 = vshrl.u32 %v1751, 7
      %v1753 = vsub.s32 0, %v1752
      %v1754 = vrot.slane %v1723, %v1753
      %v1755 = vmul.f32 %v1749, %v1754
      %v1756 = vmul.f32 %v1750, %v1754
      %v1757 = vlaneseq
      %v1758 = vshrl.u32 %v1757, 7
      %v1759 = vsub.s32 0, %v1758
      %v1760 = vrot.slane %v1724, %v1759
      %v1761 = vadd.f32 %v1755, %v1760
      %v1762 = vadd.f32 %v1756, %v1760
      %v1763 = vld [vmem:[%s1 + $0x1b0] sm:$0xff]
      %v1764 = vld [vmem:[%s1 + $0x1b8] sm:$0xff]
      %v1765 = vld [vmem:[%s1 + $0x1c0] sm:$0xff]
      %v1766 = vld [vmem:[%s1 + $0x1c8] sm:$0xff]
      %v1768 = vsel %vm261, 0.0, 0
      %1770 = vmatprep.subr.mxu0 0.0
      %1771 = vmatpush1.msra.mxu0 %v1763
      %1772 = vmatprep.subr.mxu0 0.0
      %1773 = vmatpush1.msra.mxu0 %v1764
      %1774 = vmatprep.subr.mxu0 0.0
      %1775 = vmatpush1.msra.mxu0 %v1765
      %1776 = vmatprep.subr.mxu0 0.0
      %1777 = vmatpush1.msra.mxu0 %v1766
      %1778 = vmatprep.subr.mxu0 0.0
      %1779 = vmatpush1.msra.mxu0 0.0
      %1780 = vmatprep.subr.mxu0 0.0
      %1781 = vmatpush1.msra.mxu0 0.0
      %1782 = vmatprep.subr.mxu0 0.0
      %1783 = vmatpush1.msra.mxu0 0.0
      %1784 = vmatprep.subr.mxu0 0.0
      %1785 = vmatpush1.msra.mxu0 0.0
      %1786 = vmatprep.subr.mxu0 0.0
      %1787 = vmatpush1.msra.mxu0 0.0
      %1788 = vmatprep.subr.mxu0 0.0
      %1789 = vmatpush1.msra.mxu0 0.0
      %1790 = vmatprep.subr.mxu0 0.0
      %1791 = vmatpush1.msra.mxu0 0.0
      %1792 = vmatprep.subr.mxu0 0.0
      %1793 = vmatpush1.msra.mxu0 0.0
      %1794 = vmatprep.subr.mxu0 0.0
      %1795 = vmatpush1.msra.mxu0 0.0
      %1796 = vmatprep.subr.mxu0 0.0
      %1797 = vmatpush1.msra.mxu0 0.0
      %1798 = vmatprep.subr.mxu0 0.0
      %1799 = vmatpush1.msra.mxu0 0.0
      %1800 = vmatprep.subr.mxu0 0.0
      %1801 = vmatpush1.msra.mxu0 0.0
      %1802 = vmatprep.subr.mxu0 0.0
      %1803 = vmatpush1.msra.mxu0 0.0
      %1804 = vmatprep.subr.mxu0 0.0
      %1805 = vmatpush1.msra.mxu0 0.0
      %1806 = vmatprep.subr.mxu0 0.0
      %1807 = vmatpush1.msra.mxu0 0.0
      %1808 = vmatprep.subr.mxu0 0.0
      %1809 = vmatpush1.msra.mxu0 0.0
      %1810 = vmatprep.subr.mxu0 0.0
      %1811 = vmatpush1.msra.mxu0 0.0
      %1812 = vmatprep.subr.mxu0 0.0
      %1813 = vmatpush1.msra.mxu0 0.0
      %1814 = vmatprep.subr.mxu0 0.0
      %1815 = vmatpush1.msra.mxu0 0.0
      %1816 = vmatprep.subr.mxu0 0.0
      %1817 = vmatpush1.msra.mxu0 0.0
      %1818 = vmatprep.subr.mxu0 0.0
      %1819 = vmatpush1.msra.mxu0 0.0
      %1820 = vmatprep.subr.mxu0 0.0
      %1821 = vmatpush1.msra.mxu0 0.0
      %1822 = vmatprep.subr.mxu0 0.0
      %1823 = vmatpush1.msra.mxu0 0.0
      %1824 = vmatprep.subr.mxu0 0.0
      %1825 = vmatpush1.msra.mxu0 0.0
      %1826 = vmatprep.subr.mxu0 0.0
      %1827 = vmatpush1.msra.mxu0 0.0
      %1828 = vmatprep.subr.mxu0 0.0
      %1829 = vmatpush1.msra.mxu0 0.0
      %1830 = vmatprep.subr.mxu0 0.0
      %1831 = vmatpush1.msra.mxu0 0.0
      %1832 = vmatprep.subr.mxu0 0.0
      %1833 = vmatpush1.msra.mxu0 0.0
      %1834 = vmatprep.mubr.f32.mxu0 0.0
      %1835 = vmatmul.mubr.f32.gmra.mrb[0].mxu0 %v1768
      %v1836 = vpop.f32.mrb[0].mxu0
      %v1837 = vadd.f32 0.0, %v1836
      %v1838 = vpop.f32.mrb[0].mxu0
      %1839 = vdwg.mxu0
      %v1840 = vld [vmem:[%s1 + $0x1d0] sm:$0xff]
      %v1841 = vadd.f32 %v1837, %v1840
      %v1842 = vld [vmem:[%s1 + $0x1d8] sm:$0xff]
      %v1843 = vld [vmem:[%s1 + $0x1e0] sm:$0xff]
      %v1844 = vld [vmem:[%s1 + $0x1e8] sm:$0xff]
      %v1845 = vld [vmem:[%s1 + $0x1f0] sm:$0xff]
      %v1846 = vld [vmem:[%s1 + $0x1f8] sm:$0x1]
      %1848 = vrot.lane.b32.xlu0 %v1841, 96
      %v1849 = vpop.permute.xlu0 %1848
      %v1850 = vsel %vm358, %v1841, 0
      %v1852 = vsel %vm358, %v1849, 0
      %1854 = vmatprep.subr.mxu0 0.0
      %1855 = vmatpush1.xpose.msra.mxu0 %v1852
      %1856 = vmatprep.subr.mxu0 0.0
      %1857 = vmatpush1.xpose.msra.mxu0 0.0
      %1858 = vmatprep.subr.mxu0 0.0
      %1859 = vmatpush1.xpose.msra.mxu0 0.0
      %1860 = vmatprep.subr.mxu0 0.0
      %1861 = vmatpush1.xpose.msra.mxu0 0.0
      %1862 = vmatprep.subr.mxu0 0.0
      %1863 = vmatpush1.xpose.msra.mxu0 0.0
      %1864 = vmatprep.subr.mxu0 0.0
      %1865 = vmatpush1.xpose.msra.mxu0 0.0
      %1866 = vmatprep.subr.mxu0 0.0
      %1867 = vmatpush1.xpose.msra.mxu0 0.0
      %1868 = vmatprep.subr.mxu0 0.0
      %1869 = vmatpush1.xpose.msra.mxu0 0.0
      %1870 = vmatprep.subr.mxu0 0.0
      %1871 = vmatpush1.xpose.msra.mxu0 0.0
      %1872 = vmatprep.subr.mxu0 0.0
      %1873 = vmatpush1.xpose.msra.mxu0 0.0
      %1874 = vmatprep.subr.mxu0 0.0
      %1875 = vmatpush1.xpose.msra.mxu0 0.0
      %1876 = vmatprep.subr.mxu0 0.0
      %1877 = vmatpush1.xpose.msra.mxu0 0.0
      %1878 = vmatprep.subr.mxu0 0.0
      %1879 = vmatpush1.xpose.msra.mxu0 0.0
      %1880 = vmatprep.subr.mxu0 0.0
      %1881 = vmatpush1.xpose.msra.mxu0 0.0
      %1882 = vmatprep.subr.mxu0 0.0
      %1883 = vmatpush1.xpose.msra.mxu0 0.0
      %1884 = vmatprep.subr.mxu0 0.0
      %1885 = vmatpush1.xpose.msra.mxu0 0.0
      %1886 = vmatprep.subr.mxu0 0.0
      %1887 = vmatpush1.xpose.msra.mxu0 0.0
      %1888 = vmatprep.subr.mxu0 0.0
      %1889 = vmatpush1.xpose.msra.mxu0 0.0
      %1890 = vmatprep.subr.mxu0 0.0
      %1891 = vmatpush1.xpose.msra.mxu0 0.0
      %1892 = vmatprep.subr.mxu0 0.0
      %1893 = vmatpush1.xpose.msra.mxu0 0.0
      %1894 = vmatprep.subr.mxu0 0.0
      %1895 = vmatpush1.xpose.msra.mxu0 0.0
      %1896 = vmatprep.subr.mxu0 0.0
      %1897 = vmatpush1.xpose.msra.mxu0 0.0
      %1898 = vmatprep.subr.mxu0 0.0
      %1899 = vmatpush1.xpose.msra.mxu0 0.0
      %1900 = vmatprep.subr.mxu0 0.0
      %1901 = vmatpush1.xpose.msra.mxu0 0.0
      %1902 = vmatprep.subr.mxu0 0.0
      %1903 = vmatpush1.xpose.msra.mxu0 0.0
      %1904 = vmatprep.subr.mxu0 0.0
      %1905 = vmatpush1.xpose.msra.mxu0 0.0
      %1906 = vmatprep.subr.mxu0 0.0
      %1907 = vmatpush1.xpose.msra.mxu0 0.0
      %1908 = vmatprep.subr.mxu0 0.0
      %1909 = vmatpush1.xpose.msra.mxu0 0.0
      %1910 = vmatprep.subr.mxu0 0.0
      %1911 = vmatpush1.xpose.msra.mxu0 0.0
      %1912 = vmatprep.subr.mxu0 0.0
      %1913 = vmatpush1.xpose.msra.mxu0 0.0
      %1914 = vmatprep.subr.mxu0 0.0
      %1915 = vmatpush1.xpose.msra.mxu0 0.0
      %1916 = vmatprep.subr.mxu0 0.0
      %1917 = vmatpush1.xpose.msra.mxu0 0.0
      %1918 = vmatprep.mubr.f32.mxu0 0.0
      %1919 = vmatmul.mubr.f32.gmra.mrb[0].mxu0 %v1850
      %v1920 = vpop.f32.mrb[0].mxu0
      %v1921 = vadd.f32 0.0, %v1920
      %v1922 = vpop.f32.mrb[0].mxu0
      %1923 = vdwg.mxu0
      %v1924 = vsel %vm358, %v1921, -inf
      %1925 = vmax.xlane.f32.xlu0 %v1924
      %v1926 = vpop.xlane.xlu0 %1925
      %v1927 = vsub.f32 %v1921, %v1926
      %v1928 = vmul.f32 %v1927, 1.442695
      %v1929 = vpow.pop %v1928
      %v1930 = vsel %vm358, %v1929, 0.0
      %1931 = vadd.xlane.f32.xlu0 %v1930
      %v1932 = vpop.xlane.xlu0 %1931
      %v1933 = vrcp.pop %v1932
      %v1934 = vmul.f32 %v1929, %v1933
      %1935 = vrot.lane.b32.xlu0 %v1841, 64
      %v1936 = vpop.permute.xlu0 %1935
      %v1939 = vsel %vm358, %v1934, 0
      %1941 = vmatprep.subr.mxu0 0.0
      %1942 = vmatpush1.msra.mxu0 %v1936
      %1943 = vmatprep.subr.mxu0 0.0
      %1944 = vmatpush1.msra.mxu0 0.0
      %1945 = vmatprep.subr.mxu0 0.0
      %1946 = vmatpush1.msra.mxu0 0.0
      %1947 = vmatprep.subr.mxu0 0.0
      %1948 = vmatpush1.msra.mxu0 0.0
      %1949 = vmatprep.subr.mxu0 0.0
      %1950 = vmatpush1.msra.mxu0 0.0
      %1951 = vmatprep.subr.mxu0 0.0
      %1952 = vmatpush1.msra.mxu0 0.0
      %1953 = vmatprep.subr.mxu0 0.0
      %1954 = vmatpush1.msra.mxu0 0.0
      %1955 = vmatprep.subr.mxu0 0.0
      %1956 = vmatpush1.msra.mxu0 0.0
      %1957 = vmatprep.subr.mxu0 0.0
      %1958 = vmatpush1.msra.mxu0 0.0
      %1959 = vmatprep.subr.mxu0 0.0
      %1960 = vmatpush1.msra.mxu0 0.0
      %1961 = vmatprep.subr.mxu0 0.0
      %1962 = vmatpush1.msra.mxu0 0.0
      %1963 = vmatprep.subr.mxu0 0.0
      %1964 = vmatpush1.msra.mxu0 0.0
      %1965 = vmatprep.subr.mxu0 0.0
      %1966 = vmatpush1.msra.mxu0 0.0
      %1967 = vmatprep.subr.mxu0 0.0
      %1968 = vmatpush1.msra.mxu0 0.0
      %1969 = vmatprep.subr.mxu0 0.0
      %1970 = vmatpush1.msra.mxu0 0.0
      %1971 = vmatprep.subr.mxu0 0.0
      %1972 = vmatpush1.msra.mxu0 0.0
      %1973 = vmatprep.subr.mxu0 0.0
      %1974 = vmatpush1.msra.mxu0 0.0
      %1975 = vmatprep.subr.mxu0 0.0
      %1976 = vmatpush1.msra.mxu0 0.0
      %1977 = vmatprep.subr.mxu0 0.0
      %1978 = vmatpush1.msra.mxu0 0.0
      %1979 = vmatprep.subr.mxu0 0.0
      %1980 = vmatpush1.msra.mxu0 0.0
      %1981 = vmatprep.subr.mxu0 0.0
      %1982 = vmatpush1.msra.mxu0 0.0
      %1983 = vmatprep.subr.mxu0 0.0
      %1984 = vmatpush1.msra.mxu0 0.0
      %1985 = vmatprep.subr.mxu0 0.0
      %1986 = vmatpush1.msra.mxu0 0.0
      %1987 = vmatprep.subr.mxu0 0.0
      %1988 = vmatpush1.msra.mxu0 0.0
      %1989 = vmatprep.subr.mxu0 0.0
      %1990 = vmatpush1.msra.mxu0 0.0
      %1991 = vmatprep.subr.mxu0 0.0
      %1992 = vmatpush1.msra.mxu0 0.0
      %1993 = vmatprep.subr.mxu0 0.0
      %1994 = vmatpush1.msra.mxu0 0.0
      %1995 = vmatprep.subr.mxu0 0.0
      %1996 = vmatpush1.msra.mxu0 0.0
      %1997 = vmatprep.subr.mxu0 0.0
      %1998 = vmatpush1.msra.mxu0 0.0
      %1999 = vmatprep.subr.mxu0 0.0
      %2000 = vmatpush1.msra.mxu0 0.0
      %2001 = vmatprep.subr.mxu0 0.0
      %2002 = vmatpush1.msra.mxu0 0.0
      %2003 = vmatprep.subr.mxu0 0.0
      %2004 = vmatpush1.msra.mxu0 0.0
      %2005 = vmatprep.mubr.f32.mxu0 0.0
      %2006 = vmatmul.mubr.f32.gmra.mrb[0].mxu0 %v1939
      %v2007 = vpop.f32.mrb[0].mxu0
      %v2008 = vadd.f32 0.0, %v2007
      %v2009 = vpop.f32.mrb[0].mxu0
      %2010 = vdwg.mxu0
      %v2012 = vsel %vm358, %v2008, 0
      %2014 = vmatprep.subr.mxu0 0.0
      %2015 = vmatpush1.msra.mxu0 %v1842
      %2016 = vmatprep.subr.mxu0 0.0
      %2017 = vmatpush1.msra.mxu0 0.0
      %2018 = vmatprep.subr.mxu0 0.0
      %2019 = vmatpush1.msra.mxu0 0.0
      %2020 = vmatprep.subr.mxu0 0.0
      %2021 = vmatpush1.msra.mxu0 0.0
      %2022 = vmatprep.subr.mxu0 0.0
      %2023 = vmatpush1.msra.mxu0 0.0
      %2024 = vmatprep.subr.mxu0 0.0
      %2025 = vmatpush1.msra.mxu0 0.0
      %2026 = vmatprep.subr.mxu0 0.0
      %2027 = vmatpush1.msra.mxu0 0.0
      %2028 = vmatprep.subr.mxu0 0.0
      %2029 = vmatpush1.msra.mxu0 0.0
      %2030 = vmatprep.subr.mxu0 0.0
      %2031 = vmatpush1.msra.mxu0 0.0
      %2032 = vmatprep.subr.mxu0 0.0
      %2033 = vmatpush1.msra.mxu0 0.0
      %2034 = vmatprep.subr.mxu0 0.0
      %2035 = vmatpush1.msra.mxu0 0.0
      %2036 = vmatprep.subr.mxu0 0.0
      %2037 = vmatpush1.msra.mxu0 0.0
      %2038 = vmatprep.subr.mxu0 0.0
      %2039 = vmatpush1.msra.mxu0 0.0
      %2040 = vmatprep.subr.mxu0 0.0
      %2041 = vmatpush1.msra.mxu0 0.0
      %2042 = vmatprep.subr.mxu0 0.0
      %2043 = vmatpush1.msra.mxu0 0.0
      %2044 = vmatprep.subr.mxu0 0.0
      %2045 = vmatpush1.msra.mxu0 0.0
      %2046 = vmatprep.subr.mxu0 0.0
      %2047 = vmatpush1.msra.mxu0 0.0
      %2048 = vmatprep.subr.mxu0 0.0
      %2049 = vmatpush1.msra.mxu0 0.0
      %2050 = vmatprep.subr.mxu0 0.0
      %2051 = vmatpush1.msra.mxu0 0.0
      %2052 = vmatprep.subr.mxu0 0.0
      %2053 = vmatpush1.msra.mxu0 0.0
      %2054 = vmatprep.subr.mxu0 0.0
      %2055 = vmatpush1.msra.mxu0 0.0
      %2056 = vmatprep.subr.mxu0 0.0
      %2057 = vmatpush1.msra.mxu0 0.0
      %2058 = vmatprep.subr.mxu0 0.0
      %2059 = vmatpush1.msra.mxu0 0.0
      %2060 = vmatprep.subr.mxu0 0.0
      %2061 = vmatpush1.msra.mxu0 0.0
      %2062 = vmatprep.subr.mxu0 0.0
      %2063 = vmatpush1.msra.mxu0 0.0
      %2064 = vmatprep.subr.mxu0 0.0
      %2065 = vmatpush1.msra.mxu0 0.0
      %2066 = vmatprep.subr.mxu0 0.0
      %2067 = vmatpush1.msra.mxu0 0.0
      %2068 = vmatprep.subr.mxu0 0.0
      %2069 = vmatpush1.msra.mxu0 0.0
      %2070 = vmatprep.subr.mxu0 0.0
      %2071 = vmatpush1.msra.mxu0 0.0
      %2072 = vmatprep.subr.mxu0 0.0
      %2073 = vmatpush1.msra.mxu0 0.0
      %2074 = vmatprep.subr.mxu0 0.0
      %2075 = vmatpush1.msra.mxu0 0.0
      %2076 = vmatprep.subr.mxu0 0.0
      %2077 = vmatpush1.msra.mxu0 0.0
      %2078 = vmatprep.mubr.f32.mxu0 0.0
      %2079 = vmatmul.mubr.f32.gmra.mrb[0].mxu0 %v2012
      %v2080 = vpop.f32.mrb[0].mxu0
      %v2081 = vadd.f32 0.0, %v2080
      %v2082 = vpop.f32.mrb[0].mxu0
      %2083 = vdwg.mxu0
      %2084 = vrot.lane.b32.xlu0 %v1841, 120
      %v2085 = vpop.permute.xlu0 %2084
      %2086 = vrot.lane.b32.xlu0 %v1841, 88
      %v2087 = vpop.permute.xlu0 %2086
      %v2088 = vsel %vm358, %v2085, 0
      %v2090 = vsel %vm358, %v2087, 0
      %2092 = vmatprep.subr.mxu0 0.0
      %2093 = vmatpush1.xpose.msra.mxu0 %v2090
      %2094 = vmatprep.subr.mxu0 0.0
      %2095 = vmatpush1.xpose.msra.mxu0 0.0
      %2096 = vmatprep.subr.mxu0 0.0
      %2097 = vmatpush1.xpose.msra.mxu0 0.0
      %2098 = vmatprep.subr.mxu0 0.0
      %2099 = vmatpush1.xpose.msra.mxu0 0.0
      %2100 = vmatprep.subr.mxu0 0.0
      %2101 = vmatpush1.xpose.msra.mxu0 0.0
      %2102 = vmatprep.subr.mxu0 0.0
      %2103 = vmatpush1.xpose.msra.mxu0 0.0
      %2104 = vmatprep.subr.mxu0 0.0
      %2105 = vmatpush1.xpose.msra.mxu0 0.0
      %2106 = vmatprep.subr.mxu0 0.0
      %2107 = vmatpush1.xpose.msra.mxu0 0.0
      %2108 = vmatprep.subr.mxu0 0.0
      %2109 = vmatpush1.xpose.msra.mxu0 0.0
      %2110 = vmatprep.subr.mxu0 0.0
      %2111 = vmatpush1.xpose.msra.mxu0 0.0
      %2112 = vmatprep.subr.mxu0 0.0
      %2113 = vmatpush1.xpose.msra.mxu0 0.0
      %2114 = vmatprep.subr.mxu0 0.0
      %2115 = vmatpush1.xpose.msra.mxu0 0.0
      %2116 = vmatprep.subr.mxu0 0.0
      %2117 = vmatpush1.xpose.msra.mxu0 0.0
      %2118 = vmatprep.subr.mxu0 0.0
      %2119 = vmatpush1.xpose.msra.mxu0 0.0
      %2120 = vmatprep.subr.mxu0 0.0
      %2121 = vmatpush1.xpose.msra.mxu0 0.0
      %2122 = vmatprep.subr.mxu0 0.0
      %2123 = vmatpush1.xpose.msra.mxu0 0.0
      %2124 = vmatprep.subr.mxu0 0.0
      %2125 = vmatpush1.xpose.msra.mxu0 0.0
      %2126 = vmatprep.subr.mxu0 0.0
      %2127 = vmatpush1.xpose.msra.mxu0 0.0
      %2128 = vmatprep.subr.mxu0 0.0
      %2129 = vmatpush1.xpose.msra.mxu0 0.0
      %2130 = vmatprep.subr.mxu0 0.0
      %2131 = vmatpush1.xpose.msra.mxu0 0.0
      %2132 = vmatprep.subr.mxu0 0.0
      %2133 = vmatpush1.xpose.msra.mxu0 0.0
      %2134 = vmatprep.subr.mxu0 0.0
      %2135 = vmatpush1.xpose.msra.mxu0 0.0
      %2136 = vmatprep.subr.mxu0 0.0
      %2137 = vmatpush1.xpose.msra.mxu0 0.0
      %2138 = vmatprep.subr.mxu0 0.0
      %2139 = vmatpush1.xpose.msra.mxu0 0.0
      %2140 = vmatprep.subr.mxu0 0.0
      %2141 = vmatpush1.xpose.msra.mxu0 0.0
      %2142 = vmatprep.subr.mxu0 0.0
      %2143 = vmatpush1.xpose.msra.mxu0 0.0
      %2144 = vmatprep.subr.mxu0 0.0
      %2145 = vmatpush1.xpose.msra.mxu0 0.0
      %2146 = vmatprep.subr.mxu0 0.0
      %2147 = vmatpush1.xpose.msra.mxu0 0.0
      %2148 = vmatprep.subr.mxu0 0.0
      %2149 = vmatpush1.xpose.msra.mxu0 0.0
      %2150 = vmatprep.subr.mxu0 0.0
      %2151 = vmatpush1.xpose.msra.mxu0 0.0
      %2152 = vmatprep.subr.mxu0 0.0
      %2153 = vmatpush1.xpose.msra.mxu0 0.0
      %2154 = vmatprep.subr.mxu0 0.0
      %2155 = vmatpush1.xpose.msra.mxu0 0.0
      %2156 = vmatprep.mubr.f32.mxu0 0.0
      %2157 = vmatmul.mubr.f32.gmra.mrb[0].mxu0 %v2088
      %v2158 = vpop.f32.mrb[0].mxu0
      %v2159 = vadd.f32 0.0, %v2158
      %v2160 = vpop.f32.mrb[0].mxu0
      %2161 = vdwg.mxu0
      %v2162 = vsel %vm358, %v2159, -inf
      %2163 = vmax.xlane.f32.xlu0 %v2162
      %v2164 = vpop.xlane.xlu0 %2163
      %v2165 = vsub.f32 %v2159, %v2164
      %v2166 = vmul.f32 %v2165, 1.442695
      %v2167 = vpow.pop %v2166
      %v2168 = vsel %vm358, %v2167, 0.0
      %2169 = vadd.xlane.f32.xlu0 %v2168
      %v2170 = vpop.xlane.xlu0 %2169
      %v2171 = vrcp.pop %v2170
      %v2172 = vmul.f32 %v2167, %v2171
      %2173 = vrot.lane.b32.xlu0 %v1841, 56
      %v2174 = vpop.permute.xlu0 %2173
      %v2177 = vsel %vm358, %v2172, 0
      %2179 = vmatprep.subr.mxu0 0.0
      %2180 = vmatpush1.msra.mxu0 %v2174
      %2181 = vmatprep.subr.mxu0 0.0
      %2182 = vmatpush1.msra.mxu0 0.0
      %2183 = vmatprep.subr.mxu0 0.0
      %2184 = vmatpush1.msra.mxu0 0.0
      %2185 = vmatprep.subr.mxu0 0.0
      %2186 = vmatpush1.msra.mxu0 0.0
      %2187 = vmatprep.subr.mxu0 0.0
      %2188 = vmatpush1.msra.mxu0 0.0
      %2189 = vmatprep.subr.mxu0 0.0
      %2190 = vmatpush1.msra.mxu0 0.0
      %2191 = vmatprep.subr.mxu0 0.0
      %2192 = vmatpush1.msra.mxu0 0.0
      %2193 = vmatprep.subr.mxu0 0.0
      %2194 = vmatpush1.msra.mxu0 0.0
      %2195 = vmatprep.subr.mxu0 0.0
      %2196 = vmatpush1.msra.mxu0 0.0
      %2197 = vmatprep.subr.mxu0 0.0
      %2198 = vmatpush1.msra.mxu0 0.0
      %2199 = vmatprep.subr.mxu0 0.0
      %2200 = vmatpush1.msra.mxu0 0.0
      %2201 = vmatprep.subr.mxu0 0.0
      %2202 = vmatpush1.msra.mxu0 0.0
      %2203 = vmatprep.subr.mxu0 0.0
      %2204 = vmatpush1.msra.mxu0 0.0
      %2205 = vmatprep.subr.mxu0 0.0
      %2206 = vmatpush1.msra.mxu0 0.0
      %2207 = vmatprep.subr.mxu0 0.0
      %2208 = vmatpush1.msra.mxu0 0.0
      %2209 = vmatprep.subr.mxu0 0.0
      %2210 = vmatpush1.msra.mxu0 0.0
      %2211 = vmatprep.subr.mxu0 0.0
      %2212 = vmatpush1.msra.mxu0 0.0
      %2213 = vmatprep.subr.mxu0 0.0
      %2214 = vmatpush1.msra.mxu0 0.0
      %2215 = vmatprep.subr.mxu0 0.0
      %2216 = vmatpush1.msra.mxu0 0.0
      %2217 = vmatprep.subr.mxu0 0.0
      %2218 = vmatpush1.msra.mxu0 0.0
      %2219 = vmatprep.subr.mxu0 0.0
      %2220 = vmatpush1.msra.mxu0 0.0
      %2221 = vmatprep.subr.mxu0 0.0
      %2222 = vmatpush1.msra.mxu0 0.0
      %2223 = vmatprep.subr.mxu0 0.0
      %2224 = vmatpush1.msra.mxu0 0.0
      %2225 = vmatprep.subr.mxu0 0.0
      %2226 = vmatpush1.msra.mxu0 0.0
      %2227 = vmatprep.subr.mxu0 0.0
      %2228 = vmatpush1.msra.mxu0 0.0
      %2229 = vmatprep.subr.mxu0 0.0
      %2230 = vmatpush1.msra.mxu0 0.0
      %2231 = vmatprep.subr.mxu0 0.0
      %2232 = vmatpush1.msra.mxu0 0.0
      %2233 = vmatprep.subr.mxu0 0.0
      %2234 = vmatpush1.msra.mxu0 0.0
      %2235 = vmatprep.subr.mxu0 0.0
      %2236 = vmatpush1.msra.mxu0 0.0
      %2237 = vmatprep.subr.mxu0 0.0
      %2238 = vmatpush1.msra.mxu0 0.0
      %2239 = vmatprep.subr.mxu0 0.0
      %2240 = vmatpush1.msra.mxu0 0.0
      %2241 = vmatprep.subr.mxu0 0.0
      %2242 = vmatpush1.msra.mxu0 0.0
      %2243 = vmatprep.mubr.f32.mxu0 0.0
      %2244 = vmatmul.mubr.f32.gmra.mrb[0].mxu0 %v2177
      %v2245 = vpop.f32.mrb[0].mxu0
      %v2246 = vadd.f32 0.0, %v2245
      %v2247 = vpop.f32.mrb[0].mxu0
      %2248 = vdwg.mxu0
      %v2250 = vsel %vm358, %v2246, 0
      %2252 = vmatprep.subr.mxu0 0.0
      %2253 = vmatpush1.msra.mxu0 %v1843
      %2254 = vmatprep.subr.mxu0 0.0
      %2255 = vmatpush1.msra.mxu0 0.0
      %2256 = vmatprep.subr.mxu0 0.0
      %2257 = vmatpush1.msra.mxu0 0.0
      %2258 = vmatprep.subr.mxu0 0.0
      %2259 = vmatpush1.msra.mxu0 0.0
      %2260 = vmatprep.subr.mxu0 0.0
      %2261 = vmatpush1.msra.mxu0 0.0
      %2262 = vmatprep.subr.mxu0 0.0
      %2263 = vmatpush1.msra.mxu0 0.0
      %2264 = vmatprep.subr.mxu0 0.0
      %2265 = vmatpush1.msra.mxu0 0.0
      %2266 = vmatprep.subr.mxu0 0.0
      %2267 = vmatpush1.msra.mxu0 0.0
      %2268 = vmatprep.subr.mxu0 0.0
      %2269 = vmatpush1.msra.mxu0 0.0
      %2270 = vmatprep.subr.mxu0 0.0
      %2271 = vmatpush1.msra.mxu0 0.0
      %2272 = vmatprep.subr.mxu0 0.0
      %2273 = vmatpush1.msra.mxu0 0.0
      %2274 = vmatprep.subr.mxu0 0.0
      %2275 = vmatpush1.msra.mxu0 0.0
      %2276 = vmatprep.subr.mxu0 0.0
      %2277 = vmatpush1.msra.mxu0 0.0
      %2278 = vmatprep.subr.mxu0 0.0
      %2279 = vmatpush1.msra.mxu0 0.0
      %2280 = vmatprep.subr.mxu0 0.0
      %2281 = vmatpush1.msra.mxu0 0.0
      %2282 = vmatprep.subr.mxu0 0.0
      %2283 = vmatpush1.msra.mxu0 0.0
      %2284 = vmatprep.subr.mxu0 0.0
      %2285 = vmatpush1.msra.mxu0 0.0
      %2286 = vmatprep.subr.mxu0 0.0
      %2287 = vmatpush1.msra.mxu0 0.0
      %2288 = vmatprep.subr.mxu0 0.0
      %2289 = vmatpush1.msra.mxu0 0.0
      %2290 = vmatprep.subr.mxu0 0.0
      %2291 = vmatpush1.msra.mxu0 0.0
      %2292 = vmatprep.subr.mxu0 0.0
      %2293 = vmatpush1.msra.mxu0 0.0
      %2294 = vmatprep.subr.mxu0 0.0
      %2295 = vmatpush1.msra.mxu0 0.0
      %2296 = vmatprep.subr.mxu0 0.0
      %2297 = vmatpush1.msra.mxu0 0.0
      %2298 = vmatprep.subr.mxu0 0.0
      %2299 = vmatpush1.msra.mxu0 0.0
      %2300 = vmatprep.subr.mxu0 0.0
      %2301 = vmatpush1.msra.mxu0 0.0
      %2302 = vmatprep.subr.mxu0 0.0
      %2303 = vmatpush1.msra.mxu0 0.0
      %2304 = vmatprep.subr.mxu0 0.0
      %2305 = vmatpush1.msra.mxu0 0.0
      %2306 = vmatprep.subr.mxu0 0.0
      %2307 = vmatpush1.msra.mxu0 0.0
      %2308 = vmatprep.subr.mxu0 0.0
      %2309 = vmatpush1.msra.mxu0 0.0
      %2310 = vmatprep.subr.mxu0 0.0
      %2311 = vmatpush1.msra.mxu0 0.0
      %2312 = vmatprep.subr.mxu0 0.0
      %2313 = vmatpush1.msra.mxu0 0.0
      %2314 = vmatprep.subr.mxu0 0.0
      %2315 = vmatpush1.msra.mxu0 0.0
      %2316 = vmatprep.mubr.f32.mxu0 0.0
      %2317 = vmatmul.mubr.f32.gmra.mrb[0].mxu0 %v2250
      %v2318 = vpop.f32.mrb[0].mxu0
      %v2319 = vadd.f32 0.0, %v2318
      %v2320 = vpop.f32.mrb[0].mxu0
      %2321 = vdwg.mxu0
      %v2322 = vadd.f32 %v2081, %v2319
      %2323 = vrot.lane.b32.xlu0 %v1841, 112
      %v2324 = vpop.permute.xlu0 %2323
      %2325 = vrot.lane.b32.xlu0 %v1841, 80
      %v2326 = vpop.permute.xlu0 %2325
      %v2327 = vsel %vm358, %v2324, 0
      %v2329 = vsel %vm358, %v2326, 0
      %2331 = vmatprep.subr.mxu0 0.0
      %2332 = vmatpush1.xpose.msra.mxu0 %v2329
      %2333 = vmatprep.subr.mxu0 0.0
      %2334 = vmatpush1.xpose.msra.mxu0 0.0
      %2335 = vmatprep.subr.mxu0 0.0
      %2336 = vmatpush1.xpose.msra.mxu0 0.0
      %2337 = vmatprep.subr.mxu0 0.0
      %2338 = vmatpush1.xpose.msra.mxu0 0.0
      %2339 = vmatprep.subr.mxu0 0.0
      %2340 = vmatpush1.xpose.msra.mxu0 0.0
      %2341 = vmatprep.subr.mxu0 0.0
      %2342 = vmatpush1.xpose.msra.mxu0 0.0
      %2343 = vmatprep.subr.mxu0 0.0
      %2344 = vmatpush1.xpose.msra.mxu0 0.0
      %2345 = vmatprep.subr.mxu0 0.0
      %2346 = vmatpush1.xpose.msra.mxu0 0.0
      %2347 = vmatprep.subr.mxu0 0.0
      %2348 = vmatpush1.xpose.msra.mxu0 0.0
      %2349 = vmatprep.subr.mxu0 0.0
      %2350 = vmatpush1.xpose.msra.mxu0 0.0
      %2351 = vmatprep.subr.mxu0 0.0
      %2352 = vmatpush1.xpose.msra.mxu0 0.0
      %2353 = vmatprep.subr.mxu0 0.0
      %2354 = vmatpush1.xpose.msra.mxu0 0.0
      %2355 = vmatprep.subr.mxu0 0.0
      %2356 = vmatpush1.xpose.msra.mxu0 0.0
      %2357 = vmatprep.subr.mxu0 0.0
      %2358 = vmatpush1.xpose.msra.mxu0 0.0
      %2359 = vmatprep.subr.mxu0 0.0
      %2360 = vmatpush1.xpose.msra.mxu0 0.0
      %2361 = vmatprep.subr.mxu0 0.0
      %2362 = vmatpush1.xpose.msra.mxu0 0.0
      %2363 = vmatprep.subr.mxu0 0.0
      %2364 = vmatpush1.xpose.msra.mxu0 0.0
      %2365 = vmatprep.subr.mxu0 0.0
      %2366 = vmatpush1.xpose.msra.mxu0 0.0
      %2367 = vmatprep.subr.mxu0 0.0
      %2368 = vmatpush1.xpose.msra.mxu0 0.0
      %2369 = vmatprep.subr.mxu0 0.0
      %2370 = vmatpush1.xpose.msra.mxu0 0.0
      %2371 = vmatprep.subr.mxu0 0.0
      %2372 = vmatpush1.xpose.msra.mxu0 0.0
      %2373 = vmatprep.subr.mxu0 0.0
      %2374 = vmatpush1.xpose.msra.mxu0 0.0
      %2375 = vmatprep.subr.mxu0 0.0
      %2376 = vmatpush1.xpose.msra.mxu0 0.0
      %2377 = vmatprep.subr.mxu0 0.0
      %2378 = vmatpush1.xpose.msra.mxu0 0.0
      %2379 = vmatprep.subr.mxu0 0.0
      %2380 = vmatpush1.xpose.msra.mxu0 0.0
      %2381 = vmatprep.subr.mxu0 0.0
      %2382 = vmatpush1.xpose.msra.mxu0 0.0
      %2383 = vmatprep.subr.mxu0 0.0
      %2384 = vmatpush1.xpose.msra.mxu0 0.0
      %2385 = vmatprep.subr.mxu0 0.0
      %2386 = vmatpush1.xpose.msra.mxu0 0.0
      %2387 = vmatprep.subr.mxu0 0.0
      %2388 = vmatpush1.xpose.msra.mxu0 0.0
      %2389 = vmatprep.subr.mxu0 0.0
      %2390 = vmatpush1.xpose.msra.mxu0 0.0
      %2391 = vmatprep.subr.mxu0 0.0
      %2392 = vmatpush1.xpose.msra.mxu0 0.0
      %2393 = vmatprep.subr.mxu0 0.0
      %2394 = vmatpush1.xpose.msra.mxu0 0.0
      %2395 = vmatprep.mubr.f32.mxu0 0.0
      %2396 = vmatmul.mubr.f32.gmra.mrb[0].mxu0 %v2327
      %v2397 = vpop.f32.mrb[0].mxu0
      %v2398 = vadd.f32 0.0, %v2397
      %v2399 = vpop.f32.mrb[0].mxu0
      %2400 = vdwg.mxu0
      %v2401 = vsel %vm358, %v2398, -inf
      %2402 = vmax.xlane.f32.xlu0 %v2401
      %v2403 = vpop.xlane.xlu0 %2402
      %v2404 = vsub.f32 %v2398, %v2403
      %v2405 = vmul.f32 %v2404, 1.442695
      %v2406 = vpow.pop %v2405
      %v2407 = vsel %vm358, %v2406, 0.0
      %2408 = vadd.xlane.f32.xlu0 %v2407
      %v2409 = vpop.xlane.xlu0 %2408
      %v2410 = vrcp.pop %v2409
      %v2411 = vmul.f32 %v2406, %v2410
      %2412 = vrot.lane.b32.xlu0 %v1841, 48
      %v2413 = vpop.permute.xlu0 %2412
      %v2416 = vsel %vm358, %v2411, 0
      %2418 = vmatprep.subr.mxu0 0.0
      %2419 = vmatpush1.msra.mxu0 %v2413
      %2420 = vmatprep.subr.mxu0 0.0
      %2421 = vmatpush1.msra.mxu0 0.0
      %2422 = vmatprep.subr.mxu0 0.0
      %2423 = vmatpush1.msra.mxu0 0.0
      %2424 = vmatprep.subr.mxu0 0.0
      %2425 = vmatpush1.msra.mxu0 0.0
      %2426 = vmatprep.subr.mxu0 0.0
      %2427 = vmatpush1.msra.mxu0 0.0
      %2428 = vmatprep.subr.mxu0 0.0
      %2429 = vmatpush1.msra.mxu0 0.0
      %2430 = vmatprep.subr.mxu0 0.0
      %2431 = vmatpush1.msra.mxu0 0.0
      %2432 = vmatprep.subr.mxu0 0.0
      %2433 = vmatpush1.msra.mxu0 0.0
      %2434 = vmatprep.subr.mxu0 0.0
      %2435 = vmatpush1.msra.mxu0 0.0
      %2436 = vmatprep.subr.mxu0 0.0
      %2437 = vmatpush1.msra.mxu0 0.0
      %2438 = vmatprep.subr.mxu0 0.0
      %2439 = vmatpush1.msra.mxu0 0.0
      %2440 = vmatprep.subr.mxu0 0.0
      %2441 = vmatpush1.msra.mxu0 0.0
      %2442 = vmatprep.subr.mxu0 0.0
      %2443 = vmatpush1.msra.mxu0 0.0
      %2444 = vmatprep.subr.mxu0 0.0
      %2445 = vmatpush1.msra.mxu0 0.0
      %2446 = vmatprep.subr.mxu0 0.0
      %2447 = vmatpush1.msra.mxu0 0.0
      %2448 = vmatprep.subr.mxu0 0.0
      %2449 = vmatpush1.msra.mxu0 0.0
      %2450 = vmatprep.subr.mxu0 0.0
      %2451 = vmatpush1.msra.mxu0 0.0
      %2452 = vmatprep.subr.mxu0 0.0
      %2453 = vmatpush1.msra.mxu0 0.0
      %2454 = vmatprep.subr.mxu0 0.0
      %2455 = vmatpush1.msra.mxu0 0.0
      %2456 = vmatprep.subr.mxu0 0.0
      %2457 = vmatpush1.msra.mxu0 0.0
      %2458 = vmatprep.subr.mxu0 0.0
      %2459 = vmatpush1.msra.mxu0 0.0
      %2460 = vmatprep.subr.mxu0 0.0
      %2461 = vmatpush1.msra.mxu0 0.0
      %2462 = vmatprep.subr.mxu0 0.0
      %2463 = vmatpush1.msra.mxu0 0.0
      %2464 = vmatprep.subr.mxu0 0.0
      %2465 = vmatpush1.msra.mxu0 0.0
      %2466 = vmatprep.subr.mxu0 0.0
      %2467 = vmatpush1.msra.mxu0 0.0
      %2468 = vmatprep.subr.mxu0 0.0
      %2469 = vmatpush1.msra.mxu0 0.0
      %2470 = vmatprep.subr.mxu0 0.0
      %2471 = vmatpush1.msra.mxu0 0.0
      %2472 = vmatprep.subr.mxu0 0.0
      %2473 = vmatpush1.msra.mxu0 0.0
      %2474 = vmatprep.subr.mxu0 0.0
      %2475 = vmatpush1.msra.mxu0 0.0
      %2476 = vmatprep.subr.mxu0 0.0
      %2477 = vmatpush1.msra.mxu0 0.0
      %2478 = vmatprep.subr.mxu0 0.0
      %2479 = vmatpush1.msra.mxu0 0.0
      %2480 = vmatprep.subr.mxu0 0.0
      %2481 = vmatpush1.msra.mxu0 0.0
      %2482 = vmatprep.mubr.f32.mxu0 0.0
      %2483 = vmatmul.mubr.f32.gmra.mrb[0].mxu0 %v2416
      %v2484 = vpop.f32.mrb[0].mxu0
      %v2485 = vadd.f32 0.0, %v2484
      %v2486 = vpop.f32.mrb[0].mxu0
      %2487 = vdwg.mxu0
      %v2489 = vsel %vm358, %v2485, 0
      %2491 = vmatprep.subr.mxu0 0.0
      %2492 = vmatpush1.msra.mxu0 %v1844
      %2493 = vmatprep.subr.mxu0 0.0
      %2494 = vmatpush1.msra.mxu0 0.0
      %2495 = vmatprep.subr.mxu0 0.0
      %2496 = vmatpush1.msra.mxu0 0.0
      %2497 = vmatprep.subr.mxu0 0.0
      %2498 = vmatpush1.msra.mxu0 0.0
      %2499 = vmatprep.subr.mxu0 0.0
      %2500 = vmatpush1.msra.mxu0 0.0
      %2501 = vmatprep.subr.mxu0 0.0
      %2502 = vmatpush1.msra.mxu0 0.0
      %2503 = vmatprep.subr.mxu0 0.0
      %2504 = vmatpush1.msra.mxu0 0.0
      %2505 = vmatprep.subr.mxu0 0.0
      %2506 = vmatpush1.msra.mxu0 0.0
      %2507 = vmatprep.subr.mxu0 0.0
      %2508 = vmatpush1.msra.mxu0 0.0
      %2509 = vmatprep.subr.mxu0 0.0
      %2510 = vmatpush1.msra.mxu0 0.0
      %2511 = vmatprep.subr.mxu0 0.0
      %2512 = vmatpush1.msra.mxu0 0.0
      %2513 = vmatprep.subr.mxu0 0.0
      %2514 = vmatpush1.msra.mxu0 0.0
      %2515 = vmatprep.subr.mxu0 0.0
      %2516 = vmatpush1.msra.mxu0 0.0
      %2517 = vmatprep.subr.mxu0 0.0
      %2518 = vmatpush1.msra.mxu0 0.0
      %2519 = vmatprep.subr.mxu0 0.0
      %2520 = vmatpush1.msra.mxu0 0.0
      %2521 = vmatprep.subr.mxu0 0.0
      %2522 = vmatpush1.msra.mxu0 0.0
      %2523 = vmatprep.subr.mxu0 0.0
      %2524 = vmatpush1.msra.mxu0 0.0
      %2525 = vmatprep.subr.mxu0 0.0
      %2526 = vmatpush1.msra.mxu0 0.0
      %2527 = vmatprep.subr.mxu0 0.0
      %2528 = vmatpush1.msra.mxu0 0.0
      %2529 = vmatprep.subr.mxu0 0.0
      %2530 = vmatpush1.msra.mxu0 0.0
      %2531 = vmatprep.subr.mxu0 0.0
      %2532 = vmatpush1.msra.mxu0 0.0
      %2533 = vmatprep.subr.mxu0 0.0
      %2534 = vmatpush1.msra.mxu0 0.0
      %2535 = vmatprep.subr.mxu0 0.0
      %2536 = vmatpush1.msra.mxu0 0.0
      %2537 = vmatprep.subr.mxu0 0.0
      %2538 = vmatpush1.msra.mxu0 0.0
      %2539 = vmatprep.subr.mxu0 0.0
      %2540 = vmatpush1.msra.mxu0 0.0
      %2541 = vmatprep.subr.mxu0 0.0
      %2542 = vmatpush1.msra.mxu0 0.0
      %2543 = vmatprep.subr.mxu0 0.0
      %2544 = vmatpush1.msra.mxu0 0.0
      %2545 = vmatprep.subr.mxu0 0.0
      %2546 = vmatpush1.msra.mxu0 0.0
      %2547 = vmatprep.subr.mxu0 0.0
      %2548 = vmatpush1.msra.mxu0 0.0
      %2549 = vmatprep.subr.mxu0 0.0
      %2550 = vmatpush1.msra.mxu0 0.0
      %2551 = vmatprep.subr.mxu0 0.0
      %2552 = vmatpush1.msra.mxu0 0.0
      %2553 = vmatprep.subr.mxu0 0.0
      %2554 = vmatpush1.msra.mxu0 0.0
      %2555 = vmatprep.mubr.f32.mxu0 0.0
      %2556 = vmatmul.mubr.f32.gmra.mrb[0].mxu0 %v2489
      %v2557 = vpop.f32.mrb[0].mxu0
      %v2558 = vadd.f32 0.0, %v2557
      %v2559 = vpop.f32.mrb[0].mxu0
      %2560 = vdwg.mxu0
      %v2561 = vadd.f32 %v2322, %v2558
      %2562 = vrot.lane.b32.xlu0 %v1841, 104
      %v2563 = vpop.permute.xlu0 %2562
      %2564 = vrot.lane.b32.xlu0 %v1841, 72
      %v2565 = vpop.permute.xlu0 %2564
      %v2566 = vsel %vm358, %v2563, 0
      %v2568 = vsel %vm358, %v2565, 0
      %2570 = vmatprep.subr.mxu0 0.0
      %2571 = vmatpush1.xpose.msra.mxu0 %v2568
      %2572 = vmatprep.subr.mxu0 0.0
      %2573 = vmatpush1.xpose.msra.mxu0 0.0
      %2574 = vmatprep.subr.mxu0 0.0
      %2575 = vmatpush1.xpose.msra.mxu0 0.0
      %2576 = vmatprep.subr.mxu0 0.0
      %2577 = vmatpush1.xpose.msra.mxu0 0.0
      %2578 = vmatprep.subr.mxu0 0.0
      %2579 = vmatpush1.xpose.msra.mxu0 0.0
      %2580 = vmatprep.subr.mxu0 0.0
      %2581 = vmatpush1.xpose.msra.mxu0 0.0
      %2582 = vmatprep.subr.mxu0 0.0
      %2583 = vmatpush1.xpose.msra.mxu0 0.0
      %2584 = vmatprep.subr.mxu0 0.0
      %2585 = vmatpush1.xpose.msra.mxu0 0.0
      %2586 = vmatprep.subr.mxu0 0.0
      %2587 = vmatpush1.xpose.msra.mxu0 0.0
      %2588 = vmatprep.subr.mxu0 0.0
      %2589 = vmatpush1.xpose.msra.mxu0 0.0
      %2590 = vmatprep.subr.mxu0 0.0
      %2591 = vmatpush1.xpose.msra.mxu0 0.0
      %2592 = vmatprep.subr.mxu0 0.0
      %2593 = vmatpush1.xpose.msra.mxu0 0.0
      %2594 = vmatprep.subr.mxu0 0.0
      %2595 = vmatpush1.xpose.msra.mxu0 0.0
      %2596 = vmatprep.subr.mxu0 0.0
      %2597 = vmatpush1.xpose.msra.mxu0 0.0
      %2598 = vmatprep.subr.mxu0 0.0
      %2599 = vmatpush1.xpose.msra.mxu0 0.0
      %2600 = vmatprep.subr.mxu0 0.0
      %2601 = vmatpush1.xpose.msra.mxu0 0.0
      %2602 = vmatprep.subr.mxu0 0.0
      %2603 = vmatpush1.xpose.msra.mxu0 0.0
      %2604 = vmatprep.subr.mxu0 0.0
      %2605 = vmatpush1.xpose.msra.mxu0 0.0
      %2606 = vmatprep.subr.mxu0 0.0
      %2607 = vmatpush1.xpose.msra.mxu0 0.0
      %2608 = vmatprep.subr.mxu0 0.0
      %2609 = vmatpush1.xpose.msra.mxu0 0.0
      %2610 = vmatprep.subr.mxu0 0.0
      %2611 = vmatpush1.xpose.msra.mxu0 0.0
      %2612 = vmatprep.subr.mxu0 0.0
      %2613 = vmatpush1.xpose.msra.mxu0 0.0
      %2614 = vmatprep.subr.mxu0 0.0
      %2615 = vmatpush1.xpose.msra.mxu0 0.0
      %2616 = vmatprep.subr.mxu0 0.0
      %2617 = vmatpush1.xpose.msra.mxu0 0.0
      %2618 = vmatprep.subr.mxu0 0.0
      %2619 = vmatpush1.xpose.msra.mxu0 0.0
      %2620 = vmatprep.subr.mxu0 0.0
      %2621 = vmatpush1.xpose.msra.mxu0 0.0
      %2622 = vmatprep.subr.mxu0 0.0
      %2623 = vmatpush1.xpose.msra.mxu0 0.0
      %2624 = vmatprep.subr.mxu0 0.0
      %2625 = vmatpush1.xpose.msra.mxu0 0.0
      %2626 = vmatprep.subr.mxu0 0.0
      %2627 = vmatpush1.xpose.msra.mxu0 0.0
      %2628 = vmatprep.subr.mxu0 0.0
      %2629 = vmatpush1.xpose.msra.mxu0 0.0
      %2630 = vmatprep.subr.mxu0 0.0
      %2631 = vmatpush1.xpose.msra.mxu0 0.0
      %2632 = vmatprep.subr.mxu0 0.0
      %2633 = vmatpush1.xpose.msra.mxu0 0.0
      %2634 = vmatprep.mubr.f32.mxu0 0.0
      %2635 = vmatmul.mubr.f32.gmra.mrb[0].mxu0 %v2566
      %v2636 = vpop.f32.mrb[0].mxu0
      %v2637 = vadd.f32 0.0, %v2636
      %v2638 = vpop.f32.mrb[0].mxu0
      %2639 = vdwg.mxu0
      %v2640 = vsel %vm358, %v2637, -inf
      %2641 = vmax.xlane.f32.xlu0 %v2640
      %v2642 = vpop.xlane.xlu0 %2641
      %v2643 = vsub.f32 %v2637, %v2642
      %v2644 = vmul.f32 %v2643, 1.442695
      %v2645 = vpow.pop %v2644
      %v2646 = vsel %vm358, %v2645, 0.0
      %2647 = vadd.xlane.f32.xlu0 %v2646
      %v2648 = vpop.xlane.xlu0 %2647
      %v2649 = vrcp.pop %v2648
      %v2650 = vmul.f32 %v2645, %v2649
      %2651 = vrot.lane.b32.xlu0 %v1841, 40
      %v2652 = vpop.permute.xlu0 %2651
      %v2655 = vsel %vm358, %v2650, 0
      %2657 = vmatprep.subr.mxu0 0.0
      %2658 = vmatpush1.msra.mxu0 %v2652
      %2659 = vmatprep.subr.mxu0 0.0
      %2660 = vmatpush1.msra.mxu0 0.0
      %2661 = vmatprep.subr.mxu0 0.0
      %2662 = vmatpush1.msra.mxu0 0.0
      %2663 = vmatprep.subr.mxu0 0.0
      %2664 = vmatpush1.msra.mxu0 0.0
      %2665 = vmatprep.subr.mxu0 0.0
      %2666 = vmatpush1.msra.mxu0 0.0
      %2667 = vmatprep.subr.mxu0 0.0
      %2668 = vmatpush1.msra.mxu0 0.0
      %2669 = vmatprep.subr.mxu0 0.0
      %2670 = vmatpush1.msra.mxu0 0.0
      %2671 = vmatprep.subr.mxu0 0.0
      %2672 = vmatpush1.msra.mxu0 0.0
      %2673 = vmatprep.subr.mxu0 0.0
      %2674 = vmatpush1.msra.mxu0 0.0
      %2675 = vmatprep.subr.mxu0 0.0
      %2676 = vmatpush1.msra.mxu0 0.0
      %2677 = vmatprep.subr.mxu0 0.0
      %2678 = vmatpush1.msra.mxu0 0.0
      %2679 = vmatprep.subr.mxu0 0.0
      %2680 = vmatpush1.msra.mxu0 0.0
      %2681 = vmatprep.subr.mxu0 0.0
      %2682 = vmatpush1.msra.mxu0 0.0
      %2683 = vmatprep.subr.mxu0 0.0
      %2684 = vmatpush1.msra.mxu0 0.0
      %2685 = vmatprep.subr.mxu0 0.0
      %2686 = vmatpush1.msra.mxu0 0.0
      %2687 = vmatprep.subr.mxu0 0.0
      %2688 = vmatpush1.msra.mxu0 0.0
      %2689 = vmatprep.subr.mxu0 0.0
      %2690 = vmatpush1.msra.mxu0 0.0
      %2691 = vmatprep.subr.mxu0 0.0
      %2692 = vmatpush1.msra.mxu0 0.0
      %2693 = vmatprep.subr.mxu0 0.0
      %2694 = vmatpush1.msra.mxu0 0.0
      %2695 = vmatprep.subr.mxu0 0.0
      %2696 = vmatpush1.msra.mxu0 0.0
      %2697 = vmatprep.subr.mxu0 0.0
      %2698 = vmatpush1.msra.mxu0 0.0
      %2699 = vmatprep.subr.mxu0 0.0
      %2700 = vmatpush1.msra.mxu0 0.0
      %2701 = vmatprep.subr.mxu0 0.0
      %2702 = vmatpush1.msra.mxu0 0.0
      %2703 = vmatprep.subr.mxu0 0.0
      %2704 = vmatpush1.msra.mxu0 0.0
      %2705 = vmatprep.subr.mxu0 0.0
      %2706 = vmatpush1.msra.mxu0 0.0
      %2707 = vmatprep.subr.mxu0 0.0
      %2708 = vmatpush1.msra.mxu0 0.0
      %2709 = vmatprep.subr.mxu0 0.0
      %2710 = vmatpush1.msra.mxu0 0.0
      %2711 = vmatprep.subr.mxu0 0.0
      %2712 = vmatpush1.msra.mxu0 0.0
      %2713 = vmatprep.subr.mxu0 0.0
      %2714 = vmatpush1.msra.mxu0 0.0
      %2715 = vmatprep.subr.mxu0 0.0
      %2716 = vmatpush1.msra.mxu0 0.0
      %2717 = vmatprep.subr.mxu0 0.0
      %2718 = vmatpush1.msra.mxu0 0.0
      %2719 = vmatprep.subr.mxu0 0.0
      %2720 = vmatpush1.msra.mxu0 0.0
      %2721 = vmatprep.mubr.f32.mxu0 0.0
      %2722 = vmatmul.mubr.f32.gmra.mrb[0].mxu0 %v2655
      %v2723 = vpop.f32.mrb[0].mxu0
      %v2724 = vadd.f32 0.0, %v2723
      %v2725 = vpop.f32.mrb[0].mxu0
      %2726 = vdwg.mxu0
      %v2728 = vsel %vm358, %v2724, 0
      %2730 = vmatprep.subr.mxu0 0.0
      %2731 = vmatpush1.msra.mxu0 %v1845
      %2732 = vmatprep.subr.mxu0 0.0
      %2733 = vmatpush1.msra.mxu0 0.0
      %2734 = vmatprep.subr.mxu0 0.0
      %2735 = vmatpush1.msra.mxu0 0.0
      %2736 = vmatprep.subr.mxu0 0.0
      %2737 = vmatpush1.msra.mxu0 0.0
      %2738 = vmatprep.subr.mxu0 0.0
      %2739 = vmatpush1.msra.mxu0 0.0
      %2740 = vmatprep.subr.mxu0 0.0
      %2741 = vmatpush1.msra.mxu0 0.0
      %2742 = vmatprep.subr.mxu0 0.0
      %2743 = vmatpush1.msra.mxu0 0.0
      %2744 = vmatprep.subr.mxu0 0.0
      %2745 = vmatpush1.msra.mxu0 0.0
      %2746 = vmatprep.subr.mxu0 0.0
      %2747 = vmatpush1.msra.mxu0 0.0
      %2748 = vmatprep.subr.mxu0 0.0
      %2749 = vmatpush1.msra.mxu0 0.0
      %2750 = vmatprep.subr.mxu0 0.0
      %2751 = vmatpush1.msra.mxu0 0.0
      %2752 = vmatprep.subr.mxu0 0.0
      %2753 = vmatpush1.msra.mxu0 0.0
      %2754 = vmatprep.subr.mxu0 0.0
      %2755 = vmatpush1.msra.mxu0 0.0
      %2756 = vmatprep.subr.mxu0 0.0
      %2757 = vmatpush1.msra.mxu0 0.0
      %2758 = vmatprep.subr.mxu0 0.0
      %2759 = vmatpush1.msra.mxu0 0.0
      %2760 = vmatprep.subr.mxu0 0.0
      %2761 = vmatpush1.msra.mxu0 0.0
      %2762 = vmatprep.subr.mxu0 0.0
      %2763 = vmatpush1.msra.mxu0 0.0
      %2764 = vmatprep.subr.mxu0 0.0
      %2765 = vmatpush1.msra.mxu0 0.0
      %2766 = vmatprep.subr.mxu0 0.0
      %2767 = vmatpush1.msra.mxu0 0.0
      %2768 = vmatprep.subr.mxu0 0.0
      %2769 = vmatpush1.msra.mxu0 0.0
      %2770 = vmatprep.subr.mxu0 0.0
      %2771 = vmatpush1.msra.mxu0 0.0
      %2772 = vmatprep.subr.mxu0 0.0
      %2773 = vmatpush1.msra.mxu0 0.0
      %2774 = vmatprep.subr.mxu0 0.0
      %2775 = vmatpush1.msra.mxu0 0.0
      %2776 = vmatprep.subr.mxu0 0.0
      %2777 = vmatpush1.msra.mxu0 0.0
      %2778 = vmatprep.subr.mxu0 0.0
      %2779 = vmatpush1.msra.mxu0 0.0
      %2780 = vmatprep.subr.mxu0 0.0
      %2781 = vmatpush1.msra.mxu0 0.0
      %2782 = vmatprep.subr.mxu0 0.0
      %2783 = vmatpush1.msra.mxu0 0.0
      %2784 = vmatprep.subr.mxu0 0.0
      %2785 = vmatpush1.msra.mxu0 0.0
      %2786 = vmatprep.subr.mxu0 0.0
      %2787 = vmatpush1.msra.mxu0 0.0
      %2788 = vmatprep.subr.mxu0 0.0
      %2789 = vmatpush1.msra.mxu0 0.0
      %2790 = vmatprep.subr.mxu0 0.0
      %2791 = vmatpush1.msra.mxu0 0.0
      %2792 = vmatprep.subr.mxu0 0.0
      %2793 = vmatpush1.msra.mxu0 0.0
      %2794 = vmatprep.mubr.f32.mxu0 0.0
      %2795 = vmatmul.mubr.f32.gmra.mrb[0].mxu0 %v2728
      %v2796 = vpop.f32.mrb[0].mxu0
      %v2797 = vadd.f32 0.0, %v2796
      %v2798 = vpop.f32.mrb[0].mxu0
      %2799 = vdwg.mxu0
      %v2800 = vadd.f32 %v2561, %v2797
      %v2801 = vlaneseq
      %v2802 = vshrl.u32 %v2801, 7
      %v2803 = vsub.s32 0, %v2802
      %v2804 = vrot.slane %v1846, %v2803
      %v2805 = vadd.f32 %v2800, %v2804
      %v2806 = vadd.f32 %v2805, 0.0
      %v2807 = vld [vmem:[%s1 + $0x200] sm:$0x1]
      %v2808 = vld [vmem:[%s1 + $0x208] sm:$0x1]
      %v2809 = vsel %vm261, %v2806, 0.0
      %2810 = vadd.xlane.f32.xlu0 %v2809
      %v2811 = vpop.xlane.xlu0 %2810
      %v2812 = vmul.f32 %v2811, %v1498
      %v2813 = vsub.f32 %v2806, %v2812
      %v2814 = vmul.f32 %v2813, %v2813
      %v2815 = vsel %vm261, %v2814, 0.0
      %2816 = vadd.xlane.f32.xlu0 %v2815
      %v2817 = vpop.xlane.xlu0 %2816
      %v2818 = vmul.f32 %v2817, %v1498
      %v2819 = vadd.f32 %v2818, 1e-05
      %v2820 = vrsqrt.pop %v2819
      %v2821 = vmul.f32 %v2813, %v2820
      %v2822 = vlaneseq
      %v2823 = vshrl.u32 %v2822, 7
      %v2824 = vsub.s32 0, %v2823
      %v2825 = vrot.slane %v2807, %v2824
      %v2826 = vmul.f32 %v2821, %v2825
      %v2827 = vlaneseq
      %v2828 = vshrl.u32 %v2827, 7
      %v2829 = vsub.s32 0, %v2828
      %v2830 = vrot.slane %v2808, %v2829
      %v2831 = vadd.f32 %v2826, %v2830
      %v2832 = vld [vmem:[%s1 + $0x210] sm:$0xff]
      %v2833 = vld [vmem:[%s1 + $0x218] sm:$0xff]
      %v2834 = vld [vmem:[%s1 + $0x220] sm:$0xff]
      %v2835 = vld [vmem:[%s1 + $0x228] sm:$0xff]
      %v2837 = vsel %vm261, %v2831, 0
      %2839 = vmatprep.subr.mxu0 0.0
      %2840 = vmatpush1.msra.mxu0 %v2832
      %2841 = vmatprep.subr.mxu0 0.0
      %2842 = vmatpush1.msra.mxu0 %v2833
      %2843 = vmatprep.subr.mxu0 0.0
      %2844 = vmatpush1.msra.mxu0 %v2834
      %2845 = vmatprep.subr.mxu0 0.0
      %2846 = vmatpush1.msra.mxu0 %v2835
      %2847 = vmatprep.subr.mxu0 0.0
      %2848 = vmatpush1.msra.mxu0 0.0
      %2849 = vmatprep.subr.mxu0 0.0
      %2850 = vmatpush1.msra.mxu0 0.0
      %2851 = vmatprep.subr.mxu0 0.0
      %2852 = vmatpush1.msra.mxu0 0.0
      %2853 = vmatprep.subr.mxu0 0.0
      %2854 = vmatpush1.msra.mxu0 0.0
      %2855 = vmatprep.subr.mxu0 0.0
      %2856 = vmatpush1.msra.mxu0 0.0
      %2857 = vmatprep.subr.mxu0 0.0
      %2858 = vmatpush1.msra.mxu0 0.0
      %2859 = vmatprep.subr.mxu0 0.0
      %2860 = vmatpush1.msra.mxu0 0.0
      %2861 = vmatprep.subr.mxu0 0.0
      %2862 = vmatpush1.msra.mxu0 0.0
      %2863 = vmatprep.subr.mxu0 0.0
      %2864 = vmatpush1.msra.mxu0 0.0
      %2865 = vmatprep.subr.mxu0 0.0
      %2866 = vmatpush1.msra.mxu0 0.0
      %2867 = vmatprep.subr.mxu0 0.0
      %2868 = vmatpush1.msra.mxu0 0.0
      %2869 = vmatprep.subr.mxu0 0.0
      %2870 = vmatpush1.msra.mxu0 0.0
      %2871 = vmatprep.subr.mxu0 0.0
      %2872 = vmatpush1.msra.mxu0 0.0
      %2873 = vmatprep.subr.mxu0 0.0
      %2874 = vmatpush1.msra.mxu0 0.0
      %2875 = vmatprep.subr.mxu0 0.0
      %2876 = vmatpush1.msra.mxu0 0.0
      %2877 = vmatprep.subr.mxu0 0.0
      %2878 = vmatpush1.msra.mxu0 0.0
      %2879 = vmatprep.subr.mxu0 0.0
      %2880 = vmatpush1.msra.mxu0 0.0
      %2881 = vmatprep.subr.mxu0 0.0
      %2882 = vmatpush1.msra.mxu0 0.0
      %2883 = vmatprep.subr.mxu0 0.0
      %2884 = vmatpush1.msra.mxu0 0.0
      %2885 = vmatprep.subr.mxu0 0.0
      %2886 = vmatpush1.msra.mxu0 0.0
      %2887 = vmatprep.subr.mxu0 0.0
      %2888 = vmatpush1.msra.mxu0 0.0
      %2889 = vmatprep.subr.mxu0 0.0
      %2890 = vmatpush1.msra.mxu0 0.0
      %2891 = vmatprep.subr.mxu0 0.0
      %2892 = vmatpush1.msra.mxu0 0.0
      %2893 = vmatprep.subr.mxu0 0.0
      %2894 = vmatpush1.msra.mxu0 0.0
      %2895 = vmatprep.subr.mxu0 0.0
      %2896 = vmatpush1.msra.mxu0 0.0
      %2897 = vmatprep.subr.mxu0 0.0
      %2898 = vmatpush1.msra.mxu0 0.0
      %2899 = vmatprep.subr.mxu0 0.0
      %2900 = vmatpush1.msra.mxu0 0.0
      %2901 = vmatprep.subr.mxu0 0.0
      %2902 = vmatpush1.msra.mxu0 0.0
      %2903 = vmatprep.mubr.f32.mxu0 0.0
      %2904 = vmatmul.mubr.f32.gmra.mrb[0].mxu0 %v2837
      %v2905 = vpop.f32.mrb[0].mxu0
      %v2906 = vadd.f32 0.0, %v2905
      %v2907 = vpop.f32.mrb[0].mxu0
      %2908 = vdwg.mxu0
      %v2909 = vld [vmem:[%s1 + $0x230] sm:$0xff]
      %v2910 = vadd.f32 %v2906, %v2909
      %v2911 = vld [vmem:[%s1 + $0x238] sm:$0xff]
      %v2912 = vld [vmem:[%s1 + $0x240] sm:$0xff]
      %v2913 = vld [vmem:[%s1 + $0x248] sm:$0xff]
      %v2914 = vld [vmem:[%s1 + $0x250] sm:$0xff]
      %v2916 = vsel %vm261, %v1761, 0
      %v2919 = vsel %vm261, %v1762, 0
      %2921 = vmatprep.subr.mxu0 0.0
      %2922 = vmatpush1.msra.mxu0 %v2911
      %2923 = vmatprep.subr.mxu0 0.0
      %2924 = vmatpush1.msra.mxu0 %v2912
      %2925 = vmatprep.subr.mxu0 0.0
      %2926 = vmatpush1.msra.mxu0 %v2913
      %2927 = vmatprep.subr.mxu0 0.0
      %2928 = vmatpush1.msra.mxu0 %v2914
      %2929 = vmatprep.subr.mxu0 0.0
      %2930 = vmatpush1.msra.mxu0 0.0
      %2931 = vmatprep.subr.mxu0 0.0
      %2932 = vmatpush1.msra.mxu0 0.0
      %2933 = vmatprep.subr.mxu0 0.0
      %2934 = vmatpush1.msra.mxu0 0.0
      %2935 = vmatprep.subr.mxu0 0.0
      %2936 = vmatpush1.msra.mxu0 0.0
      %2937 = vmatprep.subr.mxu0 0.0
      %2938 = vmatpush1.msra.mxu0 0.0
      %2939 = vmatprep.subr.mxu0 0.0
      %2940 = vmatpush1.msra.mxu0 0.0
      %2941 = vmatprep.subr.mxu0 0.0
      %2942 = vmatpush1.msra.mxu0 0.0
      %2943 = vmatprep.subr.mxu0 0.0
      %2944 = vmatpush1.msra.mxu0 0.0
      %2945 = vmatprep.subr.mxu0 0.0
      %2946 = vmatpush1.msra.mxu0 0.0
      %2947 = vmatprep.subr.mxu0 0.0
      %2948 = vmatpush1.msra.mxu0 0.0
      %2949 = vmatprep.subr.mxu0 0.0
      %2950 = vmatpush1.msra.mxu0 0.0
      %2951 = vmatprep.subr.mxu0 0.0
      %2952 = vmatpush1.msra.mxu0 0.0
      %2953 = vmatprep.subr.mxu0 0.0
      %2954 = vmatpush1.msra.mxu0 0.0
      %2955 = vmatprep.subr.mxu0 0.0
      %2956 = vmatpush1.msra.mxu0 0.0
      %2957 = vmatprep.subr.mxu0 0.0
      %2958 = vmatpush1.msra.mxu0 0.0
      %2959 = vmatprep.subr.mxu0 0.0
      %2960 = vmatpush1.msra.mxu0 0.0
      %2961 = vmatprep.subr.mxu0 0.0
      %2962 = vmatpush1.msra.mxu0 0.0
      %2963 = vmatprep.subr.mxu0 0.0
      %2964 = vmatpush1.msra.mxu0 0.0
      %2965 = vmatprep.subr.mxu0 0.0
      %2966 = vmatpush1.msra.mxu0 0.0
      %2967 = vmatprep.subr.mxu0 0.0
      %2968 = vmatpush1.msra.mxu0 0.0
      %2969 = vmatprep.subr.mxu0 0.0
      %2970 = vmatpush1.msra.mxu0 0.0
      %2971 = vmatprep.subr.mxu0 0.0
      %2972 = vmatpush1.msra.mxu0 0.0
      %2973 = vmatprep.subr.mxu0 0.0
      %2974 = vmatpush1.msra.mxu0 0.0
      %2975 = vmatprep.subr.mxu0 0.0
      %2976 = vmatpush1.msra.mxu0 0.0
      %2977 = vmatprep.subr.mxu0 0.0
      %2978 = vmatpush1.msra.mxu0 0.0
      %2979 = vmatprep.subr.mxu0 0.0
      %2980 = vmatpush1.msra.mxu0 0.0
      %2981 = vmatprep.subr.mxu0 0.0
      %2982 = vmatpush1.msra.mxu0 0.0
      %2983 = vmatprep.subr.mxu0 0.0
      %2984 = vmatpush1.msra.mxu0 0.0
      %2985 = vmatprep.mubr.f32.mxu0 0.0
      %2986 = vmatmul.mubr.f32.gmra.mrb[0].mxu0 %v2916
      %v2987 = vpop.f32.mrb[0].mxu0
      %v2988 = vadd.f32 0.0, %v2987
      %v2989 = vpop.f32.mrb[0].mxu0
      %2990 = vmatprep.mubr.f32.mxu0 0.0
      %2991 = vmatmul.mubr.f32.gmra.mrb[0].mxu0 %v2919
      %v2992 = vpop.f32.mrb[0].mxu0
      %v2993 = vadd.f32 0.0, %v2992
      %v2994 = vpop.f32.mrb[0].mxu0
      %2995 = vdwg.mxu0
      %v2996 = vld [vmem:[%s1 + $0x258] sm:$0xff]
      %v2997 = vld [vmem:[%s1 + $0x260] sm:$0xff]
      %v2998 = vadd.f32 %v2988, %v2996
      %v2999 = vadd.f32 %v2993, %v2997
      %v3000 = vld [vmem:[%s1 + $0x268] sm:$0xff]
      %v3001 = vld [vmem:[%s1 + $0x270] sm:$0xff]
      %v3002 = vld [vmem:[%s1 + $0x278] sm:$0xff]
      %v3003 = vld [vmem:[%s1 + $0x280] sm:$0xff]
      %v3004 = vld [vmem:[%s1 + $0x288] sm:$0x1]
      %v3006 = vsel %vm358, %v2910, 0
      %v3009 = vsel %vm358, %v2998, 0
      %v3012 = vsel %vm358, %v2999, 0
      %3014 = vmatprep.subr.mxu0 0.0
      %3015 = vmatpush1.xpose.msra.mxu0 %v3009
      %3016 = vmatprep.subr.mxu0 0.0
      %3017 = vmatpush1.xpose.msra.mxu0 %v3012
      %3018 = vmatprep.subr.mxu0 0.0
      %3019 = vmatpush1.xpose.msra.mxu0 0.0
      %3020 = vmatprep.subr.mxu0 0.0
      %3021 = vmatpush1.xpose.msra.mxu0 0.0
      %3022 = vmatprep.subr.mxu0 0.0
      %3023 = vmatpush1.xpose.msra.mxu0 0.0
      %3024 = vmatprep.subr.mxu0 0.0
      %3025 = vmatpush1.xpose.msra.mxu0 0.0
      %3026 = vmatprep.subr.mxu0 0.0
      %3027 = vmatpush1.xpose.msra.mxu0 0.0
      %3028 = vmatprep.subr.mxu0 0.0
      %3029 = vmatpush1.xpose.msra.mxu0 0.0
      %3030 = vmatprep.subr.mxu0 0.0
      %3031 = vmatpush1.xpose.msra.mxu0 0.0
      %3032 = vmatprep.subr.mxu0 0.0
      %3033 = vmatpush1.xpose.msra.mxu0 0.0
      %3034 = vmatprep.subr.mxu0 0.0
      %3035 = vmatpush1.xpose.msra.mxu0 0.0
      %3036 = vmatprep.subr.mxu0 0.0
      %3037 = vmatpush1.xpose.msra.mxu0 0.0
      %3038 = vmatprep.subr.mxu0 0.0
      %3039 = vmatpush1.xpose.msra.mxu0 0.0
      %3040 = vmatprep.subr.mxu0 0.0
      %3041 = vmatpush1.xpose.msra.mxu0 0.0
      %3042 = vmatprep.subr.mxu0 0.0
      %3043 = vmatpush1.xpose.msra.mxu0 0.0
      %3044 = vmatprep.subr.mxu0 0.0
      %3045 = vmatpush1.xpose.msra.mxu0 0.0
      %3046 = vmatprep.subr.mxu0 0.0
      %3047 = vmatpush1.xpose.msra.mxu0 0.0
      %3048 = vmatprep.subr.mxu0 0.0
      %3049 = vmatpush1.xpose.msra.mxu0 0.0
      %3050 = vmatprep.subr.mxu0 0.0
      %3051 = vmatpush1.xpose.msra.mxu0 0.0
      %3052 = vmatprep.subr.mxu0 0.0
      %3053 = vmatpush1.xpose.msra.mxu0 0.0
      %3054 = vmatprep.subr.mxu0 0.0
      %3055 = vmatpush1.xpose.msra.mxu0 0.0
      %3056 = vmatprep.subr.mxu0 0.0
      %3057 = vmatpush1.xpose.msra.mxu0 0.0
      %3058 = vmatprep.subr.mxu0 0.0
      %3059 = vmatpush1.xpose.msra.mxu0 0.0
      %3060 = vmatprep.subr.mxu0 0.0
      %3061 = vmatpush1.xpose.msra.mxu0 0.0
      %3062 = vmatprep.subr.mxu0 0.0
      %3063 = vmatpush1.xpose.msra.mxu0 0.0
      %3064 = vmatprep.subr.mxu0 0.0
      %3065 = vmatpush1.xpose.msra.mxu0 0.0
      %3066 = vmatprep.subr.mxu0 0.0
      %3067 = vmatpush1.xpose.msra.mxu0 0.0
      %3068 = vmatprep.subr.mxu0 0.0
      %3069 = vmatpush1.xpose.msra.mxu0 0.0
      %3070 = vmatprep.subr.mxu0 0.0
      %3071 = vmatpush1.xpose.msra.mxu0 0.0
      %3072 = vmatprep.subr.mxu0 0.0
      %3073 = vmatpush1.xpose.msra.mxu0 0.0
      %3074 = vmatprep.subr.mxu0 0.0
      %3075 = vmatpush1.xpose.msra.mxu0 0.0
      %3076 = vmatprep.subr.mxu0 0.0
      %3077 = vmatpush1.xpose.msra.mxu0 0.0
      %3078 = vmatprep.mubr.f32.mxu0 0.0
      %3079 = vmatmul.mubr.f32.gmra.mrb[0].mxu0 %v3006
      %v3080 = vpop.f32.mrb[0].mxu0
      %v3081 = vadd.f32 0.0, %v3080
      %v3082 = vpop.f32.mrb[0].mxu0
      %3083 = vdwg.mxu0
      %v3084 = vsel %vm442, %v3081, -inf
      %3085 = vmax.xlane.f32.xlu0 %v3084
      %v3086 = vpop.xlane.xlu0 %3085
      %v3087 = vsub.f32 %v3081, %v3086
      %v3088 = vmul.f32 %v3087, 1.442695
      %v3089 = vpow.pop %v3088
      %v3090 = vsel %vm442, %v3089, 0.0
      %3091 = vadd.xlane.f32.xlu0 %v3090
      %v3092 = vpop.xlane.xlu0 %3091
      %v3093 = vrcp.pop %v3092
      %v3094 = vmul.f32 %v3089, %v3093
      %3095 = vrot.lane.b32.xlu0 %v2998, 96
      %v3096 = vpop.permute.xlu0 %3095
      %3097 = vrot.lane.b32.xlu0 %v2999, 96
      %v3098 = vpop.permute.xlu0 %3097
      %v3102 = vsel %vm442, %v3094, 0
      %3104 = vmatprep.subr.mxu0 0.0
      %3105 = vmatpush1.msra.mxu0 %v3096
      %3106 = vmatprep.subr.mxu0 0.0
      %3107 = vmatpush1.msra.mxu0 %v3098
      %3108 = vmatprep.subr.mxu0 0.0
      %3109 = vmatpush1.msra.mxu0 0.0
      %3110 = vmatprep.subr.mxu0 0.0
      %3111 = vmatpush1.msra.mxu0 0.0
      %3112 = vmatprep.subr.mxu0 0.0
      %3113 = vmatpush1.msra.mxu0 0.0
      %3114 = vmatprep.subr.mxu0 0.0
      %3115 = vmatpush1.msra.mxu0 0.0
      %3116 = vmatprep.subr.mxu0 0.0
      %3117 = vmatpush1.msra.mxu0 0.0
      %3118 = vmatprep.subr.mxu0 0.0
      %3119 = vmatpush1.msra.mxu0 0.0
      %3120 = vmatprep.subr.mxu0 0.0
      %3121 = vmatpush1.msra.mxu0 0.0
      %3122 = vmatprep.subr.mxu0 0.0
      %3123 = vmatpush1.msra.mxu0 0.0
      %3124 = vmatprep.subr.mxu0 0.0
      %3125 = vmatpush1.msra.mxu0 0.0
      %3126 = vmatprep.subr.mxu0 0.0
      %3127 = vmatpush1.msra.mxu0 0.0
      %3128 = vmatprep.subr.mxu0 0.0
      %3129 = vmatpush1.msra.mxu0 0.0
      %3130 = vmatprep.subr.mxu0 0.0
      %3131 = vmatpush1.msra.mxu0 0.0
      %3132 = vmatprep.subr.mxu0 0.0
      %3133 = vmatpush1.msra.mxu0 0.0
      %3134 = vmatprep.subr.mxu0 0.0
      %3135 = vmatpush1.msra.mxu0 0.0
      %3136 = vmatprep.subr.mxu0 0.0
      %3137 = vmatpush1.msra.mxu0 0.0
      %3138 = vmatprep.subr.mxu0 0.0
      %3139 = vmatpush1.msra.mxu0 0.0
      %3140 = vmatprep.subr.mxu0 0.0
      %3141 = vmatpush1.msra.mxu0 0.0
      %3142 = vmatprep.subr.mxu0 0.0
      %3143 = vmatpush1.msra.mxu0 0.0
      %3144 = vmatprep.subr.mxu0 0.0
      %3145 = vmatpush1.msra.mxu0 0.0
      %3146 = vmatprep.subr.mxu0 0.0
      %3147 = vmatpush1.msra.mxu0 0.0
      %3148 = vmatprep.subr.mxu0 0.0
      %3149 = vmatpush1.msra.mxu0 0.0
      %3150 = vmatprep.subr.mxu0 0.0
      %3151 = vmatpush1.msra.mxu0 0.0
      %3152 = vmatprep.subr.mxu0 0.0
      %3153 = vmatpush1.msra.mxu0 0.0
      %3154 = vmatprep.subr.mxu0 0.0
      %3155 = vmatpush1.msra.mxu0 0.0
      %3156 = vmatprep.subr.mxu0 0.0
      %3157 = vmatpush1.msra.mxu0 0.0
      %3158 = vmatprep.subr.mxu0 0.0
      %3159 = vmatpush1.msra.mxu0 0.0
      %3160 = vmatprep.subr.mxu0 0.0
      %3161 = vmatpush1.msra.mxu0 0.0
      %3162 = vmatprep.subr.mxu0 0.0
      %3163 = vmatpush1.msra.mxu0 0.0
      %3164 = vmatprep.subr.mxu0 0.0
      %3165 = vmatpush1.msra.mxu0 0.0
      %3166 = vmatprep.subr.mxu0 0.0
      %3167 = vmatpush1.msra.mxu0 0.0
      %3168 = vmatprep.mubr.f32.mxu0 0.0
      %3169 = vmatmul.mubr.f32.gmra.mrb[0].mxu0 %v3102
      %v3170 = vpop.f32.mrb[0].mxu0
      %v3171 = vadd.f32 0.0, %v3170
      %v3172 = vpop.f32.mrb[0].mxu0
      %3173 = vdwg.mxu0
      %v3175 = vsel %vm358, %v3171, 0
      %3177 = vmatprep.subr.mxu0 0.0
      %3178 = vmatpush1.msra.mxu0 %v3000
      %3179 = vmatprep.subr.mxu0 0.0
      %3180 = vmatpush1.msra.mxu0 0.0
      %3181 = vmatprep.subr.mxu0 0.0
      %3182 = vmatpush1.msra.mxu0 0.0
      %3183 = vmatprep.subr.mxu0 0.0
      %3184 = vmatpush1.msra.mxu0 0.0
      %3185 = vmatprep.subr.mxu0 0.0
      %3186 = vmatpush1.msra.mxu0 0.0
      %3187 = vmatprep.subr.mxu0 0.0
      %3188 = vmatpush1.msra.mxu0 0.0
      %3189 = vmatprep.subr.mxu0 0.0
      %3190 = vmatpush1.msra.mxu0 0.0
      %3191 = vmatprep.subr.mxu0 0.0
      %3192 = vmatpush1.msra.mxu0 0.0
      %3193 = vmatprep.subr.mxu0 0.0
      %3194 = vmatpush1.msra.mxu0 0.0
      %3195 = vmatprep.subr.mxu0 0.0
      %3196 = vmatpush1.msra.mxu0 0.0
      %3197 = vmatprep.subr.mxu0 0.0
      %3198 = vmatpush1.msra.mxu0 0.0
      %3199 = vmatprep.subr.mxu0 0.0
      %3200 = vmatpush1.msra.mxu0 0.0
      %3201 = vmatprep.subr.mxu0 0.0
      %3202 = vmatpush1.msra.mxu0 0.0
      %3203 = vmatprep.subr.mxu0 0.0
      %3204 = vmatpush1.msra.mxu0 0.0
      %3205 = vmatprep.subr.mxu0 0.0
      %3206 = vmatpush1.msra.mxu0 0.0
      %3207 = vmatprep.subr.mxu0 0.0
      %3208 = vmatpush1.msra.mxu0 0.0
      %3209 = vmatprep.subr.mxu0 0.0
      %3210 = vmatpush1.msra.mxu0 0.0
      %3211 = vmatprep.subr.mxu0 0.0
      %3212 = vmatpush1.msra.mxu0 0.0
      %3213 = vmatprep.subr.mxu0 0.0
      %3214 = vmatpush1.msra.mxu0 0.0
      %3215 = vmatprep.subr.mxu0 0.0
      %3216 = vmatpush1.msra.mxu0 0.0
      %3217 = vmatprep.subr.mxu0 0.0
      %3218 = vmatpush1.msra.mxu0 0.0
      %3219 = vmatprep.subr.mxu0 0.0
      %3220 = vmatpush1.msra.mxu0 0.0
      %3221 = vmatprep.subr.mxu0 0.0
      %3222 = vmatpush1.msra.mxu0 0.0
      %3223 = vmatprep.subr.mxu0 0.0
      %3224 = vmatpush1.msra.mxu0 0.0
      %3225 = vmatprep.subr.mxu0 0.0
      %3226 = vmatpush1.msra.mxu0 0.0
      %3227 = vmatprep.subr.mxu0 0.0
      %3228 = vmatpush1.msra.mxu0 0.0
      %3229 = vmatprep.subr.mxu0 0.0
      %3230 = vmatpush1.msra.mxu0 0.0
      %3231 = vmatprep.subr.mxu0 0.0
      %3232 = vmatpush1.msra.mxu0 0.0
      %3233 = vmatprep.subr.mxu0 0.0
      %3234 = vmatpush1.msra.mxu0 0.0
      %3235 = vmatprep.subr.mxu0 0.0
      %3236 = vmatpush1.msra.mxu0 0.0
      %3237 = vmatprep.subr.mxu0 0.0
      %3238 = vmatpush1.msra.mxu0 0.0
      %3239 = vmatprep.subr.mxu0 0.0
      %3240 = vmatpush1.msra.mxu0 0.0
      %3241 = vmatprep.mubr.f32.mxu0 0.0
      %3242 = vmatmul.mubr.f32.gmra.mrb[0].mxu0 %v3175
      %v3243 = vpop.f32.mrb[0].mxu0
      %v3244 = vadd.f32 0.0, %v3243
      %v3245 = vpop.f32.mrb[0].mxu0
      %3246 = vdwg.mxu0
      %3247 = vrot.lane.b32.xlu0 %v2910, 120
      %v3248 = vpop.permute.xlu0 %3247
      %3249 = vrot.lane.b32.xlu0 %v2998, 120
      %v3250 = vpop.permute.xlu0 %3249
      %3251 = vrot.lane.b32.xlu0 %v2999, 120
      %v3252 = vpop.permute.xlu0 %3251
      %v3253 = vsel %vm358, %v3248, 0
      %v3255 = vsel %vm358, %v3250, 0
      %v3257 = vsel %vm358, %v3252, 0
      %3259 = vmatprep.subr.mxu0 0.0
      %3260 = vmatpush1.xpose.msra.mxu0 %v3255
      %3261 = vmatprep.subr.mxu0 0.0
      %3262 = vmatpush1.xpose.msra.mxu0 %v3257
      %3263 = vmatprep.subr.mxu0 0.0
      %3264 = vmatpush1.xpose.msra.mxu0 0.0
      %3265 = vmatprep.subr.mxu0 0.0
      %3266 = vmatpush1.xpose.msra.mxu0 0.0
      %3267 = vmatprep.subr.mxu0 0.0
      %3268 = vmatpush1.xpose.msra.mxu0 0.0
      %3269 = vmatprep.subr.mxu0 0.0
      %3270 = vmatpush1.xpose.msra.mxu0 0.0
      %3271 = vmatprep.subr.mxu0 0.0
      %3272 = vmatpush1.xpose.msra.mxu0 0.0
      %3273 = vmatprep.subr.mxu0 0.0
      %3274 = vmatpush1.xpose.msra.mxu0 0.0
      %3275 = vmatprep.subr.mxu0 0.0
      %3276 = vmatpush1.xpose.msra.mxu0 0.0
      %3277 = vmatprep.subr.mxu0 0.0
      %3278 = vmatpush1.xpose.msra.mxu0 0.0
      %3279 = vmatprep.subr.mxu0 0.0
      %3280 = vmatpush1.xpose.msra.mxu0 0.0
      %3281 = vmatprep.subr.mxu0 0.0
      %3282 = vmatpush1.xpose.msra.mxu0 0.0
      %3283 = vmatprep.subr.mxu0 0.0
      %3284 = vmatpush1.xpose.msra.mxu0 0.0
      %3285 = vmatprep.subr.mxu0 0.0
      %3286 = vmatpush1.xpose.msra.mxu0 0.0
      %3287 = vmatprep.subr.mxu0 0.0
      %3288 = vmatpush1.xpose.msra.mxu0 0.0
      %3289 = vmatprep.subr.mxu0 0.0
      %3290 = vmatpush1.xpose.msra.mxu0 0.0
      %3291 = vmatprep.subr.mxu0 0.0
      %3292 = vmatpush1.xpose.msra.mxu0 0.0
      %3293 = vmatprep.subr.mxu0 0.0
      %3294 = vmatpush1.xpose.msra.mxu0 0.0
      %3295 = vmatprep.subr.mxu0 0.0
      %3296 = vmatpush1.xpose.msra.mxu0 0.0
      %3297 = vmatprep.subr.mxu0 0.0
      %3298 = vmatpush1.xpose.msra.mxu0 0.0
      %3299 = vmatprep.subr.mxu0 0.0
      %3300 = vmatpush1.xpose.msra.mxu0 0.0
      %3301 = vmatprep.subr.mxu0 0.0
      %3302 = vmatpush1.xpose.msra.mxu0 0.0
      %3303 = vmatprep.subr.mxu0 0.0
      %3304 = vmatpush1.xpose.msra.mxu0 0.0
      %3305 = vmatprep.subr.mxu0 0.0
      %3306 = vmatpush1.xpose.msra.mxu0 0.0
      %3307 = vmatprep.subr.mxu0 0.0
      %3308 = vmatpush1.xpose.msra.mxu0 0.0
      %3309 = vmatprep.subr.mxu0 0.0
      %3310 = vmatpush1.xpose.msra.mxu0 0.0
      %3311 = vmatprep.subr.mxu0 0.0
      %3312 = vmatpush1.xpose.msra.mxu0 0.0
      %3313 = vmatprep.subr.mxu0 0.0
      %3314 = vmatpush1.xpose.msra.mxu0 0.0
      %3315 = vmatprep.subr.mxu0 0.0
      %3316 = vmatpush1.xpose.msra.mxu0 0.0
      %3317 = vmatprep.subr.mxu0 0.0
      %3318 = vmatpush1.xpose.msra.mxu0 0.0
      %3319 = vmatprep.subr.mxu0 0.0
      %3320 = vmatpush1.xpose.msra.mxu0 0.0
      %3321 = vmatprep.subr.mxu0 0.0
      %3322 = vmatpush1.xpose.msra.mxu0 0.0
      %3323 = vmatprep.mubr.f32.mxu0 0.0
      %3324 = vmatmul.mubr.f32.gmra.mrb[0].mxu0 %v3253
      %v3325 = vpop.f32.mrb[0].mxu0
      %v3326 = vadd.f32 0.0, %v3325
      %v3327 = vpop.f32.mrb[0].mxu0
      %3328 = vdwg.mxu0
      %v3329 = vsel %vm442, %v3326, -inf
      %3330 = vmax.xlane.f32.xlu0 %v3329
      %v3331 = vpop.xlane.xlu0 %3330
      %v3332 = vsub.f32 %v3326, %v3331
      %v3333 = vmul.f32 %v3332, 1.442695
      %v3334 = vpow.pop %v3333
      %v3335 = vsel %vm442, %v3334, 0.0
      %3336 = vadd.xlane.f32.xlu0 %v3335
      %v3337 = vpop.xlane.xlu0 %3336
      %v3338 = vrcp.pop %v3337
      %v3339 = vmul.f32 %v3334, %v3338
      %3340 = vrot.lane.b32.xlu0 %v2998, 88
      %v3341 = vpop.permute.xlu0 %3340
      %3342 = vrot.lane.b32.xlu0 %v2999, 88
      %v3343 = vpop.permute.xlu0 %3342
      %v3347 = vsel %vm442, %v3339, 0
      %3349 = vmatprep.subr.mxu0 0.0
      %3350 = vmatpush1.msra.mxu0 %v3341
      %3351 = vmatprep.subr.mxu0 0.0
      %3352 = vmatpush1.msra.mxu0 %v3343
      %3353 = vmatprep.subr.mxu0 0.0
      %3354 = vmatpush1.msra.mxu0 0.0
      %3355 = vmatprep.subr.mxu0 0.0
      %3356 = vmatpush1.msra.mxu0 0.0
      %3357 = vmatprep.subr.mxu0 0.0
      %3358 = vmatpush1.msra.mxu0 0.0
      %3359 = vmatprep.subr.mxu0 0.0
      %3360 = vmatpush1.msra.mxu0 0.0
      %3361 = vmatprep.subr.mxu0 0.0
      %3362 = vmatpush1.msra.mxu0 0.0
      %3363 = vmatprep.subr.mxu0 0.0
      %3364 = vmatpush1.msra.mxu0 0.0
      %3365 = vmatprep.subr.mxu0 0.0
      %3366 = vmatpush1.msra.mxu0 0.0
      %3367 = vmatprep.subr.mxu0 0.0
      %3368 = vmatpush1.msra.mxu0 0.0
      %3369 = vmatprep.subr.mxu0 0.0
      %3370 = vmatpush1.msra.mxu0 0.0
      %3371 = vmatprep.subr.mxu0 0.0
      %3372 = vmatpush1.msra.mxu0 0.0
      %3373 = vmatprep.subr.mxu0 0.0
      %3374 = vmatpush1.msra.mxu0 0.0
      %3375 = vmatprep.subr.mxu0 0.0
      %3376 = vmatpush1.msra.mxu0 0.0
      %3377 = vmatprep.subr.mxu0 0.0
      %3378 = vmatpush1.msra.mxu0 0.0
      %3379 = vmatprep.subr.mxu0 0.0
      %3380 = vmatpush1.msra.mxu0 0.0
      %3381 = vmatprep.subr.mxu0 0.0
      %3382 = vmatpush1.msra.mxu0 0.0
      %3383 = vmatprep.subr.mxu0 0.0
      %3384 = vmatpush1.msra.mxu0 0.0
      %3385 = vmatprep.subr.mxu0 0.0
      %3386 = vmatpush1.msra.mxu0 0.0
      %3387 = vmatprep.subr.mxu0 0.0
      %3388 = vmatpush1.msra.mxu0 0.0
      %3389 = vmatprep.subr.mxu0 0.0
      %3390 = vmatpush1.msra.mxu0 0.0
      %3391 = vmatprep.subr.mxu0 0.0
      %3392 = vmatpush1.msra.mxu0 0.0
      %3393 = vmatprep.subr.mxu0 0.0
      %3394 = vmatpush1.msra.mxu0 0.0
      %3395 = vmatprep.subr.mxu0 0.0
      %3396 = vmatpush1.msra.mxu0 0.0
      %3397 = vmatprep.subr.mxu0 0.0
      %3398 = vmatpush1.msra.mxu0 0.0
      %3399 = vmatprep.subr.mxu0 0.0
      %3400 = vmatpush1.msra.mxu0 0.0
      %3401 = vmatprep.subr.mxu0 0.0
      %3402 = vmatpush1.msra.mxu0 0.0
      %3403 = vmatprep.subr.mxu0 0.0
      %3404 = vmatpush1.msra.mxu0 0.0
      %3405 = vmatprep.subr.mxu0 0.0
      %3406 = vmatpush1.msra.mxu0 0.0
      %3407 = vmatprep.subr.mxu0 0.0
      %3408 = vmatpush1.msra.mxu0 0.0
      %3409 = vmatprep.subr.mxu0 0.0
      %3410 = vmatpush1.msra.mxu0 0.0
      %3411 = vmatprep.subr.mxu0 0.0
      %3412 = vmatpush1.msra.mxu0 0.0
      %3413 = vmatprep.mubr.f32.mxu0 0.0
      %3414 = vmatmul.mubr.f32.gmra.mrb[0].mxu0 %v3347
      %v3415 = vpop.f32.mrb[0].mxu0
      %v3416 = vadd.f32 0.0, %v3415
      %v3417 = vpop.f32.mrb[0].mxu0
      %3418 = vdwg.mxu0
      %v3420 = vsel %vm358, %v3416, 0
      %3422 = vmatprep.subr.mxu0 0.0
      %3423 = vmatpush1.msra.mxu0 %v3001
      %3424 = vmatprep.subr.mxu0 0.0
      %3425 = vmatpush1.msra.mxu0 0.0
      %3426 = vmatprep.subr.mxu0 0.0
      %3427 = vmatpush1.msra.mxu0 0.0
      %3428 = vmatprep.subr.mxu0 0.0
      %3429 = vmatpush1.msra.mxu0 0.0
      %3430 = vmatprep.subr.mxu0 0.0
      %3431 = vmatpush1.msra.mxu0 0.0
      %3432 = vmatprep.subr.mxu0 0.0
      %3433 = vmatpush1.msra.mxu0 0.0
      %3434 = vmatprep.subr.mxu0 0.0
      %3435 = vmatpush1.msra.mxu0 0.0
      %3436 = vmatprep.subr.mxu0 0.0
      %3437 = vmatpush1.msra.mxu0 0.0
      %3438 = vmatprep.subr.mxu0 0.0
      %3439 = vmatpush1.msra.mxu0 0.0
      %3440 = vmatprep.subr.mxu0 0.0
      %3441 = vmatpush1.msra.mxu0 0.0
      %3442 = vmatprep.subr.mxu0 0.0
      %3443 = vmatpush1.msra.mxu0 0.0
      %3444 = vmatprep.subr.mxu0 0.0
      %3445 = vmatpush1.msra.mxu0 0.0
      %3446 = vmatprep.subr.mxu0 0.0
      %3447 = vmatpush1.msra.mxu0 0.0
      %3448 = vmatprep.subr.mxu0 0.0
      %3449 = vmatpush1.msra.mxu0 0.0
      %3450 = vmatprep.subr.mxu0 0.0
      %3451 = vmatpush1.msra.mxu0 0.0
      %3452 = vmatprep.subr.mxu0 0.0
      %3453 = vmatpush1.msra.mxu0 0.0
      %3454 = vmatprep.subr.mxu0 0.0
      %3455 = vmatpush1.msra.mxu0 0.0
      %3456 = vmatprep.subr.mxu0 0.0
      %3457 = vmatpush1.msra.mxu0 0.0
      %3458 = vmatprep.subr.mxu0 0.0
      %3459 = vmatpush1.msra.mxu0 0.0
      %3460 = vmatprep.subr.mxu0 0.0
      %3461 = vmatpush1.msra.mxu0 0.0
      %3462 = vmatprep.subr.mxu0 0.0
      %3463 = vmatpush1.msra.mxu0 0.0
      %3464 = vmatprep.subr.mxu0 0.0
      %3465 = vmatpush1.msra.mxu0 0.0
      %3466 = vmatprep.subr.mxu0 0.0
      %3467 = vmatpush1.msra.mxu0 0.0
      %3468 = vmatprep.subr.mxu0 0.0
      %3469 = vmatpush1.msra.mxu0 0.0
      %3470 = vmatprep.subr.mxu0 0.0
      %3471 = vmatpush1.msra.mxu0 0.0
      %3472 = vmatprep.subr.mxu0 0.0
      %3473 = vmatpush1.msra.mxu0 0.0
      %3474 = vmatprep.subr.mxu0 0.0
      %3475 = vmatpush1.msra.mxu0 0.0
      %3476 = vmatprep.subr.mxu0 0.0
      %3477 = vmatpush1.msra.mxu0 0.0
      %3478 = vmatprep.subr.mxu0 0.0
      %3479 = vmatpush1.msra.mxu0 0.0
      %3480 = vmatprep.subr.mxu0 0.0
      %3481 = vmatpush1.msra.mxu0 0.0
      %3482 = vmatprep.subr.mxu0 0.0
      %3483 = vmatpush1.msra.mxu0 0.0
      %3484 = vmatprep.subr.mxu0 0.0
      %3485 = vmatpush1.msra.mxu0 0.0
      %3486 = vmatprep.mubr.f32.mxu0 0.0
      %3487 = vmatmul.mubr.f32.gmra.mrb[0].mxu0 %v3420
      %v3488 = vpop.f32.mrb[0].mxu0
      %v3489 = vadd.f32 0.0, %v3488
      %v3490 = vpop.f32.mrb[0].mxu0
      %3491 = vdwg.mxu0
      %v3492 = vadd.f32 %v3244, %v3489
      %3493 = vrot.lane.b32.xlu0 %v2910, 112
      %v3494 = vpop.permute.xlu0 %3493
      %3495 = vrot.lane.b32.xlu0 %v2998, 112
      %v3496 = vpop.permute.xlu0 %3495
      %3497 = vrot.lane.b32.xlu0 %v2999, 112
      %v3498 = vpop.permute.xlu0 %3497
      %v3499 = vsel %vm358, %v3494, 0
      %v3501 = vsel %vm358, %v3496, 0
      %v3503 = vsel %vm358, %v3498, 0
      %3505 = vmatprep.subr.mxu0 0.0
      %3506 = vmatpush1.xpose.msra.mxu0 %v3501
      %3507 = vmatprep.subr.mxu0 0.0
      %3508 = vmatpush1.xpose.msra.mxu0 %v3503
      %3509 = vmatprep.subr.mxu0 0.0
      %3510 = vmatpush1.xpose.msra.mxu0 0.0
      %3511 = vmatprep.subr.mxu0 0.0
      %3512 = vmatpush1.xpose.msra.mxu0 0.0
      %3513 = vmatprep.subr.mxu0 0.0
      %3514 = vmatpush1.xpose.msra.mxu0 0.0
      %3515 = vmatprep.subr.mxu0 0.0
      %3516 = vmatpush1.xpose.msra.mxu0 0.0
      %3517 = vmatprep.subr.mxu0 0.0
      %3518 = vmatpush1.xpose.msra.mxu0 0.0
      %3519 = vmatprep.subr.mxu0 0.0
      %3520 = vmatpush1.xpose.msra.mxu0 0.0
      %3521 = vmatprep.subr.mxu0 0.0
      %3522 = vmatpush1.xpose.msra.mxu0 0.0
      %3523 = vmatprep.subr.mxu0 0.0
      %3524 = vmatpush1.xpose.msra.mxu0 0.0
      %3525 = vmatprep.subr.mxu0 0.0
      %3526 = vmatpush1.xpose.msra.mxu0 0.0
      %3527 = vmatprep.subr.mxu0 0.0
      %3528 = vmatpush1.xpose.msra.mxu0 0.0
      %3529 = vmatprep.subr.mxu0 0.0
      %3530 = vmatpush1.xpose.msra.mxu0 0.0
      %3531 = vmatprep.subr.mxu0 0.0
      %3532 = vmatpush1.xpose.msra.mxu0 0.0
      %3533 = vmatprep.subr.mxu0 0.0
      %3534 = vmatpush1.xpose.msra.mxu0 0.0
      %3535 = vmatprep.subr.mxu0 0.0
      %3536 = vmatpush1.xpose.msra.mxu0 0.0
      %3537 = vmatprep.subr.mxu0 0.0
      %3538 = vmatpush1.xpose.msra.mxu0 0.0
      %3539 = vmatprep.subr.mxu0 0.0
      %3540 = vmatpush1.xpose.msra.mxu0 0.0
      %3541 = vmatprep.subr.mxu0 0.0
      %3542 = vmatpush1.xpose.msra.mxu0 0.0
      %3543 = vmatprep.subr.mxu0 0.0
      %3544 = vmatpush1.xpose.msra.mxu0 0.0
      %3545 = vmatprep.subr.mxu0 0.0
      %3546 = vmatpush1.xpose.msra.mxu0 0.0
      %3547 = vmatprep.subr.mxu0 0.0
      %3548 = vmatpush1.xpose.msra.mxu0 0.0
      %3549 = vmatprep.subr.mxu0 0.0
      %3550 = vmatpush1.xpose.msra.mxu0 0.0
      %3551 = vmatprep.subr.mxu0 0.0
      %3552 = vmatpush1.xpose.msra.mxu0 0.0
      %3553 = vmatprep.subr.mxu0 0.0
      %3554 = vmatpush1.xpose.msra.mxu0 0.0
      %3555 = vmatprep.subr.mxu0 0.0
      %3556 = vmatpush1.xpose.msra.mxu0 0.0
      %3557 = vmatprep.subr.mxu0 0.0
      %3558 = vmatpush1.xpose.msra.mxu0 0.0
      %3559 = vmatprep.subr.mxu0 0.0
      %3560 = vmatpush1.xpose.msra.mxu0 0.0
      %3561 = vmatprep.subr.mxu0 0.0
      %3562 = vmatpush1.xpose.msra.mxu0 0.0
      %3563 = vmatprep.subr.mxu0 0.0
      %3564 = vmatpush1.xpose.msra.mxu0 0.0
      %3565 = vmatprep.subr.mxu0 0.0
      %3566 = vmatpush1.xpose.msra.mxu0 0.0
      %3567 = vmatprep.subr.mxu0 0.0
      %3568 = vmatpush1.xpose.msra.mxu0 0.0
      %3569 = vmatprep.mubr.f32.mxu0 0.0
      %3570 = vmatmul.mubr.f32.gmra.mrb[0].mxu0 %v3499
      %v3571 = vpop.f32.mrb[0].mxu0
      %v3572 = vadd.f32 0.0, %v3571
      %v3573 = vpop.f32.mrb[0].mxu0
      %3574 = vdwg.mxu0
      %v3575 = vsel %vm442, %v3572, -inf
      %3576 = vmax.xlane.f32.xlu0 %v3575
      %v3577 = vpop.xlane.xlu0 %3576
      %v3578 = vsub.f32 %v3572, %v3577
      %v3579 = vmul.f32 %v3578, 1.442695
      %v3580 = vpow.pop %v3579
      %v3581 = vsel %vm442, %v3580, 0.0
      %3582 = vadd.xlane.f32.xlu0 %v3581
      %v3583 = vpop.xlane.xlu0 %3582
      %v3584 = vrcp.pop %v3583
      %v3585 = vmul.f32 %v3580, %v3584
      %3586 = vrot.lane.b32.xlu0 %v2998, 80
      %v3587 = vpop.permute.xlu0 %3586
      %3588 = vrot.lane.b32.xlu0 %v2999, 80
      %v3589 = vpop.permute.xlu0 %3588
      %v3593 = vsel %vm442, %v3585, 0
      %3595 = vmatprep.subr.mxu0 0.0
      %3596 = vmatpush1.msra.mxu0 %v3587
      %3597 = vmatprep.subr.mxu0 0.0
      %3598 = vmatpush1.msra.mxu0 %v3589
      %3599 = vmatprep.subr.mxu0 0.0
      %3600 = vmatpush1.msra.mxu0 0.0
      %3601 = vmatprep.subr.mxu0 0.0
      %3602 = vmatpush1.msra.mxu0 0.0
      %3603 = vmatprep.subr.mxu0 0.0
      %3604 = vmatpush1.msra.mxu0 0.0
      %3605 = vmatprep.subr.mxu0 0.0
      %3606 = vmatpush1.msra.mxu0 0.0
      %3607 = vmatprep.subr.mxu0 0.0
      %3608 = vmatpush1.msra.mxu0 0.0
      %3609 = vmatprep.subr.mxu0 0.0
      %3610 = vmatpush1.msra.mxu0 0.0
      %3611 = vmatprep.subr.mxu0 0.0
      %3612 = vmatpush1.msra.mxu0 0.0
      %3613 = vmatprep.subr.mxu0 0.0
      %3614 = vmatpush1.msra.mxu0 0.0
      %3615 = vmatprep.subr.mxu0 0.0
      %3616 = vmatpush1.msra.mxu0 0.0
      %3617 = vmatprep.subr.mxu0 0.0
      %3618 = vmatpush1.msra.mxu0 0.0
      %3619 = vmatprep.subr.mxu0 0.0
      %3620 = vmatpush1.msra.mxu0 0.0
      %3621 = vmatprep.subr.mxu0 0.0
      %3622 = vmatpush1.msra.mxu0 0.0
      %3623 = vmatprep.subr.mxu0 0.0
      %3624 = vmatpush1.msra.mxu0 0.0
      %3625 = vmatprep.subr.mxu0 0.0
      %3626 = vmatpush1.msra.mxu0 0.0
      %3627 = vmatprep.subr.mxu0 0.0
      %3628 = vmatpush1.msra.mxu0 0.0
      %3629 = vmatprep.subr.mxu0 0.0
      %3630 = vmatpush1.msra.mxu0 0.0
      %3631 = vmatprep.subr.mxu0 0.0
      %3632 = vmatpush1.msra.mxu0 0.0
      %3633 = vmatprep.subr.mxu0 0.0
      %3634 = vmatpush1.msra.mxu0 0.0
      %3635 = vmatprep.subr.mxu0 0.0
      %3636 = vmatpush1.msra.mxu0 0.0
      %3637 = vmatprep.subr.mxu0 0.0
      %3638 = vmatpush1.msra.mxu0 0.0
      %3639 = vmatprep.subr.mxu0 0.0
      %3640 = vmatpush1.msra.mxu0 0.0
      %3641 = vmatprep.subr.mxu0 0.0
      %3642 = vmatpush1.msra.mxu0 0.0
      %3643 = vmatprep.subr.mxu0 0.0
      %3644 = vmatpush1.msra.mxu0 0.0
      %3645 = vmatprep.subr.mxu0 0.0
      %3646 = vmatpush1.msra.mxu0 0.0
      %3647 = vmatprep.subr.mxu0 0.0
      %3648 = vmatpush1.msra.mxu0 0.0
      %3649 = vmatprep.subr.mxu0 0.0
      %3650 = vmatpush1.msra.mxu0 0.0
      %3651 = vmatprep.subr.mxu0 0.0
      %3652 = vmatpush1.msra.mxu0 0.0
      %3653 = vmatprep.subr.mxu0 0.0
      %3654 = vmatpush1.msra.mxu0 0.0
      %3655 = vmatprep.subr.mxu0 0.0
      %3656 = vmatpush1.msra.mxu0 0.0
      %3657 = vmatprep.subr.mxu0 0.0
      %3658 = vmatpush1.msra.mxu0 0.0
      %3659 = vmatprep.mubr.f32.mxu0 0.0
      %3660 = vmatmul.mubr.f32.gmra.mrb[0].mxu0 %v3593
      %v3661 = vpop.f32.mrb[0].mxu0
      %v3662 = vadd.f32 0.0, %v3661
      %v3663 = vpop.f32.mrb[0].mxu0
      %3664 = vdwg.mxu0
      %v3666 = vsel %vm358, %v3662, 0
      %3668 = vmatprep.subr.mxu0 0.0
      %3669 = vmatpush1.msra.mxu0 %v3002
      %3670 = vmatprep.subr.mxu0 0.0
      %3671 = vmatpush1.msra.mxu0 0.0
      %3672 = vmatprep.subr.mxu0 0.0
      %3673 = vmatpush1.msra.mxu0 0.0
      %3674 = vmatprep.subr.mxu0 0.0
      %3675 = vmatpush1.msra.mxu0 0.0
      %3676 = vmatprep.subr.mxu0 0.0
      %3677 = vmatpush1.msra.mxu0 0.0
      %3678 = vmatprep.subr.mxu0 0.0
      %3679 = vmatpush1.msra.mxu0 0.0
      %3680 = vmatprep.subr.mxu0 0.0
      %3681 = vmatpush1.msra.mxu0 0.0
      %3682 = vmatprep.subr.mxu0 0.0
      %3683 = vmatpush1.msra.mxu0 0.0
      %3684 = vmatprep.subr.mxu0 0.0
      %3685 = vmatpush1.msra.mxu0 0.0
      %3686 = vmatprep.subr.mxu0 0.0
      %3687 = vmatpush1.msra.mxu0 0.0
      %3688 = vmatprep.subr.mxu0 0.0
      %3689 = vmatpush1.msra.mxu0 0.0
      %3690 = vmatprep.subr.mxu0 0.0
      %3691 = vmatpush1.msra.mxu0 0.0
      %3692 = vmatprep.subr.mxu0 0.0
      %3693 = vmatpush1.msra.mxu0 0.0
      %3694 = vmatprep.subr.mxu0 0.0
      %3695 = vmatpush1.msra.mxu0 0.0
      %3696 = vmatprep.subr.mxu0 0.0
      %3697 = vmatpush1.msra.mxu0 0.0
      %3698 = vmatprep.subr.mxu0 0.0
      %3699 = vmatpush1.msra.mxu0 0.0
      %3700 = vmatprep.subr.mxu0 0.0
      %3701 = vmatpush1.msra.mxu0 0.0
      %3702 = vmatprep.subr.mxu0 0.0
      %3703 = vmatpush1.msra.mxu0 0.0
      %3704 = vmatprep.subr.mxu0 0.0
      %3705 = vmatpush1.msra.mxu0 0.0
      %3706 = vmatprep.subr.mxu0 0.0
      %3707 = vmatpush1.msra.mxu0 0.0
      %3708 = vmatprep.subr.mxu0 0.0
      %3709 = vmatpush1.msra.mxu0 0.0
      %3710 = vmatprep.subr.mxu0 0.0
      %3711 = vmatpush1.msra.mxu0 0.0
      %3712 = vmatprep.subr.mxu0 0.0
      %3713 = vmatpush1.msra.mxu0 0.0
      %3714 = vmatprep.subr.mxu0 0.0
      %3715 = vmatpush1.msra.mxu0 0.0
      %3716 = vmatprep.subr.mxu0 0.0
      %3717 = vmatpush1.msra.mxu0 0.0
      %3718 = vmatprep.subr.mxu0 0.0
      %3719 = vmatpush1.msra.mxu0 0.0
      %3720 = vmatprep.subr.mxu0 0.0
      %3721 = vmatpush1.msra.mxu0 0.0
      %3722 = vmatprep.subr.mxu0 0.0
      %3723 = vmatpush1.msra.mxu0 0.0
      %3724 = vmatprep.subr.mxu0 0.0
      %3725 = vmatpush1.msra.mxu0 0.0
      %3726 = vmatprep.subr.mxu0 0.0
      %3727 = vmatpush1.msra.mxu0 0.0
      %3728 = vmatprep.subr.mxu0 0.0
      %3729 = vmatpush1.msra.mxu0 0.0
      %3730 = vmatprep.subr.mxu0 0.0
      %3731 = vmatpush1.msra.mxu0 0.0
      %3732 = vmatprep.mubr.f32.mxu0 0.0
      %3733 = vmatmul.mubr.f32.gmra.mrb[0].mxu0 %v3666
      %v3734 = vpop.f32.mrb[0].mxu0
      %v3735 = vadd.f32 0.0, %v3734
      %v3736 = vpop.f32.mrb[0].mxu0
      %3737 = vdwg.mxu0
      %v3738 = vadd.f32 %v3492, %v3735
      %3739 = vrot.lane.b32.xlu0 %v2910, 104
      %v3740 = vpop.permute.xlu0 %3739
      %3741 = vrot.lane.b32.xlu0 %v2998, 104
      %v3742 = vpop.permute.xlu0 %3741
      %3743 = vrot.lane.b32.xlu0 %v2999, 104
      %v3744 = vpop.permute.xlu0 %3743
      %v3745 = vsel %vm358, %v3740, 0
      %v3747 = vsel %vm358, %v3742, 0
      %v3749 = vsel %vm358, %v3744, 0
      %3751 = vmatprep.subr.mxu0 0.0
      %3752 = vmatpush1.xpose.msra.mxu0 %v3747
      %3753 = vmatprep.subr.mxu0 0.0
      %3754 = vmatpush1.xpose.msra.mxu0 %v3749
      %3755 = vmatprep.subr.mxu0 0.0
      %3756 = vmatpush1.xpose.msra.mxu0 0.0
      %3757 = vmatprep.subr.mxu0 0.0
      %3758 = vmatpush1.xpose.msra.mxu0 0.0
      %3759 = vmatprep.subr.mxu0 0.0
      %3760 = vmatpush1.xpose.msra.mxu0 0.0
      %3761 = vmatprep.subr.mxu0 0.0
      %3762 = vmatpush1.xpose.msra.mxu0 0.0
      %3763 = vmatprep.subr.mxu0 0.0
      %3764 = vmatpush1.xpose.msra.mxu0 0.0
      %3765 = vmatprep.subr.mxu0 0.0
      %3766 = vmatpush1.xpose.msra.mxu0 0.0
      %3767 = vmatprep.subr.mxu0 0.0
      %3768 = vmatpush1.xpose.msra.mxu0 0.0
      %3769 = vmatprep.subr.mxu0 0.0
      %3770 = vmatpush1.xpose.msra.mxu0 0.0
      %3771 = vmatprep.subr.mxu0 0.0
      %3772 = vmatpush1.xpose.msra.mxu0 0.0
      %3773 = vmatprep.subr.mxu0 0.0
      %3774 = vmatpush1.xpose.msra.mxu0 0.0
      %3775 = vmatprep.subr.mxu0 0.0
      %3776 = vmatpush1.xpose.msra.mxu0 0.0
      %3777 = vmatprep.subr.mxu0 0.0
      %3778 = vmatpush1.xpose.msra.mxu0 0.0
      %3779 = vmatprep.subr.mxu0 0.0
      %3780 = vmatpush1.xpose.msra.mxu0 0.0
      %3781 = vmatprep.subr.mxu0 0.0
      %3782 = vmatpush1.xpose.msra.mxu0 0.0
      %3783 = vmatprep.subr.mxu0 0.0
      %3784 = vmatpush1.xpose.msra.mxu0 0.0
      %3785 = vmatprep.subr.mxu0 0.0
      %3786 = vmatpush1.xpose.msra.mxu0 0.0
      %3787 = vmatprep.subr.mxu0 0.0
      %3788 = vmatpush1.xpose.msra.mxu0 0.0
      %3789 = vmatprep.subr.mxu0 0.0
      %3790 = vmatpush1.xpose.msra.mxu0 0.0
      %3791 = vmatprep.subr.mxu0 0.0
      %3792 = vmatpush1.xpose.msra.mxu0 0.0
      %3793 = vmatprep.subr.mxu0 0.0
      %3794 = vmatpush1.xpose.msra.mxu0 0.0
      %3795 = vmatprep.subr.mxu0 0.0
      %3796 = vmatpush1.xpose.msra.mxu0 0.0
      %3797 = vmatprep.subr.mxu0 0.0
      %3798 = vmatpush1.xpose.msra.mxu0 0.0
      %3799 = vmatprep.subr.mxu0 0.0
      %3800 = vmatpush1.xpose.msra.mxu0 0.0
      %3801 = vmatprep.subr.mxu0 0.0
      %3802 = vmatpush1.xpose.msra.mxu0 0.0
      %3803 = vmatprep.subr.mxu0 0.0
      %3804 = vmatpush1.xpose.msra.mxu0 0.0
      %3805 = vmatprep.subr.mxu0 0.0
      %3806 = vmatpush1.xpose.msra.mxu0 0.0
      %3807 = vmatprep.subr.mxu0 0.0
      %3808 = vmatpush1.xpose.msra.mxu0 0.0
      %3809 = vmatprep.subr.mxu0 0.0
      %3810 = vmatpush1.xpose.msra.mxu0 0.0
      %3811 = vmatprep.subr.mxu0 0.0
      %3812 = vmatpush1.xpose.msra.mxu0 0.0
      %3813 = vmatprep.subr.mxu0 0.0
      %3814 = vmatpush1.xpose.msra.mxu0 0.0
      %3815 = vmatprep.mubr.f32.mxu0 0.0
      %3816 = vmatmul.mubr.f32.gmra.mrb[0].mxu0 %v3745
      %v3817 = vpop.f32.mrb[0].mxu0
      %v3818 = vadd.f32 0.0, %v3817
      %v3819 = vpop.f32.mrb[0].mxu0
      %3820 = vdwg.mxu0
      %v3821 = vsel %vm442, %v3818, -inf
      %3822 = vmax.xlane.f32.xlu0 %v3821
      %v3823 = vpop.xlane.xlu0 %3822
      %v3824 = vsub.f32 %v3818, %v3823
      %v3825 = vmul.f32 %v3824, 1.442695
      %v3826 = vpow.pop %v3825
      %v3827 = vsel %vm442, %v3826, 0.0
      %3828 = vadd.xlane.f32.xlu0 %v3827
      %v3829 = vpop.xlane.xlu0 %3828
      %v3830 = vrcp.pop %v3829
      %v3831 = vmul.f32 %v3826, %v3830
      %3832 = vrot.lane.b32.xlu0 %v2998, 72
      %v3833 = vpop.permute.xlu0 %3832
      %3834 = vrot.lane.b32.xlu0 %v2999, 72
      %v3835 = vpop.permute.xlu0 %3834
      %v3839 = vsel %vm442, %v3831, 0
      %3841 = vmatprep.subr.mxu0 0.0
      %3842 = vmatpush1.msra.mxu0 %v3833
      %3843 = vmatprep.subr.mxu0 0.0
      %3844 = vmatpush1.msra.mxu0 %v3835
      %3845 = vmatprep.subr.mxu0 0.0
      %3846 = vmatpush1.msra.mxu0 0.0
      %3847 = vmatprep.subr.mxu0 0.0
      %3848 = vmatpush1.msra.mxu0 0.0
      %3849 = vmatprep.subr.mxu0 0.0
      %3850 = vmatpush1.msra.mxu0 0.0
      %3851 = vmatprep.subr.mxu0 0.0
      %3852 = vmatpush1.msra.mxu0 0.0
      %3853 = vmatprep.subr.mxu0 0.0
      %3854 = vmatpush1.msra.mxu0 0.0
      %3855 = vmatprep.subr.mxu0 0.0
      %3856 = vmatpush1.msra.mxu0 0.0
      %3857 = vmatprep.subr.mxu0 0.0
      %3858 = vmatpush1.msra.mxu0 0.0
      %3859 = vmatprep.subr.mxu0 0.0
      %3860 = vmatpush1.msra.mxu0 0.0
      %3861 = vmatprep.subr.mxu0 0.0
      %3862 = vmatpush1.msra.mxu0 0.0
      %3863 = vmatprep.subr.mxu0 0.0
      %3864 = vmatpush1.msra.mxu0 0.0
      %3865 = vmatprep.subr.mxu0 0.0
      %3866 = vmatpush1.msra.mxu0 0.0
      %3867 = vmatprep.subr.mxu0 0.0
      %3868 = vmatpush1.msra.mxu0 0.0
      %3869 = vmatprep.subr.mxu0 0.0
      %3870 = vmatpush1.msra.mxu0 0.0
      %3871 = vmatprep.subr.mxu0 0.0
      %3872 = vmatpush1.msra.mxu0 0.0
      %3873 = vmatprep.subr.mxu0 0.0
      %3874 = vmatpush1.msra.mxu0 0.0
      %3875 = vmatprep.subr.mxu0 0.0
      %3876 = vmatpush1.msra.mxu0 0.0
      %3877 = vmatprep.subr.mxu0 0.0
      %3878 = vmatpush1.msra.mxu0 0.0
      %3879 = vmatprep.subr.mxu0 0.0
      %3880 = vmatpush1.msra.mxu0 0.0
      %3881 = vmatprep.subr.mxu0 0.0
      %3882 = vmatpush1.msra.mxu0 0.0
      %3883 = vmatprep.subr.mxu0 0.0
      %3884 = vmatpush1.msra.mxu0 0.0
      %3885 = vmatprep.subr.mxu0 0.0
      %3886 = vmatpush1.msra.mxu0 0.0
      %3887 = vmatprep.subr.mxu0 0.0
      %3888 = vmatpush1.msra.mxu0 0.0
      %3889 = vmatprep.subr.mxu0 0.0
      %3890 = vmatpush1.msra.mxu0 0.0
      %3891 = vmatprep.subr.mxu0 0.0
      %3892 = vmatpush1.msra.mxu0 0.0
      %3893 = vmatprep.subr.mxu0 0.0
      %3894 = vmatpush1.msra.mxu0 0.0
      %3895 = vmatprep.subr.mxu0 0.0
      %3896 = vmatpush1.msra.mxu0 0.0
      %3897 = vmatprep.subr.mxu0 0.0
      %3898 = vmatpush1.msra.mxu0 0.0
      %3899 = vmatprep.subr.mxu0 0.0
      %3900 = vmatpush1.msra.mxu0 0.0
      %3901 = vmatprep.subr.mxu0 0.0
      %3902 = vmatpush1.msra.mxu0 0.0
      %3903 = vmatprep.subr.mxu0 0.0
      %3904 = vmatpush1.msra.mxu0 0.0
      %3905 = vmatprep.mubr.f32.mxu0 0.0
      %3906 = vmatmul.mubr.f32.gmra.mrb[0].mxu0 %v3839
      %v3907 = vpop.f32.mrb[0].mxu0
      %v3908 = vadd.f32 0.0, %v3907
      %v3909 = vpop.f32.mrb[0].mxu0
      %3910 = vdwg.mxu0
      %v3912 = vsel %vm358, %v3908, 0
      %3914 = vmatprep.subr.mxu0 0.0
      %3915 = vmatpush1.msra.mxu0 %v3003
      %3916 = vmatprep.subr.mxu0 0.0
      %3917 = vmatpush1.msra.mxu0 0.0
      %3918 = vmatprep.subr.mxu0 0.0
      %3919 = vmatpush1.msra.mxu0 0.0
      %3920 = vmatprep.subr.mxu0 0.0
      %3921 = vmatpush1.msra.mxu0 0.0
      %3922 = vmatprep.subr.mxu0 0.0
      %3923 = vmatpush1.msra.mxu0 0.0
      %3924 = vmatprep.subr.mxu0 0.0
      %3925 = vmatpush1.msra.mxu0 0.0
      %3926 = vmatprep.subr.mxu0 0.0
      %3927 = vmatpush1.msra.mxu0 0.0
      %3928 = vmatprep.subr.mxu0 0.0
      %3929 = vmatpush1.msra.mxu0 0.0
      %3930 = vmatprep.subr.mxu0 0.0
      %3931 = vmatpush1.msra.mxu0 0.0
      %3932 = vmatprep.subr.mxu0 0.0
      %3933 = vmatpush1.msra.mxu0 0.0
      %3934 = vmatprep.subr.mxu0 0.0
      %3935 = vmatpush1.msra.mxu0 0.0
      %3936 = vmatprep.subr.mxu0 0.0
      %3937 = vmatpush1.msra.mxu0 0.0
      %3938 = vmatprep.subr.mxu0 0.0
      %3939 = vmatpush1.msra.mxu0 0.0
      %3940 = vmatprep.subr.mxu0 0.0
      %3941 = vmatpush1.msra.mxu0 0.0
      %3942 = vmatprep.subr.mxu0 0.0
      %3943 = vmatpush1.msra.mxu0 0.0
      %3944 = vmatprep.subr.mxu0 0.0
      %3945 = vmatpush1.msra.mxu0 0.0
      %3946 = vmatprep.subr.mxu0 0.0
      %3947 = vmatpush1.msra.mxu0 0.0
      %3948 = vmatprep.subr.mxu0 0.0
      %3949 = vmatpush1.msra.mxu0 0.0
      %3950 = vmatprep.subr.mxu0 0.0
      %3951 = vmatpush1.msra.mxu0 0.0
      %3952 = vmatprep.subr.mxu0 0.0
      %3953 = vmatpush1.msra.mxu0 0.0
      %3954 = vmatprep.subr.mxu0 0.0
      %3955 = vmatpush1.msra.mxu0 0.0
      %3956 = vmatprep.subr.mxu0 0.0
      %3957 = vmatpush1.msra.mxu0 0.0
      %3958 = vmatprep.subr.mxu0 0.0
      %3959 = vmatpush1.msra.mxu0 0.0
      %3960 = vmatprep.subr.mxu0 0.0
      %3961 = vmatpush1.msra.mxu0 0.0
      %3962 = vmatprep.subr.mxu0 0.0
      %3963 = vmatpush1.msra.mxu0 0.0
      %3964 = vmatprep.subr.mxu0 0.0
      %3965 = vmatpush1.msra.mxu0 0.0
      %3966 = vmatprep.subr.mxu0 0.0
      %3967 = vmatpush1.msra.mxu0 0.0
      %3968 = vmatprep.subr.mxu0 0.0
      %3969 = vmatpush1.msra.mxu0 0.0
      %3970 = vmatprep.subr.mxu0 0.0
      %3971 = vmatpush1.msra.mxu0 0.0
      %3972 = vmatprep.subr.mxu0 0.0
      %3973 = vmatpush1.msra.mxu0 0.0
      %3974 = vmatprep.subr.mxu0 0.0
      %3975 = vmatpush1.msra.mxu0 0.0
      %3976 = vmatprep.subr.mxu0 0.0
      %3977 = vmatpush1.msra.mxu0 0.0
      %3978 = vmatprep.mubr.f32.mxu0 0.0
      %3979 = vmatmul.mubr.f32.gmra.mrb[0].mxu0 %v3912
      %v3980 = vpop.f32.mrb[0].mxu0
      %v3981 = vadd.f32 0.0, %v3980
      %v3982 = vpop.f32.mrb[0].mxu0
      %3983 = vdwg.mxu0
      %v3984 = vadd.f32 %v3738, %v3981
      %v3985 = vlaneseq
      %v3986 = vshrl.u32 %v3985, 7
      %v3987 = vsub.s32 0, %v3986
      %v3988 = vrot.slane %v3004, %v3987
      %v3989 = vadd.f32 %v3984, %v3988
      %v3990 = vadd.f32 %v2831, %v3989
      %v3991 = vld [vmem:[%s1 + $0x290] sm:$0x1]
      %v3992 = vld [vmem:[%s1 + $0x298] sm:$0x1]
      %v3993 = vsel %vm261, %v3990, 0.0
      %3994 = vadd.xlane.f32.xlu0 %v3993
      %v3995 = vpop.xlane.xlu0 %3994
      %v3996 = vmul.f32 %v3995, %v1498
      %v3997 = vsub.f32 %v3990, %v3996
      %v3998 = vmul.f32 %v3997, %v3997
      %v3999 = vsel %vm261, %v3998, 0.0
      %4000 = vadd.xlane.f32.xlu0 %v3999
      %v4001 = vpop.xlane.xlu0 %4000
      %v4002 = vmul.f32 %v4001, %v1498
      %v4003 = vadd.f32 %v4002, 1e-05
      %v4004 = vrsqrt.pop %v4003
      %v4005 = vmul.f32 %v3997, %v4004
      %v4006 = vlaneseq
      %v4007 = vshrl.u32 %v4006, 7
      %v4008 = vsub.s32 0, %v4007
      %v4009 = vrot.slane %v3991, %v4008
      %v4010 = vmul.f32 %v4005, %v4009
      %v4011 = vlaneseq
      %v4012 = vshrl.u32 %v4011, 7
      %v4013 = vsub.s32 0, %v4012
      %v4014 = vrot.slane %v3992, %v4013
      %v4015 = vadd.f32 %v4010, %v4014
      %v4016 = vld [vmem:[%s1 + $0x2a0] sm:$0xff]
      %v4017 = vld [vmem:[%s1 + $0x2a8] sm:$0xff]
      %v4018 = vld [vmem:[%s1 + $0x2b0] sm:$0xff]
      %v4019 = vld [vmem:[%s1 + $0x2b8] sm:$0xff]
      %v4021 = vsel %vm261, %v4015, 0
      %4023 = vmatprep.subr.mxu0 0.0
      %4024 = vmatpush1.msra.mxu0 %v4016
      %4025 = vmatprep.subr.mxu0 0.0
      %4026 = vmatpush1.msra.mxu0 %v4017
      %4027 = vmatprep.subr.mxu0 0.0
      %4028 = vmatpush1.msra.mxu0 %v4018
      %4029 = vmatprep.subr.mxu0 0.0
      %4030 = vmatpush1.msra.mxu0 %v4019
      %4031 = vmatprep.subr.mxu0 0.0
      %4032 = vmatpush1.msra.mxu0 0.0
      %4033 = vmatprep.subr.mxu0 0.0
      %4034 = vmatpush1.msra.mxu0 0.0
      %4035 = vmatprep.subr.mxu0 0.0
      %4036 = vmatpush1.msra.mxu0 0.0
      %4037 = vmatprep.subr.mxu0 0.0
      %4038 = vmatpush1.msra.mxu0 0.0
      %4039 = vmatprep.subr.mxu0 0.0
      %4040 = vmatpush1.msra.mxu0 0.0
      %4041 = vmatprep.subr.mxu0 0.0
      %4042 = vmatpush1.msra.mxu0 0.0
      %4043 = vmatprep.subr.mxu0 0.0
      %4044 = vmatpush1.msra.mxu0 0.0
      %4045 = vmatprep.subr.mxu0 0.0
      %4046 = vmatpush1.msra.mxu0 0.0
      %4047 = vmatprep.subr.mxu0 0.0
      %4048 = vmatpush1.msra.mxu0 0.0
      %4049 = vmatprep.subr.mxu0 0.0
      %4050 = vmatpush1.msra.mxu0 0.0
      %4051 = vmatprep.subr.mxu0 0.0
      %4052 = vmatpush1.msra.mxu0 0.0
      %4053 = vmatprep.subr.mxu0 0.0
      %4054 = vmatpush1.msra.mxu0 0.0
      %4055 = vmatprep.subr.mxu0 0.0
      %4056 = vmatpush1.msra.mxu0 0.0
      %4057 = vmatprep.subr.mxu0 0.0
      %4058 = vmatpush1.msra.mxu0 0.0
      %4059 = vmatprep.subr.mxu0 0.0
      %4060 = vmatpush1.msra.mxu0 0.0
      %4061 = vmatprep.subr.mxu0 0.0
      %4062 = vmatpush1.msra.mxu0 0.0
      %4063 = vmatprep.subr.mxu0 0.0
      %4064 = vmatpush1.msra.mxu0 0.0
      %4065 = vmatprep.subr.mxu0 0.0
      %4066 = vmatpush1.msra.mxu0 0.0
      %4067 = vmatprep.subr.mxu0 0.0
      %4068 = vmatpush1.msra.mxu0 0.0
      %4069 = vmatprep.subr.mxu0 0.0
      %4070 = vmatpush1.msra.mxu0 0.0
      %4071 = vmatprep.subr.mxu0 0.0
      %4072 = vmatpush1.msra.mxu0 0.0
      %4073 = vmatprep.subr.mxu0 0.0
      %4074 = vmatpush1.msra.mxu0 0.0
      %4075 = vmatprep.subr.mxu0 0.0
      %4076 = vmatpush1.msra.mxu0 0.0
      %4077 = vmatprep.subr.mxu0 0.0
      %4078 = vmatpush1.msra.mxu0 0.0
      %4079 = vmatprep.subr.mxu0 0.0
      %4080 = vmatpush1.msra.mxu0 0.0
      %4081 = vmatprep.subr.mxu0 0.0
      %4082 = vmatpush1.msra.mxu0 0.0
      %4083 = vmatprep.subr.mxu0 0.0
      %4084 = vmatpush1.msra.mxu0 0.0
      %4085 = vmatprep.subr.mxu0 0.0
      %4086 = vmatpush1.msra.mxu0 0.0
      %4087 = vmatprep.mubr.f32.mxu0 0.0
      %4088 = vmatmul.mubr.f32.gmra.mrb[0].mxu0 %v4021
      %v4089 = vpop.f32.mrb[0].mxu0
      %v4090 = vadd.f32 0.0, %v4089
      %v4091 = vpop.f32.mrb[0].mxu0
      %4092 = vdwg.mxu0
      %v4093 = vld [vmem:[%s1 + $0x2c0] sm:$0x1]
      %v4094 = vlaneseq
      %v4095 = vshrl.u32 %v4094, 7
      %v4096 = vsub.s32 0, %v4095
      %v4097 = vrot.slane %v4093, %v4096
      %v4098 = vadd.f32 %v4090, %v4097
      %v4099 = vmax.f32 %v4098, 0.0
      %v4100 = vld [vmem:[%s1 + $0x2c8] sm:$0xff]
      %v4101 = vld [vmem:[%s1 + $0x2d0] sm:$0xff]
      %v4102 = vld [vmem:[%s1 + $0x2d8] sm:$0xff]
      %v4103 = vld [vmem:[%s1 + $0x2e0] sm:$0xff]
      %v4104 = vld [vmem:[%s1 + $0x2e8] sm:$0xff]
      %v4105 = vld [vmem:[%s1 + $0x2f0] sm:$0xff]
      %v4106 = vld [vmem:[%s1 + $0x2f8] sm:$0xff]
      %v4107 = vld [vmem:[%s1 + $0x300] sm:$0xff]
      %v4109 = vsel %vm175, %v4099, 0
      %4111 = vmatprep.subr.mxu0 0.0
      %4112 = vmatpush1.msra.mxu0 %v4100
      %4113 = vmatprep.subr.mxu0 0.0
      %4114 = vmatpush1.msra.mxu0 %v4101
      %4115 = vmatprep.subr.mxu0 0.0
      %4116 = vmatpush1.msra.mxu0 %v4102
      %4117 = vmatprep.subr.mxu0 0.0
      %4118 = vmatpush1.msra.mxu0 %v4103
      %4119 = vmatprep.subr.mxu0 0.0
      %4120 = vmatpush1.msra.mxu0 %v4104
      %4121 = vmatprep.subr.mxu0 0.0
      %4122 = vmatpush1.msra.mxu0 %v4105
      %4123 = vmatprep.subr.mxu0 0.0
      %4124 = vmatpush1.msra.mxu0 %v4106
      %4125 = vmatprep.subr.mxu0 0.0
      %4126 = vmatpush1.msra.mxu0 %v4107
      %4127 = vmatprep.subr.mxu0 0.0
      %4128 = vmatpush1.msra.mxu0 0.0
      %4129 = vmatprep.subr.mxu0 0.0
      %4130 = vmatpush1.msra.mxu0 0.0
      %4131 = vmatprep.subr.mxu0 0.0
      %4132 = vmatpush1.msra.mxu0 0.0
      %4133 = vmatprep.subr.mxu0 0.0
      %4134 = vmatpush1.msra.mxu0 0.0
      %4135 = vmatprep.subr.mxu0 0.0
      %4136 = vmatpush1.msra.mxu0 0.0
      %4137 = vmatprep.subr.mxu0 0.0
      %4138 = vmatpush1.msra.mxu0 0.0
      %4139 = vmatprep.subr.mxu0 0.0
      %4140 = vmatpush1.msra.mxu0 0.0
      %4141 = vmatprep.subr.mxu0 0.0
      %4142 = vmatpush1.msra.mxu0 0.0
      %4143 = vmatprep.subr.mxu0 0.0
      %4144 = vmatpush1.msra.mxu0 0.0
      %4145 = vmatprep.subr.mxu0 0.0
      %4146 = vmatpush1.msra.mxu0 0.0
      %4147 = vmatprep.subr.mxu0 0.0
      %4148 = vmatpush1.msra.mxu0 0.0
      %4149 = vmatprep.subr.mxu0 0.0
      %4150 = vmatpush1.msra.mxu0 0.0
      %4151 = vmatprep.subr.mxu0 0.0
      %4152 = vmatpush1.msra.mxu0 0.0
      %4153 = vmatprep.subr.mxu0 0.0
      %4154 = vmatpush1.msra.mxu0 0.0
      %4155 = vmatprep.subr.mxu0 0.0
      %4156 = vmatpush1.msra.mxu0 0.0
      %4157 = vmatprep.subr.mxu0 0.0
      %4158 = vmatpush1.msra.mxu0 0.0
      %4159 = vmatprep.subr.mxu0 0.0
      %4160 = vmatpush1.msra.mxu0 0.0
      %4161 = vmatprep.subr.mxu0 0.0
      %4162 = vmatpush1.msra.mxu0 0.0
      %4163 = vmatprep.subr.mxu0 0.0
      %4164 = vmatpush1.msra.mxu0 0.0
      %4165 = vmatprep.subr.mxu0 0.0
      %4166 = vmatpush1.msra.mxu0 0.0
      %4167 = vmatprep.subr.mxu0 0.0
      %4168 = vmatpush1.msra.mxu0 0.0
      %4169 = vmatprep.subr.mxu0 0.0
      %4170 = vmatpush1.msra.mxu0 0.0
      %4171 = vmatprep.subr.mxu0 0.0
      %4172 = vmatpush1.msra.mxu0 0.0
      %4173 = vmatprep.subr.mxu0 0.0
      %4174 = vmatpush1.msra.mxu0 0.0
      %4175 = vmatprep.mubr.f32.mxu0 0.0
      %4176 = vmatmul.mubr.f32.gmra.mrb[0].mxu0 %v4109
      %v4177 = vpop.f32.mrb[0].mxu0
      %v4178 = vadd.f32 0.0, %v4177
      %v4179 = vpop.f32.mrb[0].mxu0
      %4180 = vdwg.mxu0
      %v4181 = vld [vmem:[%s1 + $0x308] sm:$0x1]
      %v4182 = vlaneseq
      %v4183 = vshrl.u32 %v4182, 7
      %v4184 = vsub.s32 0, %v4183
      %v4185 = vrot.slane %v4181, %v4184
      %v4186 = vadd.f32 %v4178, %v4185
      %v4187 = vadd.f32 %v4015, %v4186
      %v4188 = vld [vmem:[%s1 + $0x310] sm:$0x1]
      %v4189 = vld [vmem:[%s1 + $0x318] sm:$0x1]
      %v4190 = vsel %vm261, %v4187, 0.0
      %4191 = vadd.xlane.f32.xlu0 %v4190
      %v4192 = vpop.xlane.xlu0 %4191
      %v4193 = vmul.f32 %v4192, %v1498
      %v4194 = vsub.f32 %v4187, %v4193
      %v4195 = vmul.f32 %v4194, %v4194
      %v4196 = vsel %vm261, %v4195, 0.0
      %4197 = vadd.xlane.f32.xlu0 %v4196
      %v4198 = vpop.xlane.xlu0 %4197
      %v4199 = vmul.f32 %v4198, %v1498
      %v4200 = vadd.f32 %v4199, 1e-05
      %v4201 = vrsqrt.pop %v4200
      %v4202 = vmul.f32 %v4194, %v4201
      %v4203 = vlaneseq
      %v4204 = vshrl.u32 %v4203, 7
      %v4205 = vsub.s32 0, %v4204
      %v4206 = vrot.slane %v4188, %v4205
      %v4207 = vmul.f32 %v4202, %v4206
      %v4208 = vlaneseq
      %v4209 = vshrl.u32 %v4208, 7
      %v4210 = vsub.s32 0, %v4209
      %v4211 = vrot.slane %v4189, %v4210
      %v4212 = vadd.f32 %v4207, %v4211
      %v4213 = vld [vmem:[%s1 + $0x320] sm:$0xff]
      %v4214 = vld [vmem:[%s1 + $0x328] sm:$0xff]
      %v4215 = vld [vmem:[%s1 + $0x330] sm:$0xff]
      %v4216 = vld [vmem:[%s1 + $0x338] sm:$0xff]
      %v4218 = vsel %vm261, %v4212, 0
      %4220 = vmatprep.subr.mxu0 0.0
      %4221 = vmatpush1.msra.mxu0 %v4213
      %4222 = vmatprep.subr.mxu0 0.0
      %4223 = vmatpush1.msra.mxu0 %v4214
      %4224 = vmatprep.subr.mxu0 0.0
      %4225 = vmatpush1.msra.mxu0 %v4215
      %4226 = vmatprep.subr.mxu0 0.0
      %4227 = vmatpush1.msra.mxu0 %v4216
      %4228 = vmatprep.subr.mxu0 0.0
      %4229 = vmatpush1.msra.mxu0 0.0
      %4230 = vmatprep.subr.mxu0 0.0
      %4231 = vmatpush1.msra.mxu0 0.0
      %4232 = vmatprep.subr.mxu0 0.0
      %4233 = vmatpush1.msra.mxu0 0.0
      %4234 = vmatprep.subr.mxu0 0.0
      %4235 = vmatpush1.msra.mxu0 0.0
      %4236 = vmatprep.subr.mxu0 0.0
      %4237 = vmatpush1.msra.mxu0 0.0
      %4238 = vmatprep.subr.mxu0 0.0
      %4239 = vmatpush1.msra.mxu0 0.0
      %4240 = vmatprep.subr.mxu0 0.0
      %4241 = vmatpush1.msra.mxu0 0.0
      %4242 = vmatprep.subr.mxu0 0.0
      %4243 = vmatpush1.msra.mxu0 0.0
      %4244 = vmatprep.subr.mxu0 0.0
      %4245 = vmatpush1.msra.mxu0 0.0
      %4246 = vmatprep.subr.mxu0 0.0
      %4247 = vmatpush1.msra.mxu0 0.0
      %4248 = vmatprep.subr.mxu0 0.0
      %4249 = vmatpush1.msra.mxu0 0.0
      %4250 = vmatprep.subr.mxu0 0.0
      %4251 = vmatpush1.msra.mxu0 0.0
      %4252 = vmatprep.subr.mxu0 0.0
      %4253 = vmatpush1.msra.mxu0 0.0
      %4254 = vmatprep.subr.mxu0 0.0
      %4255 = vmatpush1.msra.mxu0 0.0
      %4256 = vmatprep.subr.mxu0 0.0
      %4257 = vmatpush1.msra.mxu0 0.0
      %4258 = vmatprep.subr.mxu0 0.0
      %4259 = vmatpush1.msra.mxu0 0.0
      %4260 = vmatprep.subr.mxu0 0.0
      %4261 = vmatpush1.msra.mxu0 0.0
      %4262 = vmatprep.subr.mxu0 0.0
      %4263 = vmatpush1.msra.mxu0 0.0
      %4264 = vmatprep.subr.mxu0 0.0
      %4265 = vmatpush1.msra.mxu0 0.0
      %4266 = vmatprep.subr.mxu0 0.0
      %4267 = vmatpush1.msra.mxu0 0.0
      %4268 = vmatprep.subr.mxu0 0.0
      %4269 = vmatpush1.msra.mxu0 0.0
      %4270 = vmatprep.subr.mxu0 0.0
      %4271 = vmatpush1.msra.mxu0 0.0
      %4272 = vmatprep.subr.mxu0 0.0
      %4273 = vmatpush1.msra.mxu0 0.0
      %4274 = vmatprep.subr.mxu0 0.0
      %4275 = vmatpush1.msra.mxu0 0.0
      %4276 = vmatprep.subr.mxu0 0.0
      %4277 = vmatpush1.msra.mxu0 0.0
      %4278 = vmatprep.subr.mxu0 0.0
      %4279 = vmatpush1.msra.mxu0 0.0
      %4280 = vmatprep.subr.mxu0 0.0
      %4281 = vmatpush1.msra.mxu0 0.0
      %4282 = vmatprep.subr.mxu0 0.0
      %4283 = vmatpush1.msra.mxu0 0.0
      %4284 = vmatprep.mubr.f32.mxu0 0.0
      %4285 = vmatmul.mubr.f32.gmra.mrb[0].mxu0 %v4218
      %v4286 = vpop.f32.mrb[0].mxu0
      %v4287 = vadd.f32 0.0, %v4286
      %v4288 = vpop.f32.mrb[0].mxu0
      %4289 = vdwg.mxu0
      %v4290 = vld [vmem:[%s1 + $0x340] sm:$0x1]
      %v4291 = vlaneseq
      %v4292 = vshrl.u32 %v4291, 7
      %v4293 = vsub.s32 0, %v4292
      %v4294 = vrot.slane %v4290, %v4293
      %v4295 = vadd.f32 %v4287, %v4294
      %v4296 = vmax.f32 %v4295, 0.0
      %v4297 = vld [vmem:[%s1 + $0x348] sm:$0xff]
      %v4298 = vld [vmem:[%s1 + $0x350] sm:$0xff]
      %v4299 = vld [vmem:[%s1 + $0x358] sm:$0xff]
      %v4300 = vld [vmem:[%s1 + $0x360] sm:$0xff]
      %v4302 = vsel %vm261, %v4296, 0
      %4304 = vmatprep.subr.mxu0 0.0
      %4305 = vmatpush1.msra.mxu0 %v4297
      %4306 = vmatprep.subr.mxu0 0.0
      %4307 = vmatpush1.msra.mxu0 %v4298
      %4308 = vmatprep.subr.mxu0 0.0
      %4309 = vmatpush1.msra.mxu0 %v4299
      %4310 = vmatprep.subr.mxu0 0.0
      %4311 = vmatpush1.msra.mxu0 %v4300
      %4312 = vmatprep.subr.mxu0 0.0
      %4313 = vmatpush1.msra.mxu0 0.0
      %4314 = vmatprep.subr.mxu0 0.0
      %4315 = vmatpush1.msra.mxu0 0.0
      %4316 = vmatprep.subr.mxu0 0.0
      %4317 = vmatpush1.msra.mxu0 0.0
      %4318 = vmatprep.subr.mxu0 0.0
      %4319 = vmatpush1.msra.mxu0 0.0
      %4320 = vmatprep.subr.mxu0 0.0
      %4321 = vmatpush1.msra.mxu0 0.0
      %4322 = vmatprep.subr.mxu0 0.0
      %4323 = vmatpush1.msra.mxu0 0.0
      %4324 = vmatprep.subr.mxu0 0.0
      %4325 = vmatpush1.msra.mxu0 0.0
      %4326 = vmatprep.subr.mxu0 0.0
      %4327 = vmatpush1.msra.mxu0 0.0
      %4328 = vmatprep.subr.mxu0 0.0
      %4329 = vmatpush1.msra.mxu0 0.0
      %4330 = vmatprep.subr.mxu0 0.0
      %4331 = vmatpush1.msra.mxu0 0.0
      %4332 = vmatprep.subr.mxu0 0.0
      %4333 = vmatpush1.msra.mxu0 0.0
      %4334 = vmatprep.subr.mxu0 0.0
      %4335 = vmatpush1.msra.mxu0 0.0
      %4336 = vmatprep.subr.mxu0 0.0
      %4337 = vmatpush1.msra.mxu0 0.0
      %4338 = vmatprep.subr.mxu0 0.0
      %4339 = vmatpush1.msra.mxu0 0.0
      %4340 = vmatprep.subr.mxu0 0.0
      %4341 = vmatpush1.msra.mxu0 0.0
      %4342 = vmatprep.subr.mxu0 0.0
      %4343 = vmatpush1.msra.mxu0 0.0
      %4344 = vmatprep.subr.mxu0 0.0
      %4345 = vmatpush1.msra.mxu0 0.0
      %4346 = vmatprep.subr.mxu0 0.0
      %4347 = vmatpush1.msra.mxu0 0.0
      %4348 = vmatprep.subr.mxu0 0.0
      %4349 = vmatpush1.msra.mxu0 0.0
      %4350 = vmatprep.subr.mxu0 0.0
      %4351 = vmatpush1.msra.mxu0 0.0
      %4352 = vmatprep.subr.mxu0 0.0
      %4353 = vmatpush1.msra.mxu0 0.0
      %4354 = vmatprep.subr.mxu0 0.0
      %4355 = vmatpush1.msra.mxu0 0.0
      %4356 = vmatprep.subr.mxu0 0.0
      %4357 = vmatpush1.msra.mxu0 0.0
      %4358 = vmatprep.subr.mxu0 0.0
      %4359 = vmatpush1.msra.mxu0 0.0
      %4360 = vmatprep.subr.mxu0 0.0
      %4361 = vmatpush1.msra.mxu0 0.0
      %4362 = vmatprep.subr.mxu0 0.0
      %4363 = vmatpush1.msra.mxu0 0.0
      %4364 = vmatprep.subr.mxu0 0.0
      %4365 = vmatpush1.msra.mxu0 0.0
      %4366 = vmatprep.subr.mxu0 0.0
      %4367 = vmatpush1.msra.mxu0 0.0
      %4368 = vmatprep.mubr.f32.mxu0 0.0
      %4369 = vmatmul.mubr.f32.gmra.mrb[0].mxu0 %v4302
      %v4370 = vpop.f32.mrb[0].mxu0
      %v4371 = vadd.f32 0.0, %v4370
      %v4372 = vpop.f32.mrb[0].mxu0
      %4373 = vdwg.mxu0
      %v4374 = vld [vmem:[%s1 + $0x368] sm:$0x1]
      %v4375 = vlaneseq
      %v4376 = vshrl.u32 %v4375, 7
      %v4377 = vsub.s32 0, %v4376
      %v4378 = vrot.slane %v4374, %v4377
      %v4379 = vadd.f32 %v4371, %v4378
      %v4380 = vmax.f32 %v4379, 0.0
      %v4381 = vld [vmem:[%s1 + $0x370] sm:$0xff]
      %v4382 = vld [vmem:[%s1 + $0x378] sm:$0xff]
      %v4383 = vld [vmem:[%s1 + $0x380] sm:$0xff]
      %v4384 = vld [vmem:[%s1 + $0x388] sm:$0xff]
      %v4386 = vsel %vm261, %v4380, 0
      %4388 = vmatprep.subr.mxu0 0.0
      %4389 = vmatpush1.msra.mxu0 %v4381
      %4390 = vmatprep.subr.mxu0 0.0
      %4391 = vmatpush1.msra.mxu0 %v4382
      %4392 = vmatprep.subr.mxu0 0.0
      %4393 = vmatpush1.msra.mxu0 %v4383
      %4394 = vmatprep.subr.mxu0 0.0
      %4395 = vmatpush1.msra.mxu0 %v4384
      %4396 = vmatprep.subr.mxu0 0.0
      %4397 = vmatpush1.msra.mxu0 0.0
      %4398 = vmatprep.subr.mxu0 0.0
      %4399 = vmatpush1.msra.mxu0 0.0
      %4400 = vmatprep.subr.mxu0 0.0
      %4401 = vmatpush1.msra.mxu0 0.0
      %4402 = vmatprep.subr.mxu0 0.0
      %4403 = vmatpush1.msra.mxu0 0.0
      %4404 = vmatprep.subr.mxu0 0.0
      %4405 = vmatpush1.msra.mxu0 0.0
      %4406 = vmatprep.subr.mxu0 0.0
      %4407 = vmatpush1.msra.mxu0 0.0
      %4408 = vmatprep.subr.mxu0 0.0
      %4409 = vmatpush1.msra.mxu0 0.0
      %4410 = vmatprep.subr.mxu0 0.0
      %4411 = vmatpush1.msra.mxu0 0.0
      %4412 = vmatprep.subr.mxu0 0.0
      %4413 = vmatpush1.msra.mxu0 0.0
      %4414 = vmatprep.subr.mxu0 0.0
      %4415 = vmatpush1.msra.mxu0 0.0
      %4416 = vmatprep.subr.mxu0 0.0
      %4417 = vmatpush1.msra.mxu0 0.0
      %4418 = vmatprep.subr.mxu0 0.0
      %4419 = vmatpush1.msra.mxu0 0.0
      %4420 = vmatprep.subr.mxu0 0.0
      %4421 = vmatpush1.msra.mxu0 0.0
      %4422 = vmatprep.subr.mxu0 0.0
      %4423 = vmatpush1.msra.mxu0 0.0
      %4424 = vmatprep.subr.mxu0 0.0
      %4425 = vmatpush1.msra.mxu0 0.0
      %4426 = vmatprep.subr.mxu0 0.0
      %4427 = vmatpush1.msra.mxu0 0.0
      %4428 = vmatprep.subr.mxu0 0.0
      %4429 = vmatpush1.msra.mxu0 0.0
      %4430 = vmatprep.subr.mxu0 0.0
      %4431 = vmatpush1.msra.mxu0 0.0
      %4432 = vmatprep.subr.mxu0 0.0
      %4433 = vmatpush1.msra.mxu0 0.0
      %4434 = vmatprep.subr.mxu0 0.0
      %4435 = vmatpush1.msra.mxu0 0.0
      %4436 = vmatprep.subr.mxu0 0.0
      %4437 = vmatpush1.msra.mxu0 0.0
      %4438 = vmatprep.subr.mxu0 0.0
      %4439 = vmatpush1.msra.mxu0 0.0
      %4440 = vmatprep.subr.mxu0 0.0
      %4441 = vmatpush1.msra.mxu0 0.0
      %4442 = vmatprep.subr.mxu0 0.0
      %4443 = vmatpush1.msra.mxu0 0.0
      %4444 = vmatprep.subr.mxu0 0.0
      %4445 = vmatpush1.msra.mxu0 0.0
      %4446 = vmatprep.subr.mxu0 0.0
      %4447 = vmatpush1.msra.mxu0 0.0
      %4448 = vmatprep.subr.mxu0 0.0
      %4449 = vmatpush1.msra.mxu0 0.0
      %4450 = vmatprep.subr.mxu0 0.0
      %4451 = vmatpush1.msra.mxu0 0.0
      %4452 = vmatprep.mubr.f32.mxu0 0.0
      %4453 = vmatmul.mubr.f32.gmra.mrb[0].mxu0 %v4386
      %v4454 = vpop.f32.mrb[0].mxu0
      %v4455 = vadd.f32 0.0, %v4454
      %v4456 = vpop.f32.mrb[0].mxu0
      %4457 = vdwg.mxu0
      %v4458 = vld [vmem:[%s1 + $0x390] sm:$0x1]
      %v4459 = vlaneseq
      %v4460 = vshrl.u32 %v4459, 7
      %v4461 = vsub.s32 0, %v4460
      %v4462 = vrot.slane %v4458, %v4461
      %v4463 = vadd.f32 %v4455, %v4462
      %v4464 = vxor.u32 %v4463, 2147483648
      %v4465 = vmul.f32 %v4464, 1.442695
      %v4466 = vpow.pop %v4465
      %v4467 = vadd.f32 %v4466, 1.0
      %v4468 = vrcp.pop %v4467
      %v4469 = vmul.f32 1.0, %v4468
      %vm4470 = vcmask 302336
      %v4471 = vsel %vm4470, %v4295, -inf
      %4472 = vmax.xlane.f32.xlu0 %v4471
      %v4473 = vpop.xlane.xlu0 %4472
      %v4474 = vsub.f32 %v4295, %v4473
      %v4475 = vmul.f32 %v4474, 1.442695
      %v4476 = vpow.pop %v4475
      %4478 = vrot.lane.b32.xlu0 %v4476, 96
      %v4479 = vpop.permute.xlu0 %4478
      %vm4481 = vcmask 39936
      %v4482 = vsel %vm4481, %v4479, 0.0
      %4483 = vadd.xlane.f32.xlu0 %v4482
      %v4484 = vpop.xlane.xlu0 %4483
      %v4485 = vrcp.pop %v4484
      %v4486 = vmul.f32 %v4476, %v4485
      %vm4487 = vcmask 294144
      %v4488 = vsel %vm4487, %v4486, -inf
      %4489 = vmax.xlane.f32.xlu0 %v4488
      %v4490 = vpop.xlane.xlu0 %4489
      %v4491 = vlaneseq
      %v4492 = vand.u32 %v4491, 127
      %vm4493 = vcmp.eq.f32.partialorder %v4486, %v4490
      %4494 = vrot.lane.b32.xlu0 %v4492, 32
      %v4495 = vpop.permute.xlu0 %4494
      %v4496 = vsel %vm4493, %v4495, 4
      %v4497 = vsel %vm4487, %v4496, 2147483647
      %v4498 = vand.u32 %v4497, 65535
      %v4499 = vshra.s32 %v4497, 16
      %v4500 = vcvt.s32.f32 %v4498
      %v4501 = vcvt.s32.f32 %v4499
      %4502 = vmin.xlane.f32.xlu0 %v4501
      %v4503 = vpop.xlane.xlu0 %4502
      %vm4504 = vcmp.eq.f32.partialorder %v4501, %v4503
      %v4505 = vsel %vm4504, %v4500, inf
      %4506 = vmin.xlane.f32.xlu0 %v4505
      %v4507 = vpop.xlane.xlu0 %4506
      %v4508 = vcvt.f32.s32 %v4507
      %v4509 = vcvt.f32.s32 %v4503
      %v4510 = vshll.u32 %v4509, 16
      %v4511 = vadd.s32 %v4510, %v4508
      %vm4512 = vcmp.gt.f32.partialorder %v4490, 0.9
      %v4513 = vsel %vm4512, 1, 0
      %v4514 = vcvt.s32.f32 %v4513
      %v4515 = vmul.f32 %v4469, 0.5
      %4517 = vrot.lane.b32.xlu0 %v4515, 126
      %v4518 = vpop.permute.xlu0 %4517
      %v4520 = vsub.f32 %v4469, %v4518
      %v4521 = vmul.f32 %v4520, 32.0
      %v4522 = vadd.f32 %v4469, %v4518
      %v4523 = vmul.f32 %v4522, 32.0
      %4525 = vrot.lane.b32.xlu0 %v4295, 96
      %v4526 = vpop.permute.xlu0 %4525
      %4528 = vst.msk [vmem:[%s141] sm:$0xff] %vm4481, %v4526
      %4530 = vrot.lane.b32.xlu0 %v4469, 5
      %v4531 = vpop.permute.xlu0 %4530
      %vm4533 = vcmask 72744
      %4534 = vst.msk [vmem:[%s141] sm:$0xff] %vm4533, %v4531
      %v4535 = vadd.f32 %v4521, %v4523
      %v4536 = vmul.f32 %v4535, 0.5
      %4538 = vrot.lane.b32.xlu0 %v4536, 9
      %v4539 = vpop.permute.xlu0 %4538
      %vm4541 = vcmask 80968
      %4542 = vst.msk [vmem:[%s141] sm:$0xff] %vm4541, %v4539
      %vm4543 = vcmask 89168
      %4544 = vst.msk [vmem:[%s141] sm:$0xff] %vm4543, %v4539
      %v4545 = vsub.f32 %v4523, %v4521
      %4547 = vrot.lane.b32.xlu0 %v4545, 11
      %v4548 = vpop.permute.xlu0 %4547
      %vm4550 = vcmask 97368
      %4551 = vst.msk [vmem:[%s141] sm:$0xff] %vm4550, %v4548
      %vm4552 = vcmask 105568
      %4553 = vst.msk [vmem:[%s141] sm:$0xff] %vm4552, %v4548
      %vm4554 = vcmask 113768
      %4555 = vst.msk [vmem:[%s141] sm:$0xff] %vm4554, %v4490
      %v4556 = vcvt.s32.f32 %v4511
      %vm4557 = vcmask 121968
      %4558 = vst.msk [vmem:[%s141] sm:$0xff] %vm4557, %v4556
      %vm4559 = vcmask 130168
      %4560 = vst.msk [vmem:[%s141] sm:$0xff] %vm4559, %v4514
      %vm4561 = vcmask 1047680
      %4562 = vst.msk [vmem:[%s141] sm:$0xff] %vm4561, 0.0
      %p4563 = scmp.lt.s32.totalorder %s13, 1
      %s4564 = scalar_select %p4563, %s13, 1
      %s4565 = smul.addr %s4564, 8
      %s4566 = scalar_lea.vmem %s2, %s4565
      // Predicated region
      $region29: #{base_detr_forward.1} parent=27 // pred_check
        %p4567 = pneg %p78
      $region30: #{base_detr_forward.1} parent=27 // pred_check_branch
        %4569 = sbr.rel (%p4567) target = $region32
      $region31: #{base_detr_forward.1} parent=27 // pred_region
        _
      $region32: #{base_detr_forward.1} parent=27 // pred_fallthru
        _
    $region28: #{base_detr_forward.1} parent=5 // pred_fallthru
      _
    %p4570 = scmp.le.s32.totalorder 2, %s8
    // Predicated region
    $region33: #{base_detr_forward.1} parent=5 // pred_check
      %p4571 = pneg %p4570
    $region34: #{base_detr_forward.1} parent=5 // pred_check_branch
      %4573 = sbr.rel (%p4571) target = $region36
    $region35: #{base_detr_forward.1} parent=5 // pred_region
      %s4574 = ssub.s32 %s8, 2
      // Predicated region
      $region37: #{base_detr_forward.1} parent=35 // pred_check
        %p4575 = pneg %p84
      $region38: #{base_detr_forward.1} parent=35 // pred_check_branch
        %4577 = sbr.rel (%p4575) target = $region40
      $region39: #{base_detr_forward.1} parent=35 // pred_region
        %p4578 = scmp.lt.s32.totalorder %s14, 1
        %s4579 = scalar_select %p4578, %s14, 1
        %s4580 = smul.addr %s4579, 8
        %s4581 = scalar_lea.vmem %s2, %s4580
      $region40: #{base_detr_forward.1} parent=35 // pred_fallthru
        _
    $region36: #{base_detr_forward.1} parent=5 // pred_fallthru
      _
  $region6: #{base_detr_forward.1} parent=0 // loop_footer
    %s12 = sadd.s32 1, %s8
  $region7: #{base_detr_forward.1} parent=0 // loop_footer_branch
    %7 = sbr.rel target = $region3
  $region8: #{base_detr_forward.1} parent=0 // loop_exit
    _

</llo_original>
